<compile_context>
chip_gen: v7x
topology: tpu7x:2x2x1
jax: 0.10.0
libtpu: 0.0.40
codegen_flags: <defaults>
</compile_context>

<pallas_src>
import functools

import numpy as np
import jax
import jax.numpy as jnp
from jax.experimental import pallas as pl
from jax.experimental.pallas import tpu as pltpu

LEAKY_SLOPE = 0.01  # nn.LeakyReLU default negative_slope


# --------------- wrapper-side bilinear upsample (f32, separable, align_corners=False) ---------------

def _interp_matrix(in_size, out_size):
    """(out_size, in_size) matrix reproducing F.interpolate(mode='bilinear',
    align_corners=False) along one spatial axis."""
    scale = in_size / out_size
    o = jnp.arange(out_size, dtype=jnp.float32)
    src = jnp.maximum((o + 0.5) * scale - 0.5, 0.0)
    i0 = jnp.minimum(jnp.floor(src).astype(jnp.int32), in_size - 1)
    i1 = jnp.minimum(i0 + 1, in_size - 1)
    w1 = src - i0.astype(jnp.float32)
    w0 = 1.0 - w1
    eye = jnp.eye(in_size, dtype=jnp.float32)
    return w0[:, None] * eye[i0] + w1[:, None] * eye[i1]


def _bilinear_resize_nchw(img, oh, ow):
    """Separable f32 bilinear resize of an NCHW image (two tiny einsums, O(HW*(OH+OW)))."""
    _, _, h, w = img.shape
    mh = _interp_matrix(h, oh)          # (OH, H)
    mw = _interp_matrix(w, ow)          # (OW, W)
    t = jnp.einsum('oh,nchw->ncow', mh, img)
    return jnp.einsum('pw,ncow->ncop', mw, t)


# --------------- static per-tap validity masks (vertical AND horizontal padding) ---------------

def _tap_masks(oh, ow, dilations):
    """(8*len(dilations), oh*ow) f32 {0,1} masks for the 8 non-center taps of each dilation.
    Precomputed with numpy (shapes are static) and passed as one small constant input."""
    rows = []
    r = np.arange(oh)[:, None]
    c = np.arange(ow)[None, :]
    for d in dilations:
        for k in range(9):
            if k == 4:
                continue
            kh, kw = divmod(k, 3)
            dh, dw = (kh - 1) * d, (kw - 1) * d
            ok = (r + dh >= 0) & (r + dh < oh) & (c + dw >= 0) & (c + dw < ow)
            rows.append(ok.reshape(-1))
    return jnp.asarray(np.stack(rows), dtype=jnp.float32)


# ------------------------- fused kernel -------------------------

def _build_kernel(*, node, OH, OW, cout, offs, cdt):
    OHW = OH * OW

    def kernel(*refs):
        it = iter(refs)
        up_ref, mask_ref = next(it), next(it)
        w1_ref, b1_ref = next(it), next(it)
        w2_ref, b2_ref, t1_ref = next(it), next(it), next(it)
        w3_ref, b3_ref, t2_ref = next(it), next(it), next(it)
        e1_ref = e2_ref = pv_ref = None
        if node == 2:
            e1_ref, e2_ref = next(it), next(it)
        elif node != 1:
            pv_ref, e1_ref = next(it), next(it)
        o_ref = next(it)
        col_ref = next(it)                       # (9*Cout, OH*OW) bf16 im2col scratch (VMEM)

        f32 = jnp.float32

        def leaky(v):
            return jnp.where(v > 0, v, LEAKY_SLOPE * v)

        def conv3x3(act, w_r, b_r, sh_r, d_idx, d):
            """3x3 conv (stride 1, dilation d, zero 'same' padding) + LeakyReLU + folded
            eval-mode BatchNorm shift, as ONE long-K (9*Cout) bf16 MXU matmul.
            act: (Cout, OH*OW) f32.  Each tap = pltpu.roll of the in-register activation
            (XLU slot) * precomputed validity mask (f32, mask-then-cast), stored full-width."""
            col_ref[4 * cout:5 * cout, :] = act.astype(cdt)       # center tap, no mask needed
            for k in range(9):
                if k == 4:
                    continue
                kh, kw = divmod(k, 3)
                s = ((kh - 1) * d) * OW + (kw - 1) * d            # flat lane shift of this tap
                row = d_idx * 8 + (k if k < 4 else k - 1)
                m = mask_ref[row:row + 1, :]                      # (1, OHW) {0,1} f32 constant
                tap = pltpu.roll(act, shift=(-s) % OHW, axis=1) * m
                col_ref[k * cout:(k + 1) * cout, :] = tap.astype(cdt)
            y = jnp.dot(w_r[...], col_ref[...], preferred_element_type=f32)
            # BN scale pre-folded into w_r / b_r (scale > 0); only the shift remains.
            return leaky(y + b_r[...]) + sh_r[...]

        up = up_ref[...]                                          # (Cin, OH*OW) f32

        # conv1 (1x1) + LeakyReLU  -> shortcut
        sc = jnp.dot(w1_ref[...], up.astype(cdt), preferred_element_type=f32)
        sc = leaky(sc + b1_ref[...])
        o_ref[offs[0]:offs[1], :] = sc.astype(o_ref.dtype)

        # conv2 (3x3, d=1) + act + bn1 ; conv3 (3x3, d=2) + act + bn2
        resA = conv3x3(sc, w2_ref, b2_ref, t1_ref, 0, 1)
        resA1 = conv3x3(resA, w3_ref, b3_ref, t2_ref, 1, 2)
        o_ref[offs[1]:offs[2], :] = resA1.astype(o_ref.dtype)

        # remaining concat members written straight into their channel slices of the output
        if node == 2:
            o_ref[offs[2]:offs[3], :] = up.astype(o_ref.dtype)
            o_ref[offs[3]:offs[4], :] = e1_ref[...].astype(o_ref.dtype)
            o_ref[offs[4]:offs[5], :] = e2_ref[...].astype(o_ref.dtype)
        elif node != 1:
            o_ref[offs[2]:offs[3], :] = up.astype(o_ref.dtype)
            o_ref[offs[3]:offs[4], :] = pv_ref[...].astype(o_ref.dtype)
            o_ref[offs[4]:offs[5], :] = e1_ref[...].astype(o_ref.dtype)
            o_ref[offs[5]:offs[6], :] = e1_ref[...].astype(o_ref.dtype)  # encode_1 twice (as in ref)

    return kernel


# ------------------------- module forward -------------------------

@functools.partial(jax.jit, static_argnums=(3,))
def decoder_block_forward(params, x, previous, Node, encode_1, encode_2):
    """Forward pass of Decoder_block.  All image tensors are NCHW like the PyTorch module."""
    N, Cin, H, W = x.shape
    Cout = params['w1'].shape[0]
    do_up = Node != 1
    OH, OW = (2 * H, 2 * W) if do_up else (H, W)
    OHW = OH * OW
    cdt = jnp.bfloat16                                      # MXU operand dtype (f32 accumulate)

    # f32 separable bilinear upsample (matches F.interpolate, align_corners=False); done in the
    # wrapper so no O((HW)^2) interpolation matrix ever lands in VMEM.
    up = _bilinear_resize_nchw(x, OH, OW) if do_up else x

    # ---- channel layout of the fused concat output ----
    if Node == 1:
        widths = [Cout, Cout]                               # shortcut, resA1
    elif Node == 2:
        widths = [Cout, Cout, Cin, encode_1.shape[1], encode_2.shape[1]]
    else:
        widths = [Cout, Cout, Cin, previous.shape[1],
                  encode_1.shape[1], encode_1.shape[1]]     # encode_1 twice, as in the reference
    offs = [0]
    for c in widths:
        offs.append(offs[-1] + c)
    Ctot = offs[-1]

    # ---- kernel inputs as channels-first (C, OH*OW) slabs ----
    inputs, in_specs = [], []

    def add_batched(slab):                                  # (N, C, OH*OW)
        C = slab.shape[1]
        inputs.append(slab)
        in_specs.append(pl.BlockSpec((None, C, OHW), lambda n: (n, 0, 0)))

    def add_const(arr):                                     # small 2-D constants (weights/masks)
        inputs.append(arr)
        in_specs.append(pl.BlockSpec(arr.shape, lambda n: (0, 0)))

    add_batched(up.reshape(N, Cin, OHW))
    add_const(_tap_masks(OH, OW, (1, 2)))                   # (16, OHW) precomputed tap masks
    for name in ('w1', 'b1', 'w2', 'b2', 'bn1_shift', 'w3', 'b3', 'bn2_shift'):
        add_const(params[name])

    if Node == 2:
        add_batched(encode_1.reshape(N, encode_1.shape[1], OHW))
        add_batched(encode_2.reshape(N, encode_2.shape[1], OHW))
    elif Node != 1:
        prev_up = _bilinear_resize_nchw(previous, OH, OW)   # scale_factor=4 bilinear, f32
        add_batched(prev_up.reshape(N, previous.shape[1], OHW))
        add_batched(encode_1.reshape(N, encode_1.shape[1], OHW))

    kernel = _build_kernel(node=Node, OH=OH, OW=OW, cout=Cout, offs=tuple(offs), cdt=cdt)

    out = pl.pallas_call(
        kernel,
        out_shape=jax.ShapeDtypeStruct((N, Ctot, OHW), x.dtype),
        grid=(N,),
        in_specs=in_specs,
        out_specs=pl.BlockSpec((None, Ctot, OHW), lambda n: (n, 0, 0)),
        scratch_shapes=[pltpu.VMEM((9 * Cout, OHW), cdt)],  # im2col staging buffer
        compiler_params=pltpu.CompilerParams(
            dimension_semantics=("parallel",)),             # batch axis -> megacore-shardable
    )(*inputs)
    return out.reshape(N, Ctot, OH, OW)


# ------------------------- deterministic parameter init (PyTorch layouts, then folded) -----------------

def init_params(key, in_channels, out_channels):
    ks = jax.random.split(key, 10)
    eps = 1e-5
    cdt = jnp.bfloat16

    w1 = 0.1 * jax.random.normal(ks[0], (out_channels, in_channels, 1, 1), jnp.float32)
    b1 = 0.1 * jax.random.normal(ks[1], (out_channels,), jnp.float32)
    w2 = 0.1 * jax.random.normal(ks[2], (out_channels, out_channels, 3, 3), jnp.float32)
    b2 = 0.1 * jax.random.normal(ks[3], (out_channels,), jnp.float32)
    w3 = 0.1 * jax.random.normal(ks[4], (out_channels, out_channels, 3, 3), jnp.float32)
    b3 = 0.1 * jax.random.normal(ks[5], (out_channels,), jnp.float32)

    # eval-mode BatchNorm: fold running stats + affine into per-channel scale/shift
    run_mean = jnp.zeros((out_channels,), jnp.float32)
    run_var = jnp.ones((out_channels,), jnp.float32)
    gamma1 = 1.0 + 0.1 * jax.random.normal(ks[6], (out_channels,), jnp.float32)
    beta1 = 0.1 * jax.random.normal(ks[7], (out_channels,), jnp.float32)
    gamma2 = 1.0 + 0.1 * jax.random.normal(ks[8], (out_channels,), jnp.float32)
    beta2 = 0.1 * jax.random.normal(ks[9], (out_channels,), jnp.float32)
    s1 = gamma1 / jnp.sqrt(run_var + eps)
    s2 = gamma2 / jnp.sqrt(run_var + eps)
    sh1 = beta1 - run_mean * s1
    sh2 = beta2 - run_mean * s2

    # Fold BN scale into conv2/conv3 weights+bias: leaky(s*v) = s*leaky(v) for s > 0, so
    # conv -> leaky -> (s*y + t)  ==  (s-scaled conv) -> leaky -> (+t).
    assert bool(jnp.all(s1 > 0)) and bool(jnp.all(s2 > 0)), "BN scale must be > 0 to fold"

    def fold3x3(w):  # (Cout, Cin, 3, 3) -> (Cout, 9*Cin), K ordered as (kh, kw, cin)
        co, ci = w.shape[0], w.shape[1]
        return jnp.transpose(w, (0, 2, 3, 1)).reshape(co, 9 * ci)

    col = lambda v: v.reshape(-1, 1)
    return {
        'w1': w1[:, :, 0, 0].astype(cdt),                        # (Cout, Cin)
        'b1': col(b1),
        'w2': (fold3x3(w2) * s1[:, None]).astype(cdt),           # BN1 scale folded
        'b2': col(b2 * s1),
        'bn1_shift': col(sh1),
        'w3': (fold3x3(w3) * s2[:, None]).astype(cdt),           # BN2 scale folded
        'b3': col(b3 * s2),
        'bn2_shift': col(sh2),
    }


if __name__ == "__main__":
    key = jax.random.PRNGKey(0)
    k_x, k_e1, k_e2, k_prev, k_p = jax.random.split(key, 5)

    in_channels, out_channels = 4, 8
    N, H, W = 2, 16, 16                                     # x is pre-upsample; 2x bilinear -> 32x32

    x = jax.random.normal(k_x, (N, in_channels, H, W), jnp.float32)            # NCHW
    encode_1 = jax.random.normal(k_e1, (N, 4, 2 * H, 2 * W), jnp.float32)
    encode_2 = jax.random.normal(k_e2, (N, 4, 2 * H, 2 * W), jnp.float32)
    previous = jax.random.normal(k_prev, (N, 3, H // 2, W // 2), jnp.float32)  # only used for Node>2

    params = init_params(k_p, in_channels, out_channels)

    out2 = decoder_block_forward(params, x, previous, 2, encode_1, encode_2)
    jax.block_until_ready(out2)
    assert out2.shape == (N, 2 * out_channels + in_channels + 4 + 4, 2 * H, 2 * W)

    out1 = decoder_block_forward(params, x, previous, 1, encode_1, encode_2)
    jax.block_until_ready(out1)
    assert out1.shape == (N, 2 * out_channels, H, W)

    out3 = decoder_block_forward(params, x, previous, 3, encode_1, encode_2)
    jax.block_until_ready(out3)
    assert out3.shape == (N, 2 * out_channels + in_channels + 3 + 4 + 4, 2 * H, 2 * W)

    print("KERNEL_OK")
</pallas_src>

<mosaic_0001>
module attributes {stable_mosaic.version = 11 : i64} {
  func.func @kernel(%arg0: i32, %arg1: memref<1x4x1024xf32, #tpu.memory_space<vmem>>, %arg2: memref<16x1024xf32, #tpu.memory_space<vmem>>, %arg3: memref<8x4xbf16, #tpu.memory_space<vmem>>, %arg4: memref<8x1xf32, #tpu.memory_space<vmem>>, %arg5: memref<8x72xbf16, #tpu.memory_space<vmem>>, %arg6: memref<8x1xf32, #tpu.memory_space<vmem>>, %arg7: memref<8x1xf32, #tpu.memory_space<vmem>>, %arg8: memref<8x72xbf16, #tpu.memory_space<vmem>>, %arg9: memref<8x1xf32, #tpu.memory_space<vmem>>, %arg10: memref<8x1xf32, #tpu.memory_space<vmem>>, %arg11: memref<1x4x1024xf32, #tpu.memory_space<vmem>>, %arg12: memref<1x4x1024xf32, #tpu.memory_space<vmem>>, %arg13: memref<1x28x1024xf32, #tpu.memory_space<vmem>>, %arg14: memref<72x1024xbf16, #tpu.memory_space<vmem>>) attributes {dimension_semantics = [#tpu.dimension_semantics<parallel>], iteration_bounds = array<i64: 2>, scalar_prefetch = 0 : i64, scratch_operands = 1 : i64, tpu.core_type = #tpu.core_type<tc>, window_params = [{transform_indices = @transform_0, window_bounds = array<i64: 1, 4, 1024>}, {pipeline_mode = #tpu.pipeline_mode<synchronous>, transform_indices = @transform_1, window_bounds = array<i64: 16, 1024>}, {pipeline_mode = #tpu.pipeline_mode<synchronous>, transform_indices = @transform_2, window_bounds = array<i64: 8, 4>}, {pipeline_mode = #tpu.pipeline_mode<synchronous>, transform_indices = @transform_3, window_bounds = array<i64: 8, 1>}, {pipeline_mode = #tpu.pipeline_mode<synchronous>, transform_indices = @transform_4, window_bounds = array<i64: 8, 72>}, {pipeline_mode = #tpu.pipeline_mode<synchronous>, transform_indices = @transform_5, window_bounds = array<i64: 8, 1>}, {pipeline_mode = #tpu.pipeline_mode<synchronous>, transform_indices = @transform_6, window_bounds = array<i64: 8, 1>}, {pipeline_mode = #tpu.pipeline_mode<synchronous>, transform_indices = @transform_7, window_bounds = array<i64: 8, 72>}, {pipeline_mode = #tpu.pipeline_mode<synchronous>, transform_indices = @transform_8, window_bounds = array<i64: 8, 1>}, {pipeline_mode = #tpu.pipeline_mode<synchronous>, transform_indices = @transform_9, window_bounds = array<i64: 8, 1>}, {transform_indices = @transform_10, window_bounds = array<i64: 1, 4, 1024>}, {transform_indices = @transform_11, window_bounds = array<i64: 1, 4, 1024>}, {transform_indices = @transform_12, window_bounds = array<i64: 1, 28, 1024>}]} {
    %c0 = arith.constant 0 : index
    %c0_0 = arith.constant 0 : index
    %c0_1 = arith.constant 0 : index
    %0 = vector.load %arg1[%c0, %c0_0, %c0_1] : memref<1x4x1024xf32, #tpu.memory_space<vmem>>, vector<1x4x1024xf32>
    %1 = vector.shape_cast %0 : vector<1x4x1024xf32> to vector<4x1024xf32>
    %c0_2 = arith.constant 0 : index
    %c0_3 = arith.constant 0 : index
    %2 = vector.load %arg3[%c0_2, %c0_3] : memref<8x4xbf16, #tpu.memory_space<vmem>>, vector<8x4xbf16>
    %3 = arith.truncf %1 : vector<4x1024xf32> to vector<4x1024xbf16>
    %cst = arith.constant dense<0.000000e+00> : vector<8x1024xf32>
    %4 = tpu.matmul %2, %3, %cst {dimension_numbers = #tpu.dot_dimension_numbers<[1], [0], [0], [1], [0, 0, 1, 1], [], []>} : vector<8x4xbf16>, vector<4x1024xbf16>, vector<8x1024xf32> -> vector<8x1024xf32>
    %c0_4 = arith.constant 0 : index
    %c0_5 = arith.constant 0 : index
    %5 = vector.load %arg4[%c0_4, %c0_5] : memref<8x1xf32, #tpu.memory_space<vmem>>, vector<8x1xf32>
    %6 = vector.broadcast %5 : vector<8x1xf32> to vector<8x1024xf32>
    %7 = arith.addf %4, %6 : vector<8x1024xf32>
    %cst_6 = arith.constant 0.000000e+00 : f32
    %8 = vector.broadcast %cst_6 : f32 to vector<8x1024xf32>
    %9 = arith.cmpf ogt, %7, %8 : vector<8x1024xf32>
    %cst_7 = arith.constant 0.00999999977 : f32
    %10 = vector.broadcast %cst_7 : f32 to vector<8x1024xf32>
    %11 = arith.mulf %10, %7 : vector<8x1024xf32>
    %12 = arith.select %9, %7, %11 : vector<8x1024xi1>, vector<8x1024xf32>
    %c0_8 = arith.constant 0 : index
    %c0_9 = arith.constant 0 : index
    %c0_10 = arith.constant 0 : index
    %13 = vector.load %arg13[%c0_8, %c0_9, %c0_10] : memref<1x28x1024xf32, #tpu.memory_space<vmem>>, vector<1x8x1024xf32>
    %14 = vector.shape_cast %13 : vector<1x8x1024xf32> to vector<8x1024xf32>
    %15 = vector.shape_cast %12 : vector<8x1024xf32> to vector<1x8x1024xf32>
    tpu.vector_store %arg13[%c0_8, %c0_9, %c0_10], %15 {strides = array<i32>} : memref<1x28x1024xf32, #tpu.memory_space<vmem>>, vector<1x8x1024xf32>,
    %16 = arith.truncf %12 : vector<8x1024xf32> to vector<8x1024xbf16>
    %c32 = arith.constant 32 : index
    %c0_11 = arith.constant 0 : index
    %17 = vector.load %arg14[%c32, %c0_11] : memref<72x1024xbf16, #tpu.memory_space<vmem>>, vector<8x1024xbf16>
    tpu.vector_store %arg14[%c32, %c0_11], %16 {strides = array<i32>} : memref<72x1024xbf16, #tpu.memory_space<vmem>>, vector<8x1024xbf16>,
    %c0_12 = arith.constant 0 : index
    %c0_13 = arith.constant 0 : index
    %18 = vector.load %arg2[%c0_12, %c0_13] : memref<16x1024xf32, #tpu.memory_space<vmem>>, vector<1x1024xf32>
    %c33_i32 = arith.constant 33 : i32
    %19 = tpu.dynamic_rotate %12 by %c33_i32 dim 1 : vector<8x1024xf32>, i32 -> vector<8x1024xf32>
    %20 = vector.broadcast %18 : vector<1x1024xf32> to vector<8x1024xf32>
    %21 = arith.mulf %19, %20 : vector<8x1024xf32>
    %22 = arith.truncf %21 : vector<8x1024xf32> to vector<8x1024xbf16>
    %c0_14 = arith.constant 0 : index
    %c0_15 = arith.constant 0 : index
    %23 = vector.load %arg14[%c0_14, %c0_15] : memref<72x1024xbf16, #tpu.memory_space<vmem>>, vector<8x1024xbf16>
    tpu.vector_store %arg14[%c0_14, %c0_15], %22 {strides = array<i32>} : memref<72x1024xbf16, #tpu.memory_space<vmem>>, vector<8x1024xbf16>,
    %c1 = arith.constant 1 : index
    %c0_16 = arith.constant 0 : index
    %24 = vector.load %arg2[%c1, %c0_16] : memref<16x1024xf32, #tpu.memory_space<vmem>>, vector<1x1024xf32>
    %c32_i32 = arith.constant 32 : i32
    %25 = tpu.dynamic_rotate %12 by %c32_i32 dim 1 : vector<8x1024xf32>, i32 -> vector<8x1024xf32>
    %26 = vector.broadcast %24 : vector<1x1024xf32> to vector<8x1024xf32>
    %27 = arith.mulf %25, %26 : vector<8x1024xf32>
    %28 = arith.truncf %27 : vector<8x1024xf32> to vector<8x1024xbf16>
    %c8 = arith.constant 8 : index
    %c0_17 = arith.constant 0 : index
    %29 = vector.load %arg14[%c8, %c0_17] : memref<72x1024xbf16, #tpu.memory_space<vmem>>, vector<8x1024xbf16>
    tpu.vector_store %arg14[%c8, %c0_17], %28 {strides = array<i32>} : memref<72x1024xbf16, #tpu.memory_space<vmem>>, vector<8x1024xbf16>,
    %c2 = arith.constant 2 : index
    %c0_18 = arith.constant 0 : index
    %30 = vector.load %arg2[%c2, %c0_18] : memref<16x1024xf32, #tpu.memory_space<vmem>>, vector<1x1024xf32>
    %c31_i32 = arith.constant 31 : i32
    %31 = tpu.dynamic_rotate %12 by %c31_i32 dim 1 : vector<8x1024xf32>, i32 -> vector<8x1024xf32>
    %32 = vector.broadcast %30 : vector<1x1024xf32> to vector<8x1024xf32>
    %33 = arith.mulf %31, %32 : vector<8x1024xf32>
    %34 = arith.truncf %33 : vector<8x1024xf32> to vector<8x1024xbf16>
    %c16 = arith.constant 16 : index
    %c0_19 = arith.constant 0 : index
    %35 = vector.load %arg14[%c16, %c0_19] : memref<72x1024xbf16, #tpu.memory_space<vmem>>, vector<8x1024xbf16>
    tpu.vector_store %arg14[%c16, %c0_19], %34 {strides = array<i32>} : memref<72x1024xbf16, #tpu.memory_space<vmem>>, vector<8x1024xbf16>,
    %c3 = arith.constant 3 : index
    %c0_20 = arith.constant 0 : index
    %36 = vector.load %arg2[%c3, %c0_20] : memref<16x1024xf32, #tpu.memory_space<vmem>>, vector<1x1024xf32>
    %c1_i32 = arith.constant 1 : i32
    %37 = tpu.dynamic_rotate %12 by %c1_i32 dim 1 : vector<8x1024xf32>, i32 -> vector<8x1024xf32>
    %38 = vector.broadcast %36 : vector<1x1024xf32> to vector<8x1024xf32>
    %39 = arith.mulf %37, %38 : vector<8x1024xf32>
    %40 = arith.truncf %39 : vector<8x1024xf32> to vector<8x1024xbf16>
    %c24 = arith.constant 24 : index
    %c0_21 = arith.constant 0 : index
    %41 = vector.load %arg14[%c24, %c0_21] : memref<72x1024xbf16, #tpu.memory_space<vmem>>, vector<8x1024xbf16>
    tpu.vector_store %arg14[%c24, %c0_21], %40 {strides = array<i32>} : memref<72x1024xbf16, #tpu.memory_space<vmem>>, vector<8x1024xbf16>,
    %c4 = arith.constant 4 : index
    %c0_22 = arith.constant 0 : index
    %42 = vector.load %arg2[%c4, %c0_22] : memref<16x1024xf32, #tpu.memory_space<vmem>>, vector<1x1024xf32>
    %c1023_i32 = arith.constant 1023 : i32
    %43 = tpu.dynamic_rotate %12 by %c1023_i32 dim 1 : vector<8x1024xf32>, i32 -> vector<8x1024xf32>
    %44 = vector.broadcast %42 : vector<1x1024xf32> to vector<8x1024xf32>
    %45 = arith.mulf %43, %44 : vector<8x1024xf32>
    %46 = arith.truncf %45 : vector<8x1024xf32> to vector<8x1024xbf16>
    %c40 = arith.constant 40 : index
    %c0_23 = arith.constant 0 : index
    %47 = vector.load %arg14[%c40, %c0_23] : memref<72x1024xbf16, #tpu.memory_space<vmem>>, vector<8x1024xbf16>
    tpu.vector_store %arg14[%c40, %c0_23], %46 {strides = array<i32>} : memref<72x1024xbf16, #tpu.memory_space<vmem>>, vector<8x1024xbf16>,
    %c5 = arith.constant 5 : index
    %c0_24 = arith.constant 0 : index
    %48 = vector.load %arg2[%c5, %c0_24] : memref<16x1024xf32, #tpu.memory_space<vmem>>, vector<1x1024xf32>
    %c993_i32 = arith.constant 993 : i32
    %49 = tpu.dynamic_rotate %12 by %c993_i32 dim 1 : vector<8x1024xf32>, i32 -> vector<8x1024xf32>
    %50 = vector.broadcast %48 : vector<1x1024xf32> to vector<8x1024xf32>
    %51 = arith.mulf %49, %50 : vector<8x1024xf32>
    %52 = arith.truncf %51 : vector<8x1024xf32> to vector<8x1024xbf16>
    %c48 = arith.constant 48 : index
    %c0_25 = arith.constant 0 : index
    %53 = vector.load %arg14[%c48, %c0_25] : memref<72x1024xbf16, #tpu.memory_space<vmem>>, vector<8x1024xbf16>
    tpu.vector_store %arg14[%c48, %c0_25], %52 {strides = array<i32>} : memref<72x1024xbf16, #tpu.memory_space<vmem>>, vector<8x1024xbf16>,
    %c6 = arith.constant 6 : index
    %c0_26 = arith.constant 0 : index
    %54 = vector.load %arg2[%c6, %c0_26] : memref<16x1024xf32, #tpu.memory_space<vmem>>, vector<1x1024xf32>
    %c992_i32 = arith.constant 992 : i32
    %55 = tpu.dynamic_rotate %12 by %c992_i32 dim 1 : vector<8x1024xf32>, i32 -> vector<8x1024xf32>
    %56 = vector.broadcast %54 : vector<1x1024xf32> to vector<8x1024xf32>
    %57 = arith.mulf %55, %56 : vector<8x1024xf32>
    %58 = arith.truncf %57 : vector<8x1024xf32> to vector<8x1024xbf16>
    %c56 = arith.constant 56 : index
    %c0_27 = arith.constant 0 : index
    %59 = vector.load %arg14[%c56, %c0_27] : memref<72x1024xbf16, #tpu.memory_space<vmem>>, vector<8x1024xbf16>
    tpu.vector_store %arg14[%c56, %c0_27], %58 {strides = array<i32>} : memref<72x1024xbf16, #tpu.memory_space<vmem>>, vector<8x1024xbf16>,
    %c7 = arith.constant 7 : index
    %c0_28 = arith.constant 0 : index
    %60 = vector.load %arg2[%c7, %c0_28] : memref<16x1024xf32, #tpu.memory_space<vmem>>, vector<1x1024xf32>
    %c991_i32 = arith.constant 991 : i32
    %61 = tpu.dynamic_rotate %12 by %c991_i32 dim 1 : vector<8x1024xf32>, i32 -> vector<8x1024xf32>
    %62 = vector.broadcast %60 : vector<1x1024xf32> to vector<8x1024xf32>
    %63 = arith.mulf %61, %62 : vector<8x1024xf32>
    %64 = arith.truncf %63 : vector<8x1024xf32> to vector<8x1024xbf16>
    %c64 = arith.constant 64 : index
    %c0_29 = arith.constant 0 : index
    %65 = vector.load %arg14[%c64, %c0_29] : memref<72x1024xbf16, #tpu.memory_space<vmem>>, vector<8x1024xbf16>
    tpu.vector_store %arg14[%c64, %c0_29], %64 {strides = array<i32>} : memref<72x1024xbf16, #tpu.memory_space<vmem>>, vector<8x1024xbf16>,
    %c0_30 = arith.constant 0 : index
    %c0_31 = arith.constant 0 : index
    %66 = vector.load %arg5[%c0_30, %c0_31] : memref<8x72xbf16, #tpu.memory_space<vmem>>, vector<8x72xbf16>
    %c0_32 = arith.constant 0 : index
    %c0_33 = arith.constant 0 : index
    %67 = vector.load %arg14[%c0_32, %c0_33] : memref<72x1024xbf16, #tpu.memory_space<vmem>>, vector<72x1024xbf16>
    %cst_34 = arith.constant dense<0.000000e+00> : vector<8x1024xf32>
    %68 = tpu.matmul %66, %67, %cst_34 {dimension_numbers = #tpu.dot_dimension_numbers<[1], [0], [0], [1], [0, 0, 1, 1], [], []>} : vector<8x72xbf16>, vector<72x1024xbf16>, vector<8x1024xf32> -> vector<8x1024xf32>
    %c0_35 = arith.constant 0 : index
    %c0_36 = arith.constant 0 : index
    %69 = vector.load %arg6[%c0_35, %c0_36] : memref<8x1xf32, #tpu.memory_space<vmem>>, vector<8x1xf32>
    %70 = vector.broadcast %69 : vector<8x1xf32> to vector<8x1024xf32>
    %71 = arith.addf %68, %70 : vector<8x1024xf32>
    %cst_37 = arith.constant 0.000000e+00 : f32
    %72 = vector.broadcast %cst_37 : f32 to vector<8x1024xf32>
    %73 = arith.cmpf ogt, %71, %72 : vector<8x1024xf32>
    %cst_38 = arith.constant 0.00999999977 : f32
    %74 = vector.broadcast %cst_38 : f32 to vector<8x1024xf32>
    %75 = arith.mulf %74, %71 : vector<8x1024xf32>
    %76 = arith.select %73, %71, %75 : vector<8x1024xi1>, vector<8x1024xf32>
    %c0_39 = arith.constant 0 : index
    %c0_40 = arith.constant 0 : index
    %77 = vector.load %arg7[%c0_39, %c0_40] : memref<8x1xf32, #tpu.memory_space<vmem>>, vector<8x1xf32>
    %78 = vector.broadcast %77 : vector<8x1xf32> to vector<8x1024xf32>
    %79 = arith.addf %76, %78 : vector<8x1024xf32>
    %80 = arith.truncf %79 : vector<8x1024xf32> to vector<8x1024xbf16>
    %c32_41 = arith.constant 32 : index
    %c0_42 = arith.constant 0 : index
    %81 = vector.load %arg14[%c32_41, %c0_42] : memref<72x1024xbf16, #tpu.memory_space<vmem>>, vector<8x1024xbf16>
    tpu.vector_store %arg14[%c32_41, %c0_42], %80 {strides = array<i32>} : memref<72x1024xbf16, #tpu.memory_space<vmem>>, vector<8x1024xbf16>,
    %c8_43 = arith.constant 8 : index
    %c0_44 = arith.constant 0 : index
    %82 = vector.load %arg2[%c8_43, %c0_44] : memref<16x1024xf32, #tpu.memory_space<vmem>>, vector<1x1024xf32>
    %c66_i32 = arith.constant 66 : i32
    %83 = tpu.dynamic_rotate %79 by %c66_i32 dim 1 : vector<8x1024xf32>, i32 -> vector<8x1024xf32>
    %84 = vector.broadcast %82 : vector<1x1024xf32> to vector<8x1024xf32>
    %85 = arith.mulf %83, %84 : vector<8x1024xf32>
    %86 = arith.truncf %85 : vector<8x1024xf32> to vector<8x1024xbf16>
    %c0_45 = arith.constant 0 : index
    %c0_46 = arith.constant 0 : index
    %87 = vector.load %arg14[%c0_45, %c0_46] : memref<72x1024xbf16, #tpu.memory_space<vmem>>, vector<8x1024xbf16>
    tpu.vector_store %arg14[%c0_45, %c0_46], %86 {strides = array<i32>} : memref<72x1024xbf16, #tpu.memory_space<vmem>>, vector<8x1024xbf16>,
    %c9 = arith.constant 9 : index
    %c0_47 = arith.constant 0 : index
    %88 = vector.load %arg2[%c9, %c0_47] : memref<16x1024xf32, #tpu.memory_space<vmem>>, vector<1x1024xf32>
    %c64_i32 = arith.constant 64 : i32
    %89 = tpu.dynamic_rotate %79 by %c64_i32 dim 1 : vector<8x1024xf32>, i32 -> vector<8x1024xf32>
    %90 = vector.broadcast %88 : vector<1x1024xf32> to vector<8x1024xf32>
    %91 = arith.mulf %89, %90 : vector<8x1024xf32>
    %92 = arith.truncf %91 : vector<8x1024xf32> to vector<8x1024xbf16>
    %c8_48 = arith.constant 8 : index
    %c0_49 = arith.constant 0 : index
    %93 = vector.load %arg14[%c8_48, %c0_49] : memref<72x1024xbf16, #tpu.memory_space<vmem>>, vector<8x1024xbf16>
    tpu.vector_store %arg14[%c8_48, %c0_49], %92 {strides = array<i32>} : memref<72x1024xbf16, #tpu.memory_space<vmem>>, vector<8x1024xbf16>,
    %c10 = arith.constant 10 : index
    %c0_50 = arith.constant 0 : index
    %94 = vector.load %arg2[%c10, %c0_50] : memref<16x1024xf32, #tpu.memory_space<vmem>>, vector<1x1024xf32>
    %c62_i32 = arith.constant 62 : i32
    %95 = tpu.dynamic_rotate %79 by %c62_i32 dim 1 : vector<8x1024xf32>, i32 -> vector<8x1024xf32>
    %96 = vector.broadcast %94 : vector<1x1024xf32> to vector<8x1024xf32>
    %97 = arith.mulf %95, %96 : vector<8x1024xf32>
    %98 = arith.truncf %97 : vector<8x1024xf32> to vector<8x1024xbf16>
    %c16_51 = arith.constant 16 : index
    %c0_52 = arith.constant 0 : index
    %99 = vector.load %arg14[%c16_51, %c0_52] : memref<72x1024xbf16, #tpu.memory_space<vmem>>, vector<8x1024xbf16>
    tpu.vector_store %arg14[%c16_51, %c0_52], %98 {strides = array<i32>} : memref<72x1024xbf16, #tpu.memory_space<vmem>>, vector<8x1024xbf16>,
    %c11 = arith.constant 11 : index
    %c0_53 = arith.constant 0 : index
    %100 = vector.load %arg2[%c11, %c0_53] : memref<16x1024xf32, #tpu.memory_space<vmem>>, vector<1x1024xf32>
    %c2_i32 = arith.constant 2 : i32
    %101 = tpu.dynamic_rotate %79 by %c2_i32 dim 1 : vector<8x1024xf32>, i32 -> vector<8x1024xf32>
    %102 = vector.broadcast %100 : vector<1x1024xf32> to vector<8x1024xf32>
    %103 = arith.mulf %101, %102 : vector<8x1024xf32>
    %104 = arith.truncf %103 : vector<8x1024xf32> to vector<8x1024xbf16>
    %c24_54 = arith.constant 24 : index
    %c0_55 = arith.constant 0 : index
    %105 = vector.load %arg14[%c24_54, %c0_55] : memref<72x1024xbf16, #tpu.memory_space<vmem>>, vector<8x1024xbf16>
    tpu.vector_store %arg14[%c24_54, %c0_55], %104 {strides = array<i32>} : memref<72x1024xbf16, #tpu.memory_space<vmem>>, vector<8x1024xbf16>,
    %c12 = arith.constant 12 : index
    %c0_56 = arith.constant 0 : index
    %106 = vector.load %arg2[%c12, %c0_56] : memref<16x1024xf32, #tpu.memory_space<vmem>>, vector<1x1024xf32>
    %c1022_i32 = arith.constant 1022 : i32
    %107 = tpu.dynamic_rotate %79 by %c1022_i32 dim 1 : vector<8x1024xf32>, i32 -> vector<8x1024xf32>
    %108 = vector.broadcast %106 : vector<1x1024xf32> to vector<8x1024xf32>
    %109 = arith.mulf %107, %108 : vector<8x1024xf32>
    %110 = arith.truncf %109 : vector<8x1024xf32> to vector<8x1024xbf16>
    %c40_57 = arith.constant 40 : index
    %c0_58 = arith.constant 0 : index
    %111 = vector.load %arg14[%c40_57, %c0_58] : memref<72x1024xbf16, #tpu.memory_space<vmem>>, vector<8x1024xbf16>
    tpu.vector_store %arg14[%c40_57, %c0_58], %110 {strides = array<i32>} : memref<72x1024xbf16, #tpu.memory_space<vmem>>, vector<8x1024xbf16>,
    %c13 = arith.constant 13 : index
    %c0_59 = arith.constant 0 : index
    %112 = vector.load %arg2[%c13, %c0_59] : memref<16x1024xf32, #tpu.memory_space<vmem>>, vector<1x1024xf32>
    %c962_i32 = arith.constant 962 : i32
    %113 = tpu.dynamic_rotate %79 by %c962_i32 dim 1 : vector<8x1024xf32>, i32 -> vector<8x1024xf32>
    %114 = vector.broadcast %112 : vector<1x1024xf32> to vector<8x1024xf32>
    %115 = arith.mulf %113, %114 : vector<8x1024xf32>
    %116 = arith.truncf %115 : vector<8x1024xf32> to vector<8x1024xbf16>
    %c48_60 = arith.constant 48 : index
    %c0_61 = arith.constant 0 : index
    %117 = vector.load %arg14[%c48_60, %c0_61] : memref<72x1024xbf16, #tpu.memory_space<vmem>>, vector<8x1024xbf16>
    tpu.vector_store %arg14[%c48_60, %c0_61], %116 {strides = array<i32>} : memref<72x1024xbf16, #tpu.memory_space<vmem>>, vector<8x1024xbf16>,
    %c14 = arith.constant 14 : index
    %c0_62 = arith.constant 0 : index
    %118 = vector.load %arg2[%c14, %c0_62] : memref<16x1024xf32, #tpu.memory_space<vmem>>, vector<1x1024xf32>
    %c960_i32 = arith.constant 960 : i32
    %119 = tpu.dynamic_rotate %79 by %c960_i32 dim 1 : vector<8x1024xf32>, i32 -> vector<8x1024xf32>
    %120 = vector.broadcast %118 : vector<1x1024xf32> to vector<8x1024xf32>
    %121 = arith.mulf %119, %120 : vector<8x1024xf32>
    %122 = arith.truncf %121 : vector<8x1024xf32> to vector<8x1024xbf16>
    %c56_63 = arith.constant 56 : index
    %c0_64 = arith.constant 0 : index
    %123 = vector.load %arg14[%c56_63, %c0_64] : memref<72x1024xbf16, #tpu.memory_space<vmem>>, vector<8x1024xbf16>
    tpu.vector_store %arg14[%c56_63, %c0_64], %122 {strides = array<i32>} : memref<72x1024xbf16, #tpu.memory_space<vmem>>, vector<8x1024xbf16>,
    %c15 = arith.constant 15 : index
    %c0_65 = arith.constant 0 : index
    %124 = vector.load %arg2[%c15, %c0_65] : memref<16x1024xf32, #tpu.memory_space<vmem>>, vector<1x1024xf32>
    %c958_i32 = arith.constant 958 : i32
    %125 = tpu.dynamic_rotate %79 by %c958_i32 dim 1 : vector<8x1024xf32>, i32 -> vector<8x1024xf32>
    %126 = vector.broadcast %124 : vector<1x1024xf32> to vector<8x1024xf32>
    %127 = arith.mulf %125, %126 : vector<8x1024xf32>
    %128 = arith.truncf %127 : vector<8x1024xf32> to vector<8x1024xbf16>
    %c64_66 = arith.constant 64 : index
    %c0_67 = arith.constant 0 : index
    %129 = vector.load %arg14[%c64_66, %c0_67] : memref<72x1024xbf16, #tpu.memory_space<vmem>>, vector<8x1024xbf16>
    tpu.vector_store %arg14[%c64_66, %c0_67], %128 {strides = array<i32>} : memref<72x1024xbf16, #tpu.memory_space<vmem>>, vector<8x1024xbf16>,
    %c0_68 = arith.constant 0 : index
    %c0_69 = arith.constant 0 : index
    %130 = vector.load %arg8[%c0_68, %c0_69] : memref<8x72xbf16, #tpu.memory_space<vmem>>, vector<8x72xbf16>
    %c0_70 = arith.constant 0 : index
    %c0_71 = arith.constant 0 : index
    %131 = vector.load %arg14[%c0_70, %c0_71] : memref<72x1024xbf16, #tpu.memory_space<vmem>>, vector<72x1024xbf16>
    %cst_72 = arith.constant dense<0.000000e+00> : vector<8x1024xf32>
    %132 = tpu.matmul %130, %131, %cst_72 {dimension_numbers = #tpu.dot_dimension_numbers<[1], [0], [0], [1], [0, 0, 1, 1], [], []>} : vector<8x72xbf16>, vector<72x1024xbf16>, vector<8x1024xf32> -> vector<8x1024xf32>
    %c0_73 = arith.constant 0 : index
    %c0_74 = arith.constant 0 : index
    %133 = vector.load %arg9[%c0_73, %c0_74] : memref<8x1xf32, #tpu.memory_space<vmem>>, vector<8x1xf32>
    %134 = vector.broadcast %133 : vector<8x1xf32> to vector<8x1024xf32>
    %135 = arith.addf %132, %134 : vector<8x1024xf32>
    %cst_75 = arith.constant 0.000000e+00 : f32
    %136 = vector.broadcast %cst_75 : f32 to vector<8x1024xf32>
    %137 = arith.cmpf ogt, %135, %136 : vector<8x1024xf32>
    %cst_76 = arith.constant 0.00999999977 : f32
    %138 = vector.broadcast %cst_76 : f32 to vector<8x1024xf32>
    %139 = arith.mulf %138, %135 : vector<8x1024xf32>
    %140 = arith.select %137, %135, %139 : vector<8x1024xi1>, vector<8x1024xf32>
    %c0_77 = arith.constant 0 : index
    %c0_78 = arith.constant 0 : index
    %141 = vector.load %arg10[%c0_77, %c0_78] : memref<8x1xf32, #tpu.memory_space<vmem>>, vector<8x1xf32>
    %142 = vector.broadcast %141 : vector<8x1xf32> to vector<8x1024xf32>
    %143 = arith.addf %140, %142 : vector<8x1024xf32>
    %c0_79 = arith.constant 0 : index
    %c8_80 = arith.constant 8 : index
    %c0_81 = arith.constant 0 : index
    %144 = vector.load %arg13[%c0_79, %c8_80, %c0_81] : memref<1x28x1024xf32, #tpu.memory_space<vmem>>, vector<1x8x1024xf32>
    %145 = vector.shape_cast %144 : vector<1x8x1024xf32> to vector<8x1024xf32>
    %146 = vector.shape_cast %143 : vector<8x1024xf32> to vector<1x8x1024xf32>
    tpu.vector_store %arg13[%c0_79, %c8_80, %c0_81], %146 {strides = array<i32>} : memref<1x28x1024xf32, #tpu.memory_space<vmem>>, vector<1x8x1024xf32>,
    %c0_82 = arith.constant 0 : index
    %c16_83 = arith.constant 16 : index
    %c0_84 = arith.constant 0 : index
    %147 = vector.load %arg13[%c0_82, %c16_83, %c0_84] : memref<1x28x1024xf32, #tpu.memory_space<vmem>>, vector<1x4x1024xf32>
    %148 = vector.shape_cast %147 : vector<1x4x1024xf32> to vector<4x1024xf32>
    %149 = vector.shape_cast %1 : vector<4x1024xf32> to vector<1x4x1024xf32>
    tpu.vector_store %arg13[%c0_82, %c16_83, %c0_84], %149 {strides = array<i32>} : memref<1x28x1024xf32, #tpu.memory_space<vmem>>, vector<1x4x1024xf32>,
    %c0_85 = arith.constant 0 : index
    %c0_86 = arith.constant 0 : index
    %c0_87 = arith.constant 0 : index
    %150 = vector.load %arg11[%c0_85, %c0_86, %c0_87] : memref<1x4x1024xf32, #tpu.memory_space<vmem>>, vector<1x4x1024xf32>
    %151 = vector.shape_cast %150 : vector<1x4x1024xf32> to vector<4x1024xf32>
    %c0_88 = arith.constant 0 : index
    %c20 = arith.constant 20 : index
    %c0_89 = arith.constant 0 : index
    %152 = vector.load %arg13[%c0_88, %c20, %c0_89] : memref<1x28x1024xf32, #tpu.memory_space<vmem>>, vector<1x4x1024xf32>
    %153 = vector.shape_cast %152 : vector<1x4x1024xf32> to vector<4x1024xf32>
    %154 = vector.shape_cast %151 : vector<4x1024xf32> to vector<1x4x1024xf32>
    tpu.vector_store %arg13[%c0_88, %c20, %c0_89], %154 {strides = array<i32>} : memref<1x28x1024xf32, #tpu.memory_space<vmem>>, vector<1x4x1024xf32>,
    %c0_90 = arith.constant 0 : index
    %c0_91 = arith.constant 0 : index
    %c0_92 = arith.constant 0 : index
    %155 = vector.load %arg12[%c0_90, %c0_91, %c0_92] : memref<1x4x1024xf32, #tpu.memory_space<vmem>>, vector<1x4x1024xf32>
    %156 = vector.shape_cast %155 : vector<1x4x1024xf32> to vector<4x1024xf32>
    %c0_93 = arith.constant 0 : index
    %c24_94 = arith.constant 24 : index
    %c0_95 = arith.constant 0 : index
    %157 = vector.load %arg13[%c0_93, %c24_94, %c0_95] : memref<1x28x1024xf32, #tpu.memory_space<vmem>>, vector<1x4x1024xf32>
    %158 = vector.shape_cast %157 : vector<1x4x1024xf32> to vector<4x1024xf32>
    %159 = vector.shape_cast %156 : vector<4x1024xf32> to vector<1x4x1024xf32>
    tpu.vector_store %arg13[%c0_93, %c24_94, %c0_95], %159 {strides = array<i32>} : memref<1x28x1024xf32, #tpu.memory_space<vmem>>, vector<1x4x1024xf32>,
    return
  }
  func.func @transform_0(%arg0: i32) -> (i32, i32, i32) {
    %c0_i32 = arith.constant 0 : i32
    %c0_i32_0 = arith.constant 0 : i32
    %c0_i32_1 = arith.constant 0 : i32
    return %arg0, %c0_i32, %c0_i32_0 : i32, i32, i32
  }
  func.func @transform_1(%arg0: i32) -> (i32, i32) {
    %c0_i32 = arith.constant 0 : i32
    %c0_i32_0 = arith.constant 0 : i32
    %c0_i32_1 = arith.constant 0 : i32
    return %c0_i32, %c0_i32_0 : i32, i32
  }
  func.func @transform_2(%arg0: i32) -> (i32, i32) {
    %c0_i32 = arith.constant 0 : i32
    %c0_i32_0 = arith.constant 0 : i32
    %c0_i32_1 = arith.constant 0 : i32
    return %c0_i32, %c0_i32_0 : i32, i32
  }
  func.func @transform_3(%arg0: i32) -> (i32, i32) {
    %c0_i32 = arith.constant 0 : i32
    %c0_i32_0 = arith.constant 0 : i32
    %c0_i32_1 = arith.constant 0 : i32
    return %c0_i32, %c0_i32_0 : i32, i32
  }
  func.func @transform_4(%arg0: i32) -> (i32, i32) {
    %c0_i32 = arith.constant 0 : i32
    %c0_i32_0 = arith.constant 0 : i32
    %c0_i32_1 = arith.constant 0 : i32
    return %c0_i32, %c0_i32_0 : i32, i32
  }
  func.func @transform_5(%arg0: i32) -> (i32, i32) {
    %c0_i32 = arith.constant 0 : i32
    %c0_i32_0 = arith.constant 0 : i32
    %c0_i32_1 = arith.constant 0 : i32
    return %c0_i32, %c0_i32_0 : i32, i32
  }
  func.func @transform_6(%arg0: i32) -> (i32, i32) {
    %c0_i32 = arith.constant 0 : i32
    %c0_i32_0 = arith.constant 0 : i32
    %c0_i32_1 = arith.constant 0 : i32
    return %c0_i32, %c0_i32_0 : i32, i32
  }
  func.func @transform_7(%arg0: i32) -> (i32, i32) {
    %c0_i32 = arith.constant 0 : i32
    %c0_i32_0 = arith.constant 0 : i32
    %c0_i32_1 = arith.constant 0 : i32
    return %c0_i32, %c0_i32_0 : i32, i32
  }
  func.func @transform_8(%arg0: i32) -> (i32, i32) {
    %c0_i32 = arith.constant 0 : i32
    %c0_i32_0 = arith.constant 0 : i32
    %c0_i32_1 = arith.constant 0 : i32
    return %c0_i32, %c0_i32_0 : i32, i32
  }
  func.func @transform_9(%arg0: i32) -> (i32, i32) {
    %c0_i32 = arith.constant 0 : i32
    %c0_i32_0 = arith.constant 0 : i32
    %c0_i32_1 = arith.constant 0 : i32
    return %c0_i32, %c0_i32_0 : i32, i32
  }
  func.func @transform_10(%arg0: i32) -> (i32, i32, i32) {
    %c0_i32 = arith.constant 0 : i32
    %c0_i32_0 = arith.constant 0 : i32
    %c0_i32_1 = arith.constant 0 : i32
    return %arg0, %c0_i32, %c0_i32_0 : i32, i32, i32
  }
  func.func @transform_11(%arg0: i32) -> (i32, i32, i32) {
    %c0_i32 = arith.constant 0 : i32
    %c0_i32_0 = arith.constant 0 : i32
    %c0_i32_1 = arith.constant 0 : i32
    return %arg0, %c0_i32, %c0_i32_0 : i32, i32, i32
  }
  func.func @transform_12(%arg0: i32) -> (i32, i32, i32) {
    %c0_i32 = arith.constant 0 : i32
    %c0_i32_0 = arith.constant 0 : i32
    %c0_i32_1 = arith.constant 0 : i32
    return %arg0, %c0_i32, %c0_i32_0 : i32, i32, i32
  }
}

</mosaic_0001>

<llo_original>
// kernel: decoder_block_forward.1
$region0: #{decoder_block_forward.1}
  #allocation0 [shape = 'u32[]', space=smem, size = 0x4, offset = 0x4, fixed_abs, tag = 'smem constant byte address 0x4 - core index']
  #allocation1 [shape = 'u32[144,128]{1,0:T(1,128)}', space=vmem, size = 0x12000, scoped, tag = 'internal scratch']
  #allocation2 [shape = 'bf16[72,1024]{1,0:T(8,128)(2,1)}', space=vmem, size = 0x24000, scoped, tag = 'scratch operand']
  %s0 = inlined_call_operand.vmem [shape: f32[2,4,1024], index: 0, kind: input, shape index: {}]
  %s1 = inlined_call_operand.vmem [shape: f32[16,1024], index: 1, kind: input, shape index: {}]
  %s2 = inlined_call_operand.vmem [shape: bf16[8,4], index: 2, kind: input, shape index: {}]
  %s3 = inlined_call_operand.vmem [shape: f32[8,1], index: 3, kind: input, shape index: {}]
  %s4 = inlined_call_operand.vmem [shape: bf16[8,72], index: 4, kind: input, shape index: {}]
  %s5 = inlined_call_operand.vmem [shape: f32[8,1], index: 5, kind: input, shape index: {}]
  %s6 = inlined_call_operand.vmem [shape: f32[8,1], index: 6, kind: input, shape index: {}]
  %s7 = inlined_call_operand.vmem [shape: bf16[8,72], index: 7, kind: input, shape index: {}]
  %s8 = inlined_call_operand.vmem [shape: f32[8,1], index: 8, kind: input, shape index: {}]
  %s9 = inlined_call_operand.vmem [shape: f32[8,1], index: 9, kind: input, shape index: {}]
  %s10 = inlined_call_operand.vmem [shape: f32[2,4,1024], index: 10, kind: input, shape index: {}]
  %s11 = inlined_call_operand.vmem [shape: f32[2,4,1024], index: 11, kind: input, shape index: {}]
  %s12 = inlined_call_operand.vmem [shape: f32[2,28,1024], index: 12, kind: output, shape index: {}]
  %s13 = sld [smem:[#allocation0]]
  $region81: #{decoder_block_forward.1} parent=0
    _
  %s15 = ssub.s32 1, %s13
  %s16 = scalar_select 0, %s15, %s13
  loop: start=0, step=1, limit=4
  $region2: #{decoder_block_forward.1} parent=0 // loop_pre_header
    _
  $region3: #{decoder_block_forward.1} parent=0 // loop_header
    %s18 = sphi 0, %s22
    %p19 = scmp.ge.s32.totalorder %s18, 4
    %s28 = sphi 0, %s30
    %s31 = sphi 0, %s28
    %s32 = sphi 0, %s31
    %s48 = sphi 0, %s32
    %s52 = sphi 0, %s52
    %s54 = sphi 0, %s52
    %s55 = sphi 0, %s54
    %s69 = sphi 0, %s55
    %s73 = sphi 0, %s73
    %s75 = sphi 0, %s73
    %s76 = sphi 0, %s75
    %s90 = sphi 0, %s76
    %s94 = sphi 0, %s94
    %s96 = sphi 0, %s94
    %s97 = sphi 0, %s96
    %s111 = sphi 0, %s97
    %s115 = sphi 0, %s115
    %s117 = sphi 0, %s115
    %s118 = sphi 0, %s117
    %s132 = sphi 0, %s118
    %s136 = sphi 0, %s136
    %s138 = sphi 0, %s136
    %s139 = sphi 0, %s138
    %s153 = sphi 0, %s139
    %s157 = sphi 0, %s157
    %s159 = sphi 0, %s157
    %s160 = sphi 0, %s159
    %s174 = sphi 0, %s160
    %s178 = sphi 0, %s178
    %s180 = sphi 0, %s178
    %s181 = sphi 0, %s180
    %s195 = sphi 0, %s181
    %s199 = sphi 0, %s199
    %s201 = sphi 0, %s199
    %s202 = sphi 0, %s201
    %s216 = sphi 0, %s202
    %s220 = sphi 0, %s220
    %s222 = sphi 0, %s220
    %s223 = sphi 0, %s222
    %s237 = sphi 0, %s223
    %s243 = sphi 0, %s245
    %s246 = sphi 0, %s243
    %s247 = sphi 0, %s246
    %s263 = sphi 0, %s247
    %s269 = sphi 0, %s271
    %s272 = sphi 0, %s269
    %s273 = sphi 0, %s272
    %s289 = sphi 0, %s273
    %s295 = sphi 0, %s297
    %s298 = sphi 0, %s295
    %s299 = sphi 0, %s298
    %s315 = sphi 0, %s299
  $region4: #{decoder_block_forward.1} parent=0 // loop_header_branch
    %21 = sbr.rel (%p19) target = $region8
  $region5: #{decoder_block_forward.1} parent=0 // loop_body
    %s23 = ssub.s32 %s18, 1
    %s24 = ssub.s32 %s18, 2
    %s25 = sadd.s32 %s18, 1
    %s26 = ssub.s32 %s18, %s25
    %p27 = scmp.eq.s32.totalorder %s26, 0
    %s29 = sadd.s32 %s28, 1
    %s30 = scalar_select %p27, %s28, %s29
    %p33 = pneg %p27
    %p34 = scmp.eq.s32.totalorder %s18, 1
    %p35 = por %p33, %p34
    %p36 = scmp.ne.s32.totalorder %s28, %s31
    %p37 = scmp.eq.s32.totalorder %s18, 0
    %p38 = por %p36, %p37
    %p39 = scmp.ne.s32.totalorder %s28, %s31
    %p40 = scmp.eq.s32.totalorder %s23, 1
    %p41 = por %p39, %p40
    %p42 = scmp.ne.s32.totalorder %s31, %s32
    %p43 = scmp.eq.s32.totalorder %s23, 0
    %p44 = por %p42, %p43
    %p45 = scmp.ne.s32.totalorder %s31, %s32
    %p46 = scmp.eq.s32.totalorder %s24, 1
    %p47 = por %p45, %p46
    %p49 = scmp.ne.s32.totalorder %s32, %s48
    %p50 = scmp.eq.s32.totalorder %s24, 0
    %p51 = por %p49, %p50
    %s53 = sadd.s32 %s52, 1
    %p56 = scmp.eq.s32.totalorder %s18, 1
    %p57 = scmp.ne.s32.totalorder %s52, %s54
    %p58 = scmp.eq.s32.totalorder %s18, 0
    %p59 = por %p57, %p58
    %p60 = scmp.ne.s32.totalorder %s52, %s54
    %p61 = scmp.eq.s32.totalorder %s23, 1
    %p62 = por %p60, %p61
    %p63 = scmp.ne.s32.totalorder %s54, %s55
    %p64 = scmp.eq.s32.totalorder %s23, 0
    %p65 = por %p63, %p64
    %p66 = scmp.ne.s32.totalorder %s54, %s55
    %p67 = scmp.eq.s32.totalorder %s24, 1
    %p68 = por %p66, %p67
    %p70 = scmp.ne.s32.totalorder %s55, %s69
    %p71 = scmp.eq.s32.totalorder %s24, 0
    %p72 = por %p70, %p71
    %s74 = sadd.s32 %s73, 1
    %p77 = scmp.eq.s32.totalorder %s18, 1
    %p78 = scmp.ne.s32.totalorder %s73, %s75
    %p79 = scmp.eq.s32.totalorder %s18, 0
    %p80 = por %p78, %p79
    %p81 = scmp.ne.s32.totalorder %s73, %s75
    %p82 = scmp.eq.s32.totalorder %s23, 1
    %p83 = por %p81, %p82
    %p84 = scmp.ne.s32.totalorder %s75, %s76
    %p85 = scmp.eq.s32.totalorder %s23, 0
    %p86 = por %p84, %p85
    %p87 = scmp.ne.s32.totalorder %s75, %s76
    %p88 = scmp.eq.s32.totalorder %s24, 1
    %p89 = por %p87, %p88
    %p91 = scmp.ne.s32.totalorder %s76, %s90
    %p92 = scmp.eq.s32.totalorder %s24, 0
    %p93 = por %p91, %p92
    %s95 = sadd.s32 %s94, 1
    %p98 = scmp.eq.s32.totalorder %s18, 1
    %p99 = scmp.ne.s32.totalorder %s94, %s96
    %p100 = scmp.eq.s32.totalorder %s18, 0
    %p101 = por %p99, %p100
    %p102 = scmp.ne.s32.totalorder %s94, %s96
    %p103 = scmp.eq.s32.totalorder %s23, 1
    %p104 = por %p102, %p103
    %p105 = scmp.ne.s32.totalorder %s96, %s97
    %p106 = scmp.eq.s32.totalorder %s23, 0
    %p107 = por %p105, %p106
    %p108 = scmp.ne.s32.totalorder %s96, %s97
    %p109 = scmp.eq.s32.totalorder %s24, 1
    %p110 = por %p108, %p109
    %p112 = scmp.ne.s32.totalorder %s97, %s111
    %p113 = scmp.eq.s32.totalorder %s24, 0
    %p114 = por %p112, %p113
    %s116 = sadd.s32 %s115, 1
    %p119 = scmp.eq.s32.totalorder %s18, 1
    %p120 = scmp.ne.s32.totalorder %s115, %s117
    %p121 = scmp.eq.s32.totalorder %s18, 0
    %p122 = por %p120, %p121
    %p123 = scmp.ne.s32.totalorder %s115, %s117
    %p124 = scmp.eq.s32.totalorder %s23, 1
    %p125 = por %p123, %p124
    %p126 = scmp.ne.s32.totalorder %s117, %s118
    %p127 = scmp.eq.s32.totalorder %s23, 0
    %p128 = por %p126, %p127
    %p129 = scmp.ne.s32.totalorder %s117, %s118
    %p130 = scmp.eq.s32.totalorder %s24, 1
    %p131 = por %p129, %p130
    %p133 = scmp.ne.s32.totalorder %s118, %s132
    %p134 = scmp.eq.s32.totalorder %s24, 0
    %p135 = por %p133, %p134
    %s137 = sadd.s32 %s136, 1
    %p140 = scmp.eq.s32.totalorder %s18, 1
    %p141 = scmp.ne.s32.totalorder %s136, %s138
    %p142 = scmp.eq.s32.totalorder %s18, 0
    %p143 = por %p141, %p142
    %p144 = scmp.ne.s32.totalorder %s136, %s138
    %p145 = scmp.eq.s32.totalorder %s23, 1
    %p146 = por %p144, %p145
    %p147 = scmp.ne.s32.totalorder %s138, %s139
    %p148 = scmp.eq.s32.totalorder %s23, 0
    %p149 = por %p147, %p148
    %p150 = scmp.ne.s32.totalorder %s138, %s139
    %p151 = scmp.eq.s32.totalorder %s24, 1
    %p152 = por %p150, %p151
    %p154 = scmp.ne.s32.totalorder %s139, %s153
    %p155 = scmp.eq.s32.totalorder %s24, 0
    %p156 = por %p154, %p155
    %s158 = sadd.s32 %s157, 1
    %p161 = scmp.eq.s32.totalorder %s18, 1
    %p162 = scmp.ne.s32.totalorder %s157, %s159
    %p163 = scmp.eq.s32.totalorder %s18, 0
    %p164 = por %p162, %p163
    %p165 = scmp.ne.s32.totalorder %s157, %s159
    %p166 = scmp.eq.s32.totalorder %s23, 1
    %p167 = por %p165, %p166
    %p168 = scmp.ne.s32.totalorder %s159, %s160
    %p169 = scmp.eq.s32.totalorder %s23, 0
    %p170 = por %p168, %p169
    %p171 = scmp.ne.s32.totalorder %s159, %s160
    %p172 = scmp.eq.s32.totalorder %s24, 1
    %p173 = por %p171, %p172
    %p175 = scmp.ne.s32.totalorder %s160, %s174
    %p176 = scmp.eq.s32.totalorder %s24, 0
    %p177 = por %p175, %p176
    %s179 = sadd.s32 %s178, 1
    %p182 = scmp.eq.s32.totalorder %s18, 1
    %p183 = scmp.ne.s32.totalorder %s178, %s180
    %p184 = scmp.eq.s32.totalorder %s18, 0
    %p185 = por %p183, %p184
    %p186 = scmp.ne.s32.totalorder %s178, %s180
    %p187 = scmp.eq.s32.totalorder %s23, 1
    %p188 = por %p186, %p187
    %p189 = scmp.ne.s32.totalorder %s180, %s181
    %p190 = scmp.eq.s32.totalorder %s23, 0
    %p191 = por %p189, %p190
    %p192 = scmp.ne.s32.totalorder %s180, %s181
    %p193 = scmp.eq.s32.totalorder %s24, 1
    %p194 = por %p192, %p193
    %p196 = scmp.ne.s32.totalorder %s181, %s195
    %p197 = scmp.eq.s32.totalorder %s24, 0
    %p198 = por %p196, %p197
    %s200 = sadd.s32 %s199, 1
    %p203 = scmp.eq.s32.totalorder %s18, 1
    %p204 = scmp.ne.s32.totalorder %s199, %s201
    %p205 = scmp.eq.s32.totalorder %s18, 0
    %p206 = por %p204, %p205
    %p207 = scmp.ne.s32.totalorder %s199, %s201
    %p208 = scmp.eq.s32.totalorder %s23, 1
    %p209 = por %p207, %p208
    %p210 = scmp.ne.s32.totalorder %s201, %s202
    %p211 = scmp.eq.s32.totalorder %s23, 0
    %p212 = por %p210, %p211
    %p213 = scmp.ne.s32.totalorder %s201, %s202
    %p214 = scmp.eq.s32.totalorder %s24, 1
    %p215 = por %p213, %p214
    %p217 = scmp.ne.s32.totalorder %s202, %s216
    %p218 = scmp.eq.s32.totalorder %s24, 0
    %p219 = por %p217, %p218
    %s221 = sadd.s32 %s220, 1
    %p224 = scmp.eq.s32.totalorder %s18, 1
    %p225 = scmp.ne.s32.totalorder %s220, %s222
    %p226 = scmp.eq.s32.totalorder %s18, 0
    %p227 = por %p225, %p226
    %p228 = scmp.ne.s32.totalorder %s220, %s222
    %p229 = scmp.eq.s32.totalorder %s23, 1
    %p230 = por %p228, %p229
    %p231 = scmp.ne.s32.totalorder %s222, %s223
    %p232 = scmp.eq.s32.totalorder %s23, 0
    %p233 = por %p231, %p232
    %p234 = scmp.ne.s32.totalorder %s222, %s223
    %p235 = scmp.eq.s32.totalorder %s24, 1
    %p236 = por %p234, %p235
    %p238 = scmp.ne.s32.totalorder %s223, %s237
    %p239 = scmp.eq.s32.totalorder %s24, 0
    %p240 = por %p238, %p239
    %s241 = ssub.s32 %s18, %s25
    %p242 = scmp.eq.s32.totalorder %s241, 0
    %s244 = sadd.s32 %s243, 1
    %s245 = scalar_select %p242, %s243, %s244
    %p248 = pneg %p242
    %p249 = scmp.eq.s32.totalorder %s18, 1
    %p250 = por %p248, %p249
    %p251 = scmp.ne.s32.totalorder %s243, %s246
    %p252 = scmp.eq.s32.totalorder %s18, 0
    %p253 = por %p251, %p252
    %p254 = scmp.ne.s32.totalorder %s243, %s246
    %p255 = scmp.eq.s32.totalorder %s23, 1
    %p256 = por %p254, %p255
    %p257 = scmp.ne.s32.totalorder %s246, %s247
    %p258 = scmp.eq.s32.totalorder %s23, 0
    %p259 = por %p257, %p258
    %p260 = scmp.ne.s32.totalorder %s246, %s247
    %p261 = scmp.eq.s32.totalorder %s24, 1
    %p262 = por %p260, %p261
    %p264 = scmp.ne.s32.totalorder %s247, %s263
    %p265 = scmp.eq.s32.totalorder %s24, 0
    %p266 = por %p264, %p265
    %s267 = ssub.s32 %s18, %s25
    %p268 = scmp.eq.s32.totalorder %s267, 0
    %s270 = sadd.s32 %s269, 1
    %s271 = scalar_select %p268, %s269, %s270
    %p274 = pneg %p268
    %p275 = scmp.eq.s32.totalorder %s18, 1
    %p276 = por %p274, %p275
    %p277 = scmp.ne.s32.totalorder %s269, %s272
    %p278 = scmp.eq.s32.totalorder %s18, 0
    %p279 = por %p277, %p278
    %p280 = scmp.ne.s32.totalorder %s269, %s272
    %p281 = scmp.eq.s32.totalorder %s23, 1
    %p282 = por %p280, %p281
    %p283 = scmp.ne.s32.totalorder %s272, %s273
    %p284 = scmp.eq.s32.totalorder %s23, 0
    %p285 = por %p283, %p284
    %p286 = scmp.ne.s32.totalorder %s272, %s273
    %p287 = scmp.eq.s32.totalorder %s24, 1
    %p288 = por %p286, %p287
    %p290 = scmp.ne.s32.totalorder %s273, %s289
    %p291 = scmp.eq.s32.totalorder %s24, 0
    %p292 = por %p290, %p291
    %s293 = ssub.s32 %s18, %s25
    %p294 = scmp.eq.s32.totalorder %s293, 0
    %s296 = sadd.s32 %s295, 1
    %s297 = scalar_select %p294, %s295, %s296
    %p300 = pneg %p294
    %p301 = scmp.eq.s32.totalorder %s18, 1
    %p302 = por %p300, %p301
    %p303 = scmp.ne.s32.totalorder %s295, %s298
    %p304 = scmp.eq.s32.totalorder %s18, 0
    %p305 = por %p303, %p304
    %p306 = scmp.ne.s32.totalorder %s295, %s298
    %p307 = scmp.eq.s32.totalorder %s23, 1
    %p308 = por %p306, %p307
    %p309 = scmp.ne.s32.totalorder %s298, %s299
    %p310 = scmp.eq.s32.totalorder %s23, 0
    %p311 = por %p309, %p310
    %p312 = scmp.ne.s32.totalorder %s298, %s299
    %p313 = scmp.eq.s32.totalorder %s24, 1
    %p314 = por %p312, %p313
    %p316 = scmp.ne.s32.totalorder %s299, %s315
    %p317 = scmp.eq.s32.totalorder %s24, 0
    %p318 = por %p316, %p317
    %p319 = scmp.le.s32.totalorder 1, %s18
    %p320 = scmp.lt.s32.totalorder %s18, 3
    %p321 = pnand %p319, %p320
    %p322 = pneg %p321
    // Predicated region
    $region9: #{decoder_block_forward.1} parent=5 // pred_check
      _
    $region10: #{decoder_block_forward.1} parent=5 // pred_check_branch
      %324 = sbr.rel (%p321) target = $region12
    $region11: #{decoder_block_forward.1} parent=5 // pred_region
      %s325 = ssub.s32 %s18, 1
      // Predicated region
      $region13: #{decoder_block_forward.1} parent=11 // pred_check
        %p326 = pneg %p65
      $region14: #{decoder_block_forward.1} parent=11 // pred_check_branch
        %328 = sbr.rel (%p326) target = $region16
      $region15: #{decoder_block_forward.1} parent=11 // pred_region
        _
      $region16: #{decoder_block_forward.1} parent=11 // pred_fallthru
        _
      // Predicated region
      $region17: #{decoder_block_forward.1} parent=11 // pred_check
        %p329 = pneg %p86
      $region18: #{decoder_block_forward.1} parent=11 // pred_check_branch
        %331 = sbr.rel (%p329) target = $region20
      $region19: #{decoder_block_forward.1} parent=11 // pred_region
        _
      $region20: #{decoder_block_forward.1} parent=11 // pred_fallthru
        _
      // Predicated region
      $region21: #{decoder_block_forward.1} parent=11 // pred_check
        %p332 = pneg %p107
      $region22: #{decoder_block_forward.1} parent=11 // pred_check_branch
        %334 = sbr.rel (%p332) target = $region24
      $region23: #{decoder_block_forward.1} parent=11 // pred_region
        _
      $region24: #{decoder_block_forward.1} parent=11 // pred_fallthru
        _
      // Predicated region
      $region25: #{decoder_block_forward.1} parent=11 // pred_check
        %p335 = pneg %p128
      $region26: #{decoder_block_forward.1} parent=11 // pred_check_branch
        %337 = sbr.rel (%p335) target = $region28
      $region27: #{decoder_block_forward.1} parent=11 // pred_region
        _
      $region28: #{decoder_block_forward.1} parent=11 // pred_fallthru
        _
      // Predicated region
      $region29: #{decoder_block_forward.1} parent=11 // pred_check
        %p338 = pneg %p149
      $region30: #{decoder_block_forward.1} parent=11 // pred_check_branch
        %340 = sbr.rel (%p338) target = $region32
      $region31: #{decoder_block_forward.1} parent=11 // pred_region
        _
      $region32: #{decoder_block_forward.1} parent=11 // pred_fallthru
        _
      // Predicated region
      $region33: #{decoder_block_forward.1} parent=11 // pred_check
        %p341 = pneg %p170
      $region34: #{decoder_block_forward.1} parent=11 // pred_check_branch
        %343 = sbr.rel (%p341) target = $region36
      $region35: #{decoder_block_forward.1} parent=11 // pred_region
        _
      $region36: #{decoder_block_forward.1} parent=11 // pred_fallthru
        _
      // Predicated region
      $region37: #{decoder_block_forward.1} parent=11 // pred_check
        %p344 = pneg %p191
      $region38: #{decoder_block_forward.1} parent=11 // pred_check_branch
        %346 = sbr.rel (%p344) target = $region40
      $region39: #{decoder_block_forward.1} parent=11 // pred_region
        _
      $region40: #{decoder_block_forward.1} parent=11 // pred_fallthru
        _
      // Predicated region
      $region41: #{decoder_block_forward.1} parent=11 // pred_check
        %p347 = pneg %p212
      $region42: #{decoder_block_forward.1} parent=11 // pred_check_branch
        %349 = sbr.rel (%p347) target = $region44
      $region43: #{decoder_block_forward.1} parent=11 // pred_region
        _
      $region44: #{decoder_block_forward.1} parent=11 // pred_fallthru
        _
      // Predicated region
      $region45: #{decoder_block_forward.1} parent=11 // pred_check
        %p350 = pneg %p233
      $region46: #{decoder_block_forward.1} parent=11 // pred_check_branch
        %352 = sbr.rel (%p350) target = $region48
      $region47: #{decoder_block_forward.1} parent=11 // pred_region
        _
      $region48: #{decoder_block_forward.1} parent=11 // pred_fallthru
        _
    $region12: #{decoder_block_forward.1} parent=5 // pred_fallthru
      _
    %p353 = scmp.lt.s32.totalorder %s18, 2
    // Predicated region
    $region49: #{decoder_block_forward.1} parent=5 // pred_check
      %p354 = pneg %p353
    $region50: #{decoder_block_forward.1} parent=5 // pred_check_branch
      %356 = sbr.rel (%p354) target = $region52
    $region51: #{decoder_block_forward.1} parent=5 // pred_region
      // Predicated region
      $region53: #{decoder_block_forward.1} parent=51 // pred_check
        %p357 = pneg %p38
      $region54: #{decoder_block_forward.1} parent=51 // pred_check_branch
        %359 = sbr.rel (%p357) target = $region56
      $region55: #{decoder_block_forward.1} parent=51 // pred_region
        %p360 = scmp.lt.s32.totalorder %s18, 1
        %s361 = scalar_select %p360, %s18, 1
        %s362 = smul.addr %s361, 8
        %s363 = smul.addr %s362, 4
        %s364 = scalar_lea.vmem %s0, %s363
      $region56: #{decoder_block_forward.1} parent=51 // pred_fallthru
        _
      // Predicated region
      $region57: #{decoder_block_forward.1} parent=51 // pred_check
        %p365 = pneg %p253
      $region58: #{decoder_block_forward.1} parent=51 // pred_check_branch
        %367 = sbr.rel (%p365) target = $region60
      $region59: #{decoder_block_forward.1} parent=51 // pred_region
        %p368 = scmp.lt.s32.totalorder %s18, 1
        %s369 = scalar_select %p368, %s18, 1
        %s370 = smul.addr %s369, 8
        %s371 = smul.addr %s370, 4
        %s372 = scalar_lea.vmem %s10, %s371
      $region60: #{decoder_block_forward.1} parent=51 // pred_fallthru
        _
      // Predicated region
      $region61: #{decoder_block_forward.1} parent=51 // pred_check
        %p373 = pneg %p279
      $region62: #{decoder_block_forward.1} parent=51 // pred_check_branch
        %375 = sbr.rel (%p373) target = $region64
      $region63: #{decoder_block_forward.1} parent=51 // pred_region
        %p376 = scmp.lt.s32.totalorder %s18, 1
        %s377 = scalar_select %p376, %s18, 1
        %s378 = smul.addr %s377, 8
        %s379 = smul.addr %s378, 4
        %s380 = scalar_lea.vmem %s11, %s379
      $region64: #{decoder_block_forward.1} parent=51 // pred_fallthru
        _
    $region52: #{decoder_block_forward.1} parent=5 // pred_fallthru
      _
    %p381 = scmp.le.s32.totalorder 1, %s18
    %p382 = scmp.lt.s32.totalorder %s18, 3
    %p383 = pnand %p381, %p382
    %p384 = pneg %p383
    // Predicated region
    $region65: #{decoder_block_forward.1} parent=5 // pred_check
      _
    $region66: #{decoder_block_forward.1} parent=5 // pred_check_branch
      %386 = sbr.rel (%p383) target = $region68
    $region67: #{decoder_block_forward.1} parent=5 // pred_region
      %s387 = ssub.s32 %s18, 1
      %p388 = scmp.lt.s32.totalorder %s23, 1
      %s389 = scalar_select %p388, %s23, 1
      %s390 = smul.addr %s389, 8
      %s391 = smul.addr %s390, 4
      %s392 = scalar_lea.vmem %s0, %s391
      %p393 = pneg %p44
      %p394 = pneg %p41
      %p395 = pneg %p65
      %p396 = pneg %p62
      %p397 = pneg %p86
      %p398 = pneg %p83
      %p399 = pneg %p107
      %p400 = pneg %p104
      %p401 = pneg %p128
      %p402 = pneg %p125
      %p403 = pneg %p149
      %p404 = pneg %p146
      %p405 = pneg %p170
      %p406 = pneg %p167
      %p407 = pneg %p191
      %p408 = pneg %p188
      %p409 = pneg %p212
      %p410 = pneg %p209
      %p411 = pneg %p233
      %p412 = pneg %p230
      %p413 = scmp.lt.s32.totalorder %s23, 1
      %s414 = scalar_select %p413, %s23, 1
      %s415 = smul.addr %s414, 8
      %s416 = smul.addr %s415, 4
      %s417 = scalar_lea.vmem %s10, %s416
      %p418 = pneg %p259
      %p419 = pneg %p256
      %p420 = scmp.lt.s32.totalorder %s23, 1
      %s421 = scalar_select %p420, %s23, 1
      %s422 = smul.addr %s421, 8
      %s423 = smul.addr %s422, 4
      %s424 = scalar_lea.vmem %s11, %s423
      %p425 = pneg %p285
      %p426 = pneg %p282
      %p427 = pneg %p311
      %p428 = pneg %p308
      %p429 = scmp.lt.s32.totalorder %s23, 1
      %s430 = scalar_select %p429, %s23, 1
      %s431 = smul.addr %s430, 32
      %s432 = smul.addr %s431, 8
      %s433 = scalar_lea.vmem %s12, %s432
      %p434 = scmp.lt.s32.totalorder %s23, 1
      %s435 = scalar_select %p434, %s23, 1
      %s436 = smul.addr %s435, 8
      %s437 = smul.addr %s436, 4
      %s438 = scalar_lea.vmem %s0, %s437
      %p439 = scmp.lt.s32.totalorder %s23, 1
      %s440 = scalar_select %p439, %s23, 1
      %s441 = smul.addr %s440, 8
      %s442 = smul.addr %s441, 4
      %s443 = scalar_lea.vmem %s10, %s442
      %p444 = scmp.lt.s32.totalorder %s23, 1
      %s445 = scalar_select %p444, %s23, 1
      %s446 = smul.addr %s445, 8
      %s447 = smul.addr %s446, 4
      %s448 = scalar_lea.vmem %s11, %s447
      %p449 = scmp.lt.s32.totalorder %s23, 1
      %s450 = scalar_select %p449, %s23, 1
      %s451 = smul.addr %s450, 32
      %s452 = smul.addr %s451, 8
      %s453 = scalar_lea.vmem %s12, %s452
      %v455 = vld [vmem:[%s438] sm:$0xff]
      %v456 = vld [vmem:[%s438 + $0x8] sm:$0xff]
      %v457 = vld [vmem:[%s438 + $0x10] sm:$0xff]
      %v458 = vld [vmem:[%s438 + $0x18] sm:$0xff]
      %v459 = vld [vmem:[%s2] sm:$0xf]
      %v464 = vcombine.high %v455, %v455
      %v465 = vcombine.high %v456, %v456
      %v466 = vcombine.high %v457, %v457
      %v467 = vcombine.high %v458, %v458
      %v472 = vpack.c.bf16 %v455, %v455
      %v473 = vpack.c.bf16 %v464, %v464
      %v474 = vpack.c.bf16 %v456, %v456
      %v475 = vpack.c.bf16 %v465, %v465
      %v476 = vpack.c.bf16 %v457, %v457
      %v477 = vpack.c.bf16 %v466, %v466
      %v478 = vpack.c.bf16 %v458, %v458
      %v479 = vpack.c.bf16 %v467, %v467
      %v480 = vld [vmem:[%s3] sm:$0xff]
      %482 = vset.pattern.permute.xlu0 0
      %483 = vperm.xlu0 %482, %v480
      %v484 = vpop.permute.xlu0 %483
      %vm486 = vcmask 31744
      %v488 = vsel %vm486, %v459, 0
      %vm490 = vcmask 1041408
      %v492 = vsel %vm490, %v472, 0
      %v495 = vsel %vm490, %v473, 0
      %v498 = vsel %vm490, %v474, 0
      %v501 = vsel %vm490, %v475, 0
      %v504 = vsel %vm490, %v476, 0
      %v507 = vsel %vm490, %v477, 0
      %v510 = vsel %vm490, %v478, 0
      %v513 = vsel %vm490, %v479, 0
      %515 = vmatprep.subr.bf16.mxu0 %v495
      %516 = vmatpush1.bf16.msra.mxu0 %v492
      %517 = vmatprep.subr.bf16.mxu0 0
      %518 = vmatpush1.bf16.msra.mxu0 0
      %519 = vmatprep.subr.bf16.mxu0 0
      %520 = vmatpush1.bf16.msra.mxu0 0
      %521 = vmatprep.subr.bf16.mxu0 0
      %522 = vmatpush1.bf16.msra.mxu0 0
      %523 = vmatprep.subr.bf16.mxu0 0
      %524 = vmatpush1.bf16.msra.mxu0 0
      %525 = vmatprep.subr.bf16.mxu0 0
      %526 = vmatpush1.bf16.msra.mxu0 0
      %527 = vmatprep.subr.bf16.mxu0 0
      %528 = vmatpush1.bf16.msra.mxu0 0
      %529 = vmatprep.subr.bf16.mxu0 0
      %530 = vmatpush1.bf16.msra.mxu0 0
      %531 = vmatprep.subr.bf16.mxu0 0
      %532 = vmatpush1.bf16.msra.mxu0 0
      %533 = vmatprep.subr.bf16.mxu0 0
      %534 = vmatpush1.bf16.msra.mxu0 0
      %535 = vmatprep.subr.bf16.mxu0 0
      %536 = vmatpush1.bf16.msra.mxu0 0
      %537 = vmatprep.subr.bf16.mxu0 0
      %538 = vmatpush1.bf16.msra.mxu0 0
      %539 = vmatprep.subr.bf16.mxu0 0
      %540 = vmatpush1.bf16.msra.mxu0 0
      %541 = vmatprep.subr.bf16.mxu0 0
      %542 = vmatpush1.bf16.msra.mxu0 0
      %543 = vmatprep.subr.bf16.mxu0 0
      %544 = vmatpush1.bf16.msra.mxu0 0
      %545 = vmatprep.subr.bf16.mxu0 0
      %546 = vmatpush1.bf16.msra.mxu0 0
      %547 = vmatprep.mubr.bf16.mxu0 0
      %548 = vmatmul.mubr.bf16.gmra.mrb[0].mxu0 %v488
      %v549 = vpop.f32.mrb[0].mxu0
      %v550 = vadd.f32 %v484, %v549
      %v551 = vpop.f32.mrb[0].mxu0
      %v552 = vadd.f32 %v484, %v551
      %v553 = vpop.f32.mrb[0].mxu0
      %v554 = vpop.f32.mrb[0].mxu0
      %555 = vdwg.mxu0
      %556 = vmatprep.subr.bf16.mxu0 %v501
      %557 = vmatpush1.bf16.msra.mxu0 %v498
      %558 = vmatprep.subr.bf16.mxu0 0
      %559 = vmatpush1.bf16.msra.mxu0 0
      %560 = vmatprep.subr.bf16.mxu0 0
      %561 = vmatpush1.bf16.msra.mxu0 0
      %562 = vmatprep.subr.bf16.mxu0 0
      %563 = vmatpush1.bf16.msra.mxu0 0
      %564 = vmatprep.subr.bf16.mxu0 0
      %565 = vmatpush1.bf16.msra.mxu0 0
      %566 = vmatprep.subr.bf16.mxu0 0
      %567 = vmatpush1.bf16.msra.mxu0 0
      %568 = vmatprep.subr.bf16.mxu0 0
      %569 = vmatpush1.bf16.msra.mxu0 0
      %570 = vmatprep.subr.bf16.mxu0 0
      %571 = vmatpush1.bf16.msra.mxu0 0
      %572 = vmatprep.subr.bf16.mxu0 0
      %573 = vmatpush1.bf16.msra.mxu0 0
      %574 = vmatprep.subr.bf16.mxu0 0
      %575 = vmatpush1.bf16.msra.mxu0 0
      %576 = vmatprep.subr.bf16.mxu0 0
      %577 = vmatpush1.bf16.msra.mxu0 0
      %578 = vmatprep.subr.bf16.mxu0 0
      %579 = vmatpush1.bf16.msra.mxu0 0
      %580 = vmatprep.subr.bf16.mxu0 0
      %581 = vmatpush1.bf16.msra.mxu0 0
      %582 = vmatprep.subr.bf16.mxu0 0
      %583 = vmatpush1.bf16.msra.mxu0 0
      %584 = vmatprep.subr.bf16.mxu0 0
      %585 = vmatpush1.bf16.msra.mxu0 0
      %586 = vmatprep.subr.bf16.mxu0 0
      %587 = vmatpush1.bf16.msra.mxu0 0
      %588 = vmatprep.mubr.bf16.mxu0 0
      %589 = vmatmul.mubr.bf16.gmra.mrb[0].mxu0 %v488
      %v590 = vpop.f32.mrb[0].mxu0
      %v591 = vadd.f32 %v484, %v590
      %v592 = vpop.f32.mrb[0].mxu0
      %v593 = vadd.f32 %v484, %v592
      %v594 = vpop.f32.mrb[0].mxu0
      %v595 = vpop.f32.mrb[0].mxu0
      %596 = vdwg.mxu0
      %597 = vmatprep.subr.bf16.mxu0 %v507
      %598 = vmatpush1.bf16.msra.mxu0 %v504
      %599 = vmatprep.subr.bf16.mxu0 0
      %600 = vmatpush1.bf16.msra.mxu0 0
      %601 = vmatprep.subr.bf16.mxu0 0
      %602 = vmatpush1.bf16.msra.mxu0 0
      %603 = vmatprep.subr.bf16.mxu0 0
      %604 = vmatpush1.bf16.msra.mxu0 0
      %605 = vmatprep.subr.bf16.mxu0 0
      %606 = vmatpush1.bf16.msra.mxu0 0
      %607 = vmatprep.subr.bf16.mxu0 0
      %608 = vmatpush1.bf16.msra.mxu0 0
      %609 = vmatprep.subr.bf16.mxu0 0
      %610 = vmatpush1.bf16.msra.mxu0 0
      %611 = vmatprep.subr.bf16.mxu0 0
      %612 = vmatpush1.bf16.msra.mxu0 0
      %613 = vmatprep.subr.bf16.mxu0 0
      %614 = vmatpush1.bf16.msra.mxu0 0
      %615 = vmatprep.subr.bf16.mxu0 0
      %616 = vmatpush1.bf16.msra.mxu0 0
      %617 = vmatprep.subr.bf16.mxu0 0
      %618 = vmatpush1.bf16.msra.mxu0 0
      %619 = vmatprep.subr.bf16.mxu0 0
      %620 = vmatpush1.bf16.msra.mxu0 0
      %621 = vmatprep.subr.bf16.mxu0 0
      %622 = vmatpush1.bf16.msra.mxu0 0
      %623 = vmatprep.subr.bf16.mxu0 0
      %624 = vmatpush1.bf16.msra.mxu0 0
      %625 = vmatprep.subr.bf16.mxu0 0
      %626 = vmatpush1.bf16.msra.mxu0 0
      %627 = vmatprep.subr.bf16.mxu0 0
      %628 = vmatpush1.bf16.msra.mxu0 0
      %629 = vmatprep.mubr.bf16.mxu0 0
      %630 = vmatmul.mubr.bf16.gmra.mrb[0].mxu0 %v488
      %v631 = vpop.f32.mrb[0].mxu0
      %v632 = vadd.f32 %v484, %v631
      %v633 = vpop.f32.mrb[0].mxu0
      %v634 = vadd.f32 %v484, %v633
      %v635 = vpop.f32.mrb[0].mxu0
      %v636 = vpop.f32.mrb[0].mxu0
      %637 = vdwg.mxu0
      %638 = vmatprep.subr.bf16.mxu0 %v513
      %639 = vmatpush1.bf16.msra.mxu0 %v510
      %640 = vmatprep.subr.bf16.mxu0 0
      %641 = vmatpush1.bf16.msra.mxu0 0
      %642 = vmatprep.subr.bf16.mxu0 0
      %643 = vmatpush1.bf16.msra.mxu0 0
      %644 = vmatprep.subr.bf16.mxu0 0
      %645 = vmatpush1.bf16.msra.mxu0 0
      %646 = vmatprep.subr.bf16.mxu0 0
      %647 = vmatpush1.bf16.msra.mxu0 0
      %648 = vmatprep.subr.bf16.mxu0 0
      %649 = vmatpush1.bf16.msra.mxu0 0
      %650 = vmatprep.subr.bf16.mxu0 0
      %651 = vmatpush1.bf16.msra.mxu0 0
      %652 = vmatprep.subr.bf16.mxu0 0
      %653 = vmatpush1.bf16.msra.mxu0 0
      %654 = vmatprep.subr.bf16.mxu0 0
      %655 = vmatpush1.bf16.msra.mxu0 0
      %656 = vmatprep.subr.bf16.mxu0 0
      %657 = vmatpush1.bf16.msra.mxu0 0
      %658 = vmatprep.subr.bf16.mxu0 0
      %659 = vmatpush1.bf16.msra.mxu0 0
      %660 = vmatprep.subr.bf16.mxu0 0
      %661 = vmatpush1.bf16.msra.mxu0 0
      %662 = vmatprep.subr.bf16.mxu0 0
      %663 = vmatpush1.bf16.msra.mxu0 0
      %664 = vmatprep.subr.bf16.mxu0 0
      %665 = vmatpush1.bf16.msra.mxu0 0
      %666 = vmatprep.subr.bf16.mxu0 0
      %667 = vmatpush1.bf16.msra.mxu0 0
      %668 = vmatprep.subr.bf16.mxu0 0
      %669 = vmatpush1.bf16.msra.mxu0 0
      %670 = vmatprep.mubr.bf16.mxu0 0
      %671 = vmatmul.mubr.bf16.gmra.mrb[0].mxu0 %v488
      %v672 = vpop.f32.mrb[0].mxu0
      %v673 = vadd.f32 %v484, %v672
      %v674 = vpop.f32.mrb[0].mxu0
      %v675 = vadd.f32 %v484, %v674
      %v676 = vpop.f32.mrb[0].mxu0
      %v677 = vpop.f32.mrb[0].mxu0
      %678 = vdwg.mxu0
      %vm679 = vcmp.gt.f32.partialorder %v550, 0.0
      %vm680 = vcmp.gt.f32.partialorder %v552, 0.0
      %vm681 = vcmp.gt.f32.partialorder %v591, 0.0
      %vm682 = vcmp.gt.f32.partialorder %v593, 0.0
      %vm683 = vcmp.gt.f32.partialorder %v632, 0.0
      %vm684 = vcmp.gt.f32.partialorder %v634, 0.0
      %vm685 = vcmp.gt.f32.partialorder %v673, 0.0
      %vm686 = vcmp.gt.f32.partialorder %v675, 0.0
      %v687 = vmul.f32 %v550, 0.01
      %v688 = vmul.f32 %v552, 0.01
      %v689 = vmul.f32 %v591, 0.01
      %v690 = vmul.f32 %v593, 0.01
      %v691 = vmul.f32 %v632, 0.01
      %v692 = vmul.f32 %v634, 0.01
      %v693 = vmul.f32 %v673, 0.01
      %v694 = vmul.f32 %v675, 0.01
      %v695 = vsel %vm679, %v550, %v687
      %v696 = vsel %vm680, %v552, %v688
      %v697 = vsel %vm681, %v591, %v689
      %v698 = vsel %vm682, %v593, %v690
      %v699 = vsel %vm683, %v632, %v691
      %v700 = vsel %vm684, %v634, %v692
      %v701 = vsel %vm685, %v673, %v693
      %v702 = vsel %vm686, %v675, %v694
      %703 = vst [vmem:[%s453] sm:$0xff] %v695
      %704 = vst [vmem:[%s453 + $0x8] sm:$0xff] %v696
      %705 = vst [vmem:[%s453 + $0x10] sm:$0xff] %v697
      %706 = vst [vmem:[%s453 + $0x18] sm:$0xff] %v698
      %707 = vst [vmem:[%s453 + $0x20] sm:$0xff] %v699
      %708 = vst [vmem:[%s453 + $0x28] sm:$0xff] %v700
      %709 = vst [vmem:[%s453 + $0x30] sm:$0xff] %v701
      %710 = vst [vmem:[%s453 + $0x38] sm:$0xff] %v702
      %v711 = vpack.c.bf16 %v695, %v695
      %v712 = vpack.c.bf16 %v696, %v696
      %v713 = vpack.c.bf16 %v697, %v697
      %v714 = vpack.c.bf16 %v698, %v698
      %v715 = vpack.c.bf16 %v699, %v699
      %v716 = vpack.c.bf16 %v700, %v700
      %v717 = vpack.c.bf16 %v701, %v701
      %v718 = vpack.c.bf16 %v702, %v702
      %v727 = vunpack.c.l.b16 %v711
      %v728 = vunpack.c.l.b16 %v712
      %v729 = vunpack.c.l.b16 %v713
      %v730 = vunpack.c.l.b16 %v714
      %v731 = vunpack.c.l.b16 %v715
      %v732 = vunpack.c.l.b16 %v716
      %v733 = vunpack.c.l.b16 %v717
      %v734 = vunpack.c.l.b16 %v718
      %v735 = vpack.c.b16 %v728, %v727
      %v736 = vpack.c.b16 %v730, %v729
      %v737 = vpack.c.b16 %v732, %v731
      %v738 = vpack.c.b16 %v734, %v733
      %743 = vst [vmem:[#allocation2 + $0x80] sm:$0xff] %v735
      %744 = vst [vmem:[#allocation2 + $0x88] sm:$0xff] %v736
      %745 = vst [vmem:[#allocation2 + $0x90] sm:$0xff] %v737
      %746 = vst [vmem:[#allocation2 + $0x98] sm:$0xff] %v738
      %v747 = vld [vmem:[%s1] ss:$8 sm:$0xf]
      %v748 = vld [vmem:[%s1] ss:$8 sm:$0xf0]
      %v749 = vor.u32 %v747, %v748
      %750 = vrot.lane.b32.xlu0 %v695, 33
      %v751 = vpop.permute.xlu0 %750
      %752 = vrot.lane.b32.xlu0 %v696, 33
      %v753 = vpop.permute.xlu0 %752
      %754 = vrot.lane.b32.xlu0 %v697, 33
      %v755 = vpop.permute.xlu0 %754
      %756 = vrot.lane.b32.xlu0 %v698, 33
      %v757 = vpop.permute.xlu0 %756
      %758 = vrot.lane.b32.xlu0 %v699, 33
      %v759 = vpop.permute.xlu0 %758
      %760 = vrot.lane.b32.xlu0 %v700, 33
      %v761 = vpop.permute.xlu0 %760
      %762 = vrot.lane.b32.xlu0 %v701, 33
      %v763 = vpop.permute.xlu0 %762
      %764 = vrot.lane.b32.xlu0 %v702, 33
      %v765 = vpop.permute.xlu0 %764
      %v766 = vlaneseq
      %v767 = vand.u32 %v766, 127
      %vm768 = vcmp.lt.s32.totalorder %v767, 33
      %v769 = vsel %vm768, %v763, %v765
      %v770 = vsel %vm768, %v761, %v763
      %v771 = vsel %vm768, %v759, %v761
      %v772 = vsel %vm768, %v757, %v759
      %v773 = vsel %vm768, %v755, %v757
      %v774 = vsel %vm768, %v753, %v755
      %v775 = vsel %vm768, %v751, %v753
      %v776 = vsel %vm768, %v765, %v751
      %v778 = vlaneseq
      %v779 = vshrl.u32 %v778, 7
      %v780 = vsub.s32 0, %v779
      %v781 = vrot.slane %v749, %v780
      %v782 = vlaneseq
      %v783 = vshrl.u32 %v782, 7
      %v784 = vsub.s32 1, %v783
      %v785 = vrot.slane %v749, %v784
      %v786 = vlaneseq
      %v787 = vshrl.u32 %v786, 7
      %v788 = vsub.s32 2, %v787
      %v789 = vrot.slane %v749, %v788
      %v790 = vlaneseq
      %v791 = vshrl.u32 %v790, 7
      %v792 = vsub.s32 3, %v791
      %v793 = vrot.slane %v749, %v792
      %v794 = vlaneseq
      %v795 = vshrl.u32 %v794, 7
      %v796 = vsub.s32 4, %v795
      %v797 = vrot.slane %v749, %v796
      %v798 = vlaneseq
      %v799 = vshrl.u32 %v798, 7
      %v800 = vsub.s32 5, %v799
      %v801 = vrot.slane %v749, %v800
      %v802 = vlaneseq
      %v803 = vshrl.u32 %v802, 7
      %v804 = vsub.s32 6, %v803
      %v805 = vrot.slane %v749, %v804
      %v806 = vlaneseq
      %v807 = vshrl.u32 %v806, 7
      %v808 = vsub.s32 7, %v807
      %v809 = vrot.slane %v749, %v808
      %v818 = vmul.f32 %v776, %v781
      %v819 = vmul.f32 %v775, %v785
      %v820 = vmul.f32 %v774, %v789
      %v821 = vmul.f32 %v773, %v793
      %v822 = vmul.f32 %v772, %v797
      %v823 = vmul.f32 %v771, %v801
      %v824 = vmul.f32 %v770, %v805
      %v825 = vmul.f32 %v769, %v809
      %v826 = vpack.c.bf16 %v818, %v818
      %v827 = vpack.c.bf16 %v819, %v819
      %v828 = vpack.c.bf16 %v820, %v820
      %v829 = vpack.c.bf16 %v821, %v821
      %v830 = vpack.c.bf16 %v822, %v822
      %v831 = vpack.c.bf16 %v823, %v823
      %v832 = vpack.c.bf16 %v824, %v824
      %v833 = vpack.c.bf16 %v825, %v825
      %v842 = vunpack.c.l.b16 %v826
      %v843 = vunpack.c.l.b16 %v827
      %v844 = vunpack.c.l.b16 %v828
      %v845 = vunpack.c.l.b16 %v829
      %v846 = vunpack.c.l.b16 %v830
      %v847 = vunpack.c.l.b16 %v831
      %v848 = vunpack.c.l.b16 %v832
      %v849 = vunpack.c.l.b16 %v833
      %v850 = vpack.c.b16 %v843, %v842
      %v851 = vpack.c.b16 %v845, %v844
      %v852 = vpack.c.b16 %v847, %v846
      %v853 = vpack.c.b16 %v849, %v848
      %858 = vst [vmem:[#allocation2] sm:$0xff] %v850
      %859 = vst [vmem:[#allocation2 + $0x8] sm:$0xff] %v851
      %860 = vst [vmem:[#allocation2 + $0x10] sm:$0xff] %v852
      %861 = vst [vmem:[#allocation2 + $0x18] sm:$0xff] %v853
      %s862 = scalar_lea.vmem %s1, 1
      %v863 = vld [vmem:[%s862] ss:$8 sm:$0xf]
      %v864 = vld [vmem:[%s862] ss:$8 sm:$0xf0]
      %v865 = vor.u32 %v863, %v864
      %866 = vrot.lane.b32.xlu0 %v695, 32
      %v867 = vpop.permute.xlu0 %866
      %868 = vrot.lane.b32.xlu0 %v696, 32
      %v869 = vpop.permute.xlu0 %868
      %870 = vrot.lane.b32.xlu0 %v697, 32
      %v871 = vpop.permute.xlu0 %870
      %872 = vrot.lane.b32.xlu0 %v698, 32
      %v873 = vpop.permute.xlu0 %872
      %874 = vrot.lane.b32.xlu0 %v699, 32
      %v875 = vpop.permute.xlu0 %874
      %876 = vrot.lane.b32.xlu0 %v700, 32
      %v877 = vpop.permute.xlu0 %876
      %878 = vrot.lane.b32.xlu0 %v701, 32
      %v879 = vpop.permute.xlu0 %878
      %880 = vrot.lane.b32.xlu0 %v702, 32
      %v881 = vpop.permute.xlu0 %880
      %vm882 = vcmp.lt.s32.totalorder %v767, 32
      %v883 = vsel %vm882, %v879, %v881
      %v884 = vsel %vm882, %v877, %v879
      %v885 = vsel %vm882, %v875, %v877
      %v886 = vsel %vm882, %v873, %v875
      %v887 = vsel %vm882, %v871, %v873
      %v888 = vsel %vm882, %v869, %v871
      %v889 = vsel %vm882, %v867, %v869
      %v890 = vsel %vm882, %v881, %v867
      %v892 = vlaneseq
      %v893 = vshrl.u32 %v892, 7
      %v894 = vsub.s32 0, %v893
      %v895 = vrot.slane %v865, %v894
      %v896 = vlaneseq
      %v897 = vshrl.u32 %v896, 7
      %v898 = vsub.s32 1, %v897
      %v899 = vrot.slane %v865, %v898
      %v900 = vlaneseq
      %v901 = vshrl.u32 %v900, 7
      %v902 = vsub.s32 2, %v901
      %v903 = vrot.slane %v865, %v902
      %v904 = vlaneseq
      %v905 = vshrl.u32 %v904, 7
      %v906 = vsub.s32 3, %v905
      %v907 = vrot.slane %v865, %v906
      %v908 = vlaneseq
      %v909 = vshrl.u32 %v908, 7
      %v910 = vsub.s32 4, %v909
      %v911 = vrot.slane %v865, %v910
      %v912 = vlaneseq
      %v913 = vshrl.u32 %v912, 7
      %v914 = vsub.s32 5, %v913
      %v915 = vrot.slane %v865, %v914
      %v916 = vlaneseq
      %v917 = vshrl.u32 %v916, 7
      %v918 = vsub.s32 6, %v917
      %v919 = vrot.slane %v865, %v918
      %v920 = vlaneseq
      %v921 = vshrl.u32 %v920, 7
      %v922 = vsub.s32 7, %v921
      %v923 = vrot.slane %v865, %v922
      %v932 = vmul.f32 %v890, %v895
      %v933 = vmul.f32 %v889, %v899
      %v934 = vmul.f32 %v888, %v903
      %v935 = vmul.f32 %v887, %v907
      %v936 = vmul.f32 %v886, %v911
      %v937 = vmul.f32 %v885, %v915
      %v938 = vmul.f32 %v884, %v919
      %v939 = vmul.f32 %v883, %v923
      %v940 = vpack.c.bf16 %v932, %v932
      %v941 = vpack.c.bf16 %v933, %v933
      %v942 = vpack.c.bf16 %v934, %v934
      %v943 = vpack.c.bf16 %v935, %v935
      %v944 = vpack.c.bf16 %v936, %v936
      %v945 = vpack.c.bf16 %v937, %v937
      %v946 = vpack.c.bf16 %v938, %v938
      %v947 = vpack.c.bf16 %v939, %v939
      %v956 = vunpack.c.l.b16 %v940
      %v957 = vunpack.c.l.b16 %v941
      %v958 = vunpack.c.l.b16 %v942
      %v959 = vunpack.c.l.b16 %v943
      %v960 = vunpack.c.l.b16 %v944
      %v961 = vunpack.c.l.b16 %v945
      %v962 = vunpack.c.l.b16 %v946
      %v963 = vunpack.c.l.b16 %v947
      %v964 = vpack.c.b16 %v957, %v956
      %v965 = vpack.c.b16 %v959, %v958
      %v966 = vpack.c.b16 %v961, %v960
      %v967 = vpack.c.b16 %v963, %v962
      %972 = vst [vmem:[#allocation2 + $0x20] sm:$0xff] %v964
      %973 = vst [vmem:[#allocation2 + $0x28] sm:$0xff] %v965
      %974 = vst [vmem:[#allocation2 + $0x30] sm:$0xff] %v966
      %975 = vst [vmem:[#allocation2 + $0x38] sm:$0xff] %v967
      %s976 = scalar_lea.vmem %s1, 2
      %v977 = vld [vmem:[%s976] ss:$8 sm:$0xf]
      %v978 = vld [vmem:[%s976] ss:$8 sm:$0xf0]
      %v979 = vor.u32 %v977, %v978
      %980 = vrot.lane.b32.xlu0 %v695, 31
      %v981 = vpop.permute.xlu0 %980
      %982 = vrot.lane.b32.xlu0 %v696, 31
      %v983 = vpop.permute.xlu0 %982
      %984 = vrot.lane.b32.xlu0 %v697, 31
      %v985 = vpop.permute.xlu0 %984
      %986 = vrot.lane.b32.xlu0 %v698, 31
      %v987 = vpop.permute.xlu0 %986
      %988 = vrot.lane.b32.xlu0 %v699, 31
      %v989 = vpop.permute.xlu0 %988
      %990 = vrot.lane.b32.xlu0 %v700, 31
      %v991 = vpop.permute.xlu0 %990
      %992 = vrot.lane.b32.xlu0 %v701, 31
      %v993 = vpop.permute.xlu0 %992
      %994 = vrot.lane.b32.xlu0 %v702, 31
      %v995 = vpop.permute.xlu0 %994
      %vm996 = vcmp.lt.s32.totalorder %v767, 31
      %v997 = vsel %vm996, %v993, %v995
      %v998 = vsel %vm996, %v991, %v993
      %v999 = vsel %vm996, %v989, %v991
      %v1000 = vsel %vm996, %v987, %v989
      %v1001 = vsel %vm996, %v985, %v987
      %v1002 = vsel %vm996, %v983, %v985
      %v1003 = vsel %vm996, %v981, %v983
      %v1004 = vsel %vm996, %v995, %v981
      %v1006 = vlaneseq
      %v1007 = vshrl.u32 %v1006, 7
      %v1008 = vsub.s32 0, %v1007
      %v1009 = vrot.slane %v979, %v1008
      %v1010 = vlaneseq
      %v1011 = vshrl.u32 %v1010, 7
      %v1012 = vsub.s32 1, %v1011
      %v1013 = vrot.slane %v979, %v1012
      %v1014 = vlaneseq
      %v1015 = vshrl.u32 %v1014, 7
      %v1016 = vsub.s32 2, %v1015
      %v1017 = vrot.slane %v979, %v1016
      %v1018 = vlaneseq
      %v1019 = vshrl.u32 %v1018, 7
      %v1020 = vsub.s32 3, %v1019
      %v1021 = vrot.slane %v979, %v1020
      %v1022 = vlaneseq
      %v1023 = vshrl.u32 %v1022, 7
      %v1024 = vsub.s32 4, %v1023
      %v1025 = vrot.slane %v979, %v1024
      %v1026 = vlaneseq
      %v1027 = vshrl.u32 %v1026, 7
      %v1028 = vsub.s32 5, %v1027
      %v1029 = vrot.slane %v979, %v1028
      %v1030 = vlaneseq
      %v1031 = vshrl.u32 %v1030, 7
      %v1032 = vsub.s32 6, %v1031
      %v1033 = vrot.slane %v979, %v1032
      %v1034 = vlaneseq
      %v1035 = vshrl.u32 %v1034, 7
      %v1036 = vsub.s32 7, %v1035
      %v1037 = vrot.slane %v979, %v1036
      %v1046 = vmul.f32 %v1004, %v1009
      %v1047 = vmul.f32 %v1003, %v1013
      %v1048 = vmul.f32 %v1002, %v1017
      %v1049 = vmul.f32 %v1001, %v1021
      %v1050 = vmul.f32 %v1000, %v1025
      %v1051 = vmul.f32 %v999, %v1029
      %v1052 = vmul.f32 %v998, %v1033
      %v1053 = vmul.f32 %v997, %v1037
      %v1054 = vpack.c.bf16 %v1046, %v1046
      %v1055 = vpack.c.bf16 %v1047, %v1047
      %v1056 = vpack.c.bf16 %v1048, %v1048
      %v1057 = vpack.c.bf16 %v1049, %v1049
      %v1058 = vpack.c.bf16 %v1050, %v1050
      %v1059 = vpack.c.bf16 %v1051, %v1051
      %v1060 = vpack.c.bf16 %v1052, %v1052
      %v1061 = vpack.c.bf16 %v1053, %v1053
      %v1070 = vunpack.c.l.b16 %v1054
      %v1071 = vunpack.c.l.b16 %v1055
      %v1072 = vunpack.c.l.b16 %v1056
      %v1073 = vunpack.c.l.b16 %v1057
      %v1074 = vunpack.c.l.b16 %v1058
      %v1075 = vunpack.c.l.b16 %v1059
      %v1076 = vunpack.c.l.b16 %v1060
      %v1077 = vunpack.c.l.b16 %v1061
      %v1078 = vpack.c.b16 %v1071, %v1070
      %v1079 = vpack.c.b16 %v1073, %v1072
      %v1080 = vpack.c.b16 %v1075, %v1074
      %v1081 = vpack.c.b16 %v1077, %v1076
      %1086 = vst [vmem:[#allocation2 + $0x40] sm:$0xff] %v1078
      %1087 = vst [vmem:[#allocation2 + $0x48] sm:$0xff] %v1079
      %1088 = vst [vmem:[#allocation2 + $0x50] sm:$0xff] %v1080
      %1089 = vst [vmem:[#allocation2 + $0x58] sm:$0xff] %v1081
      %s1090 = scalar_lea.vmem %s1, 3
      %v1091 = vld [vmem:[%s1090] ss:$8 sm:$0xf]
      %v1092 = vld [vmem:[%s1090] ss:$8 sm:$0xf0]
      %v1093 = vor.u32 %v1091, %v1092
      %1094 = vrot.lane.b32.xlu0 %v695, 1
      %v1095 = vpop.permute.xlu0 %1094
      %1096 = vrot.lane.b32.xlu0 %v696, 1
      %v1097 = vpop.permute.xlu0 %1096
      %1098 = vrot.lane.b32.xlu0 %v697, 1
      %v1099 = vpop.permute.xlu0 %1098
      %1100 = vrot.lane.b32.xlu0 %v698, 1
      %v1101 = vpop.permute.xlu0 %1100
      %1102 = vrot.lane.b32.xlu0 %v699, 1
      %v1103 = vpop.permute.xlu0 %1102
      %1104 = vrot.lane.b32.xlu0 %v700, 1
      %v1105 = vpop.permute.xlu0 %1104
      %1106 = vrot.lane.b32.xlu0 %v701, 1
      %v1107 = vpop.permute.xlu0 %1106
      %1108 = vrot.lane.b32.xlu0 %v702, 1
      %v1109 = vpop.permute.xlu0 %1108
      %vm1110 = vcmp.lt.s32.totalorder %v767, 1
      %v1111 = vsel %vm1110, %v1107, %v1109
      %v1112 = vsel %vm1110, %v1105, %v1107
      %v1113 = vsel %vm1110, %v1103, %v1105
      %v1114 = vsel %vm1110, %v1101, %v1103
      %v1115 = vsel %vm1110, %v1099, %v1101
      %v1116 = vsel %vm1110, %v1097, %v1099
      %v1117 = vsel %vm1110, %v1095, %v1097
      %v1118 = vsel %vm1110, %v1109, %v1095
      %v1120 = vlaneseq
      %v1121 = vshrl.u32 %v1120, 7
      %v1122 = vsub.s32 0, %v1121
      %v1123 = vrot.slane %v1093, %v1122
      %v1124 = vlaneseq
      %v1125 = vshrl.u32 %v1124, 7
      %v1126 = vsub.s32 1, %v1125
      %v1127 = vrot.slane %v1093, %v1126
      %v1128 = vlaneseq
      %v1129 = vshrl.u32 %v1128, 7
      %v1130 = vsub.s32 2, %v1129
      %v1131 = vrot.slane %v1093, %v1130
      %v1132 = vlaneseq
      %v1133 = vshrl.u32 %v1132, 7
      %v1134 = vsub.s32 3, %v1133
      %v1135 = vrot.slane %v1093, %v1134
      %v1136 = vlaneseq
      %v1137 = vshrl.u32 %v1136, 7
      %v1138 = vsub.s32 4, %v1137
      %v1139 = vrot.slane %v1093, %v1138
      %v1140 = vlaneseq
      %v1141 = vshrl.u32 %v1140, 7
      %v1142 = vsub.s32 5, %v1141
      %v1143 = vrot.slane %v1093, %v1142
      %v1144 = vlaneseq
      %v1145 = vshrl.u32 %v1144, 7
      %v1146 = vsub.s32 6, %v1145
      %v1147 = vrot.slane %v1093, %v1146
      %v1148 = vlaneseq
      %v1149 = vshrl.u32 %v1148, 7
      %v1150 = vsub.s32 7, %v1149
      %v1151 = vrot.slane %v1093, %v1150
      %v1160 = vmul.f32 %v1118, %v1123
      %v1161 = vmul.f32 %v1117, %v1127
      %v1162 = vmul.f32 %v1116, %v1131
      %v1163 = vmul.f32 %v1115, %v1135
      %v1164 = vmul.f32 %v1114, %v1139
      %v1165 = vmul.f32 %v1113, %v1143
      %v1166 = vmul.f32 %v1112, %v1147
      %v1167 = vmul.f32 %v1111, %v1151
      %v1168 = vpack.c.bf16 %v1160, %v1160
      %v1169 = vpack.c.bf16 %v1161, %v1161
      %v1170 = vpack.c.bf16 %v1162, %v1162
      %v1171 = vpack.c.bf16 %v1163, %v1163
      %v1172 = vpack.c.bf16 %v1164, %v1164
      %v1173 = vpack.c.bf16 %v1165, %v1165
      %v1174 = vpack.c.bf16 %v1166, %v1166
      %v1175 = vpack.c.bf16 %v1167, %v1167
      %v1184 = vunpack.c.l.b16 %v1168
      %v1185 = vunpack.c.l.b16 %v1169
      %v1186 = vunpack.c.l.b16 %v1170
      %v1187 = vunpack.c.l.b16 %v1171
      %v1188 = vunpack.c.l.b16 %v1172
      %v1189 = vunpack.c.l.b16 %v1173
      %v1190 = vunpack.c.l.b16 %v1174
      %v1191 = vunpack.c.l.b16 %v1175
      %v1192 = vpack.c.b16 %v1185, %v1184
      %v1193 = vpack.c.b16 %v1187, %v1186
      %v1194 = vpack.c.b16 %v1189, %v1188
      %v1195 = vpack.c.b16 %v1191, %v1190
      %1200 = vst [vmem:[#allocation2 + $0x60] sm:$0xff] %v1192
      %1201 = vst [vmem:[#allocation2 + $0x68] sm:$0xff] %v1193
      %1202 = vst [vmem:[#allocation2 + $0x70] sm:$0xff] %v1194
      %1203 = vst [vmem:[#allocation2 + $0x78] sm:$0xff] %v1195
      %s1204 = scalar_lea.vmem %s1, 4
      %v1205 = vld [vmem:[%s1204] ss:$8 sm:$0xf]
      %v1206 = vld [vmem:[%s1204] ss:$8 sm:$0xf0]
      %v1207 = vor.u32 %v1205, %v1206
      %1208 = vrot.lane.b32.xlu0 %v695, 127
      %v1209 = vpop.permute.xlu0 %1208
      %1210 = vrot.lane.b32.xlu0 %v696, 127
      %v1211 = vpop.permute.xlu0 %1210
      %1212 = vrot.lane.b32.xlu0 %v697, 127
      %v1213 = vpop.permute.xlu0 %1212
      %1214 = vrot.lane.b32.xlu0 %v698, 127
      %v1215 = vpop.permute.xlu0 %1214
      %1216 = vrot.lane.b32.xlu0 %v699, 127
      %v1217 = vpop.permute.xlu0 %1216
      %1218 = vrot.lane.b32.xlu0 %v700, 127
      %v1219 = vpop.permute.xlu0 %1218
      %1220 = vrot.lane.b32.xlu0 %v701, 127
      %v1221 = vpop.permute.xlu0 %1220
      %1222 = vrot.lane.b32.xlu0 %v702, 127
      %v1223 = vpop.permute.xlu0 %1222
      %vm1224 = vcmp.lt.s32.totalorder %v767, 127
      %v1225 = vsel %vm1224, %v1221, %v1223
      %v1226 = vsel %vm1224, %v1219, %v1221
      %v1227 = vsel %vm1224, %v1217, %v1219
      %v1228 = vsel %vm1224, %v1215, %v1217
      %v1229 = vsel %vm1224, %v1213, %v1215
      %v1230 = vsel %vm1224, %v1211, %v1213
      %v1231 = vsel %vm1224, %v1209, %v1211
      %v1232 = vsel %vm1224, %v1223, %v1209
      %v1234 = vlaneseq
      %v1235 = vshrl.u32 %v1234, 7
      %v1236 = vsub.s32 0, %v1235
      %v1237 = vrot.slane %v1207, %v1236
      %v1238 = vlaneseq
      %v1239 = vshrl.u32 %v1238, 7
      %v1240 = vsub.s32 1, %v1239
      %v1241 = vrot.slane %v1207, %v1240
      %v1242 = vlaneseq
      %v1243 = vshrl.u32 %v1242, 7
      %v1244 = vsub.s32 2, %v1243
      %v1245 = vrot.slane %v1207, %v1244
      %v1246 = vlaneseq
      %v1247 = vshrl.u32 %v1246, 7
      %v1248 = vsub.s32 3, %v1247
      %v1249 = vrot.slane %v1207, %v1248
      %v1250 = vlaneseq
      %v1251 = vshrl.u32 %v1250, 7
      %v1252 = vsub.s32 4, %v1251
      %v1253 = vrot.slane %v1207, %v1252
      %v1254 = vlaneseq
      %v1255 = vshrl.u32 %v1254, 7
      %v1256 = vsub.s32 5, %v1255
      %v1257 = vrot.slane %v1207, %v1256
      %v1258 = vlaneseq
      %v1259 = vshrl.u32 %v1258, 7
      %v1260 = vsub.s32 6, %v1259
      %v1261 = vrot.slane %v1207, %v1260
      %v1262 = vlaneseq
      %v1263 = vshrl.u32 %v1262, 7
      %v1264 = vsub.s32 7, %v1263
      %v1265 = vrot.slane %v1207, %v1264
      %v1274 = vmul.f32 %v1231, %v1237
      %v1275 = vmul.f32 %v1230, %v1241
      %v1276 = vmul.f32 %v1229, %v1245
      %v1277 = vmul.f32 %v1228, %v1249
      %v1278 = vmul.f32 %v1227, %v1253
      %v1279 = vmul.f32 %v1226, %v1257
      %v1280 = vmul.f32 %v1225, %v1261
      %v1281 = vmul.f32 %v1232, %v1265
      %v1282 = vpack.c.bf16 %v1274, %v1274
      %v1283 = vpack.c.bf16 %v1275, %v1275
      %v1284 = vpack.c.bf16 %v1276, %v1276
      %v1285 = vpack.c.bf16 %v1277, %v1277
      %v1286 = vpack.c.bf16 %v1278, %v1278
      %v1287 = vpack.c.bf16 %v1279, %v1279
      %v1288 = vpack.c.bf16 %v1280, %v1280
      %v1289 = vpack.c.bf16 %v1281, %v1281
      %v1298 = vunpack.c.l.b16 %v1282
      %v1299 = vunpack.c.l.b16 %v1283
      %v1300 = vunpack.c.l.b16 %v1284
      %v1301 = vunpack.c.l.b16 %v1285
      %v1302 = vunpack.c.l.b16 %v1286
      %v1303 = vunpack.c.l.b16 %v1287
      %v1304 = vunpack.c.l.b16 %v1288
      %v1305 = vunpack.c.l.b16 %v1289
      %v1306 = vpack.c.b16 %v1299, %v1298
      %v1307 = vpack.c.b16 %v1301, %v1300
      %v1308 = vpack.c.b16 %v1303, %v1302
      %v1309 = vpack.c.b16 %v1305, %v1304
      %1314 = vst [vmem:[#allocation2 + $0xa0] sm:$0xff] %v1306
      %1315 = vst [vmem:[#allocation2 + $0xa8] sm:$0xff] %v1307
      %1316 = vst [vmem:[#allocation2 + $0xb0] sm:$0xff] %v1308
      %1317 = vst [vmem:[#allocation2 + $0xb8] sm:$0xff] %v1309
      %s1318 = scalar_lea.vmem %s1, 5
      %v1319 = vld [vmem:[%s1318] ss:$8 sm:$0xf]
      %v1320 = vld [vmem:[%s1318] ss:$8 sm:$0xf0]
      %v1321 = vor.u32 %v1319, %v1320
      %1322 = vrot.lane.b32.xlu0 %v695, 97
      %v1323 = vpop.permute.xlu0 %1322
      %1324 = vrot.lane.b32.xlu0 %v696, 97
      %v1325 = vpop.permute.xlu0 %1324
      %1326 = vrot.lane.b32.xlu0 %v697, 97
      %v1327 = vpop.permute.xlu0 %1326
      %1328 = vrot.lane.b32.xlu0 %v698, 97
      %v1329 = vpop.permute.xlu0 %1328
      %1330 = vrot.lane.b32.xlu0 %v699, 97
      %v1331 = vpop.permute.xlu0 %1330
      %1332 = vrot.lane.b32.xlu0 %v700, 97
      %v1333 = vpop.permute.xlu0 %1332
      %1334 = vrot.lane.b32.xlu0 %v701, 97
      %v1335 = vpop.permute.xlu0 %1334
      %1336 = vrot.lane.b32.xlu0 %v702, 97
      %v1337 = vpop.permute.xlu0 %1336
      %vm1338 = vcmp.lt.s32.totalorder %v767, 97
      %v1339 = vsel %vm1338, %v1335, %v1337
      %v1340 = vsel %vm1338, %v1333, %v1335
      %v1341 = vsel %vm1338, %v1331, %v1333
      %v1342 = vsel %vm1338, %v1329, %v1331
      %v1343 = vsel %vm1338, %v1327, %v1329
      %v1344 = vsel %vm1338, %v1325, %v1327
      %v1345 = vsel %vm1338, %v1323, %v1325
      %v1346 = vsel %vm1338, %v1337, %v1323
      %v1348 = vlaneseq
      %v1349 = vshrl.u32 %v1348, 7
      %v1350 = vsub.s32 0, %v1349
      %v1351 = vrot.slane %v1321, %v1350
      %v1352 = vlaneseq
      %v1353 = vshrl.u32 %v1352, 7
      %v1354 = vsub.s32 1, %v1353
      %v1355 = vrot.slane %v1321, %v1354
      %v1356 = vlaneseq
      %v1357 = vshrl.u32 %v1356, 7
      %v1358 = vsub.s32 2, %v1357
      %v1359 = vrot.slane %v1321, %v1358
      %v1360 = vlaneseq
      %v1361 = vshrl.u32 %v1360, 7
      %v1362 = vsub.s32 3, %v1361
      %v1363 = vrot.slane %v1321, %v1362
      %v1364 = vlaneseq
      %v1365 = vshrl.u32 %v1364, 7
      %v1366 = vsub.s32 4, %v1365
      %v1367 = vrot.slane %v1321, %v1366
      %v1368 = vlaneseq
      %v1369 = vshrl.u32 %v1368, 7
      %v1370 = vsub.s32 5, %v1369
      %v1371 = vrot.slane %v1321, %v1370
      %v1372 = vlaneseq
      %v1373 = vshrl.u32 %v1372, 7
      %v1374 = vsub.s32 6, %v1373
      %v1375 = vrot.slane %v1321, %v1374
      %v1376 = vlaneseq
      %v1377 = vshrl.u32 %v1376, 7
      %v1378 = vsub.s32 7, %v1377
      %v1379 = vrot.slane %v1321, %v1378
      %v1388 = vmul.f32 %v1345, %v1351
      %v1389 = vmul.f32 %v1344, %v1355
      %v1390 = vmul.f32 %v1343, %v1359
      %v1391 = vmul.f32 %v1342, %v1363
      %v1392 = vmul.f32 %v1341, %v1367
      %v1393 = vmul.f32 %v1340, %v1371
      %v1394 = vmul.f32 %v1339, %v1375
      %v1395 = vmul.f32 %v1346, %v1379
      %v1396 = vpack.c.bf16 %v1388, %v1388
      %v1397 = vpack.c.bf16 %v1389, %v1389
      %v1398 = vpack.c.bf16 %v1390, %v1390
      %v1399 = vpack.c.bf16 %v1391, %v1391
      %v1400 = vpack.c.bf16 %v1392, %v1392
      %v1401 = vpack.c.bf16 %v1393, %v1393
      %v1402 = vpack.c.bf16 %v1394, %v1394
      %v1403 = vpack.c.bf16 %v1395, %v1395
      %v1412 = vunpack.c.l.b16 %v1396
      %v1413 = vunpack.c.l.b16 %v1397
      %v1414 = vunpack.c.l.b16 %v1398
      %v1415 = vunpack.c.l.b16 %v1399
      %v1416 = vunpack.c.l.b16 %v1400
      %v1417 = vunpack.c.l.b16 %v1401
      %v1418 = vunpack.c.l.b16 %v1402
      %v1419 = vunpack.c.l.b16 %v1403
      %v1420 = vpack.c.b16 %v1413, %v1412
      %v1421 = vpack.c.b16 %v1415, %v1414
      %v1422 = vpack.c.b16 %v1417, %v1416
      %v1423 = vpack.c.b16 %v1419, %v1418
      %1428 = vst [vmem:[#allocation2 + $0xc0] sm:$0xff] %v1420
      %1429 = vst [vmem:[#allocation2 + $0xc8] sm:$0xff] %v1421
      %1430 = vst [vmem:[#allocation2 + $0xd0] sm:$0xff] %v1422
      %1431 = vst [vmem:[#allocation2 + $0xd8] sm:$0xff] %v1423
      %s1432 = scalar_lea.vmem %s1, 6
      %v1433 = vld [vmem:[%s1432] ss:$8 sm:$0xf]
      %v1434 = vld [vmem:[%s1432] ss:$8 sm:$0xf0]
      %v1435 = vor.u32 %v1433, %v1434
      %1436 = vrot.lane.b32.xlu0 %v695, 96
      %v1437 = vpop.permute.xlu0 %1436
      %1438 = vrot.lane.b32.xlu0 %v696, 96
      %v1439 = vpop.permute.xlu0 %1438
      %1440 = vrot.lane.b32.xlu0 %v697, 96
      %v1441 = vpop.permute.xlu0 %1440
      %1442 = vrot.lane.b32.xlu0 %v698, 96
      %v1443 = vpop.permute.xlu0 %1442
      %1444 = vrot.lane.b32.xlu0 %v699, 96
      %v1445 = vpop.permute.xlu0 %1444
      %1446 = vrot.lane.b32.xlu0 %v700, 96
      %v1447 = vpop.permute.xlu0 %1446
      %1448 = vrot.lane.b32.xlu0 %v701, 96
      %v1449 = vpop.permute.xlu0 %1448
      %1450 = vrot.lane.b32.xlu0 %v702, 96
      %v1451 = vpop.permute.xlu0 %1450
      %vm1452 = vcmp.lt.s32.totalorder %v767, 96
      %v1453 = vsel %vm1452, %v1449, %v1451
      %v1454 = vsel %vm1452, %v1447, %v1449
      %v1455 = vsel %vm1452, %v1445, %v1447
      %v1456 = vsel %vm1452, %v1443, %v1445
      %v1457 = vsel %vm1452, %v1441, %v1443
      %v1458 = vsel %vm1452, %v1439, %v1441
      %v1459 = vsel %vm1452, %v1437, %v1439
      %v1460 = vsel %vm1452, %v1451, %v1437
      %v1462 = vlaneseq
      %v1463 = vshrl.u32 %v1462, 7
      %v1464 = vsub.s32 0, %v1463
      %v1465 = vrot.slane %v1435, %v1464
      %v1466 = vlaneseq
      %v1467 = vshrl.u32 %v1466, 7
      %v1468 = vsub.s32 1, %v1467
      %v1469 = vrot.slane %v1435, %v1468
      %v1470 = vlaneseq
      %v1471 = vshrl.u32 %v1470, 7
      %v1472 = vsub.s32 2, %v1471
      %v1473 = vrot.slane %v1435, %v1472
      %v1474 = vlaneseq
      %v1475 = vshrl.u32 %v1474, 7
      %v1476 = vsub.s32 3, %v1475
      %v1477 = vrot.slane %v1435, %v1476
      %v1478 = vlaneseq
      %v1479 = vshrl.u32 %v1478, 7
      %v1480 = vsub.s32 4, %v1479
      %v1481 = vrot.slane %v1435, %v1480
      %v1482 = vlaneseq
      %v1483 = vshrl.u32 %v1482, 7
      %v1484 = vsub.s32 5, %v1483
      %v1485 = vrot.slane %v1435, %v1484
      %v1486 = vlaneseq
      %v1487 = vshrl.u32 %v1486, 7
      %v1488 = vsub.s32 6, %v1487
      %v1489 = vrot.slane %v1435, %v1488
      %v1490 = vlaneseq
      %v1491 = vshrl.u32 %v1490, 7
      %v1492 = vsub.s32 7, %v1491
      %v1493 = vrot.slane %v1435, %v1492
      %v1502 = vmul.f32 %v1459, %v1465
      %v1503 = vmul.f32 %v1458, %v1469
      %v1504 = vmul.f32 %v1457, %v1473
      %v1505 = vmul.f32 %v1456, %v1477
      %v1506 = vmul.f32 %v1455, %v1481
      %v1507 = vmul.f32 %v1454, %v1485
      %v1508 = vmul.f32 %v1453, %v1489
      %v1509 = vmul.f32 %v1460, %v1493
      %v1510 = vpack.c.bf16 %v1502, %v1502
      %v1511 = vpack.c.bf16 %v1503, %v1503
      %v1512 = vpack.c.bf16 %v1504, %v1504
      %v1513 = vpack.c.bf16 %v1505, %v1505
      %v1514 = vpack.c.bf16 %v1506, %v1506
      %v1515 = vpack.c.bf16 %v1507, %v1507
      %v1516 = vpack.c.bf16 %v1508, %v1508
      %v1517 = vpack.c.bf16 %v1509, %v1509
      %v1526 = vunpack.c.l.b16 %v1510
      %v1527 = vunpack.c.l.b16 %v1511
      %v1528 = vunpack.c.l.b16 %v1512
      %v1529 = vunpack.c.l.b16 %v1513
      %v1530 = vunpack.c.l.b16 %v1514
      %v1531 = vunpack.c.l.b16 %v1515
      %v1532 = vunpack.c.l.b16 %v1516
      %v1533 = vunpack.c.l.b16 %v1517
      %v1534 = vpack.c.b16 %v1527, %v1526
      %v1535 = vpack.c.b16 %v1529, %v1528
      %v1536 = vpack.c.b16 %v1531, %v1530
      %v1537 = vpack.c.b16 %v1533, %v1532
      %1542 = vst [vmem:[#allocation2 + $0xe0] sm:$0xff] %v1534
      %1543 = vst [vmem:[#allocation2 + $0xe8] sm:$0xff] %v1535
      %1544 = vst [vmem:[#allocation2 + $0xf0] sm:$0xff] %v1536
      %1545 = vst [vmem:[#allocation2 + $0xf8] sm:$0xff] %v1537
      %s1546 = scalar_lea.vmem %s1, 7
      %v1547 = vld [vmem:[%s1546] ss:$8 sm:$0xf]
      %v1548 = vld [vmem:[%s1546] ss:$8 sm:$0xf0]
      %v1549 = vor.u32 %v1547, %v1548
      %1550 = vrot.lane.b32.xlu0 %v695, 95
      %v1551 = vpop.permute.xlu0 %1550
      %1552 = vrot.lane.b32.xlu0 %v696, 95
      %v1553 = vpop.permute.xlu0 %1552
      %1554 = vrot.lane.b32.xlu0 %v697, 95
      %v1555 = vpop.permute.xlu0 %1554
      %1556 = vrot.lane.b32.xlu0 %v698, 95
      %v1557 = vpop.permute.xlu0 %1556
      %1558 = vrot.lane.b32.xlu0 %v699, 95
      %v1559 = vpop.permute.xlu0 %1558
      %1560 = vrot.lane.b32.xlu0 %v700, 95
      %v1561 = vpop.permute.xlu0 %1560
      %1562 = vrot.lane.b32.xlu0 %v701, 95
      %v1563 = vpop.permute.xlu0 %1562
      %1564 = vrot.lane.b32.xlu0 %v702, 95
      %v1565 = vpop.permute.xlu0 %1564
      %vm1566 = vcmp.lt.s32.totalorder %v767, 95
      %v1567 = vsel %vm1566, %v1563, %v1565
      %v1568 = vsel %vm1566, %v1561, %v1563
      %v1569 = vsel %vm1566, %v1559, %v1561
      %v1570 = vsel %vm1566, %v1557, %v1559
      %v1571 = vsel %vm1566, %v1555, %v1557
      %v1572 = vsel %vm1566, %v1553, %v1555
      %v1573 = vsel %vm1566, %v1551, %v1553
      %v1574 = vsel %vm1566, %v1565, %v1551
      %v1576 = vlaneseq
      %v1577 = vshrl.u32 %v1576, 7
      %v1578 = vsub.s32 0, %v1577
      %v1579 = vrot.slane %v1549, %v1578
      %v1580 = vlaneseq
      %v1581 = vshrl.u32 %v1580, 7
      %v1582 = vsub.s32 1, %v1581
      %v1583 = vrot.slane %v1549, %v1582
      %v1584 = vlaneseq
      %v1585 = vshrl.u32 %v1584, 7
      %v1586 = vsub.s32 2, %v1585
      %v1587 = vrot.slane %v1549, %v1586
      %v1588 = vlaneseq
      %v1589 = vshrl.u32 %v1588, 7
      %v1590 = vsub.s32 3, %v1589
      %v1591 = vrot.slane %v1549, %v1590
      %v1592 = vlaneseq
      %v1593 = vshrl.u32 %v1592, 7
      %v1594 = vsub.s32 4, %v1593
      %v1595 = vrot.slane %v1549, %v1594
      %v1596 = vlaneseq
      %v1597 = vshrl.u32 %v1596, 7
      %v1598 = vsub.s32 5, %v1597
      %v1599 = vrot.slane %v1549, %v1598
      %v1600 = vlaneseq
      %v1601 = vshrl.u32 %v1600, 7
      %v1602 = vsub.s32 6, %v1601
      %v1603 = vrot.slane %v1549, %v1602
      %v1604 = vlaneseq
      %v1605 = vshrl.u32 %v1604, 7
      %v1606 = vsub.s32 7, %v1605
      %v1607 = vrot.slane %v1549, %v1606
      %v1616 = vmul.f32 %v1573, %v1579
      %v1617 = vmul.f32 %v1572, %v1583
      %v1618 = vmul.f32 %v1571, %v1587
      %v1619 = vmul.f32 %v1570, %v1591
      %v1620 = vmul.f32 %v1569, %v1595
      %v1621 = vmul.f32 %v1568, %v1599
      %v1622 = vmul.f32 %v1567, %v1603
      %v1623 = vmul.f32 %v1574, %v1607
      %v1624 = vpack.c.bf16 %v1616, %v1616
      %v1625 = vpack.c.bf16 %v1617, %v1617
      %v1626 = vpack.c.bf16 %v1618, %v1618
      %v1627 = vpack.c.bf16 %v1619, %v1619
      %v1628 = vpack.c.bf16 %v1620, %v1620
      %v1629 = vpack.c.bf16 %v1621, %v1621
      %v1630 = vpack.c.bf16 %v1622, %v1622
      %v1631 = vpack.c.bf16 %v1623, %v1623
      %v1640 = vunpack.c.l.b16 %v1624
      %v1641 = vunpack.c.l.b16 %v1625
      %v1642 = vunpack.c.l.b16 %v1626
      %v1643 = vunpack.c.l.b16 %v1627
      %v1644 = vunpack.c.l.b16 %v1628
      %v1645 = vunpack.c.l.b16 %v1629
      %v1646 = vunpack.c.l.b16 %v1630
      %v1647 = vunpack.c.l.b16 %v1631
      %v1648 = vpack.c.b16 %v1641, %v1640
      %v1649 = vpack.c.b16 %v1643, %v1642
      %v1650 = vpack.c.b16 %v1645, %v1644
      %v1651 = vpack.c.b16 %v1647, %v1646
      %1656 = vst [vmem:[#allocation2 + $0x100] sm:$0xff] %v1648
      %1657 = vst [vmem:[#allocation2 + $0x108] sm:$0xff] %v1649
      %1658 = vst [vmem:[#allocation2 + $0x110] sm:$0xff] %v1650
      %1659 = vst [vmem:[#allocation2 + $0x118] sm:$0xff] %v1651
      %v1660 = vld [vmem:[%s4] sm:$0xf]
      %v1661 = vld [vmem:[#allocation2] sm:$0xff]
      %v1662 = vld [vmem:[#allocation2 + $0x8] sm:$0xff]
      %v1663 = vld [vmem:[#allocation2 + $0x10] sm:$0xff]
      %v1664 = vld [vmem:[#allocation2 + $0x18] sm:$0xff]
      %v1665 = vld [vmem:[#allocation2 + $0x20] sm:$0xff]
      %v1666 = vld [vmem:[#allocation2 + $0x28] sm:$0xff]
      %v1667 = vld [vmem:[#allocation2 + $0x30] sm:$0xff]
      %v1668 = vld [vmem:[#allocation2 + $0x38] sm:$0xff]
      %v1669 = vld [vmem:[#allocation2 + $0x40] sm:$0xff]
      %v1670 = vld [vmem:[#allocation2 + $0x48] sm:$0xff]
      %v1671 = vld [vmem:[#allocation2 + $0x50] sm:$0xff]
      %v1672 = vld [vmem:[#allocation2 + $0x58] sm:$0xff]
      %v1673 = vld [vmem:[#allocation2 + $0x60] sm:$0xff]
      %v1674 = vld [vmem:[#allocation2 + $0x68] sm:$0xff]
      %v1675 = vld [vmem:[#allocation2 + $0x70] sm:$0xff]
      %v1676 = vld [vmem:[#allocation2 + $0x78] sm:$0xff]
      %v1677 = vld [vmem:[#allocation2 + $0x80] sm:$0xff]
      %v1678 = vld [vmem:[#allocation2 + $0x88] sm:$0xff]
      %v1679 = vld [vmem:[#allocation2 + $0x90] sm:$0xff]
      %v1680 = vld [vmem:[#allocation2 + $0x98] sm:$0xff]
      %v1681 = vld [vmem:[#allocation2 + $0xa0] sm:$0xff]
      %v1682 = vld [vmem:[#allocation2 + $0xa8] sm:$0xff]
      %v1683 = vld [vmem:[#allocation2 + $0xb0] sm:$0xff]
      %v1684 = vld [vmem:[#allocation2 + $0xb8] sm:$0xff]
      %v1685 = vld [vmem:[#allocation2 + $0xc0] sm:$0xff]
      %v1686 = vld [vmem:[#allocation2 + $0xc8] sm:$0xff]
      %v1687 = vld [vmem:[#allocation2 + $0xd0] sm:$0xff]
      %v1688 = vld [vmem:[#allocation2 + $0xd8] sm:$0xff]
      %v1689 = vld [vmem:[#allocation2 + $0xe0] sm:$0xff]
      %v1690 = vld [vmem:[#allocation2 + $0xe8] sm:$0xff]
      %v1691 = vld [vmem:[#allocation2 + $0xf0] sm:$0xff]
      %v1692 = vld [vmem:[#allocation2 + $0xf8] sm:$0xff]
      %v1693 = vld [vmem:[#allocation2 + $0x100] sm:$0xff]
      %v1694 = vld [vmem:[#allocation2 + $0x108] sm:$0xff]
      %v1695 = vld [vmem:[#allocation2 + $0x110] sm:$0xff]
      %v1696 = vld [vmem:[#allocation2 + $0x118] sm:$0xff]
      %v1697 = vld [vmem:[%s5] sm:$0xff]
      %1699 = vset.pattern.permute.xlu0 0
      %1700 = vperm.xlu0 %1699, %v1697
      %v1701 = vpop.permute.xlu0 %1700
      %v1739 = vunpack.c.l.b16 %v1661
      %v1740 = vunpack.c.h.b16 %v1661
      %v1741 = vunpack.c.l.b16 %v1662
      %v1742 = vunpack.c.h.b16 %v1662
      %v1743 = vunpack.c.l.b16 %v1663
      %v1744 = vunpack.c.h.b16 %v1663
      %v1745 = vunpack.c.l.b16 %v1664
      %v1746 = vunpack.c.h.b16 %v1664
      %v1747 = vunpack.c.l.b16 %v1665
      %v1748 = vunpack.c.h.b16 %v1665
      %v1749 = vunpack.c.l.b16 %v1666
      %v1750 = vunpack.c.h.b16 %v1666
      %v1751 = vunpack.c.l.b16 %v1667
      %v1752 = vunpack.c.h.b16 %v1667
      %v1753 = vunpack.c.l.b16 %v1668
      %v1754 = vunpack.c.h.b16 %v1668
      %v1755 = vunpack.c.l.b16 %v1669
      %v1756 = vunpack.c.h.b16 %v1669
      %v1757 = vunpack.c.l.b16 %v1670
      %v1758 = vunpack.c.h.b16 %v1670
      %v1759 = vunpack.c.l.b16 %v1671
      %v1760 = vunpack.c.h.b16 %v1671
      %v1761 = vunpack.c.l.b16 %v1672
      %v1762 = vunpack.c.h.b16 %v1672
      %v1763 = vunpack.c.l.b16 %v1673
      %v1764 = vunpack.c.h.b16 %v1673
      %v1765 = vunpack.c.l.b16 %v1674
      %v1766 = vunpack.c.h.b16 %v1674
      %v1767 = vunpack.c.l.b16 %v1675
      %v1768 = vunpack.c.h.b16 %v1675
      %v1769 = vunpack.c.l.b16 %v1676
      %v1770 = vunpack.c.h.b16 %v1676
      %v1771 = vunpack.c.l.b16 %v1677
      %v1772 = vunpack.c.h.b16 %v1677
      %v1773 = vunpack.c.l.b16 %v1678
      %v1774 = vunpack.c.h.b16 %v1678
      %v1775 = vunpack.c.l.b16 %v1679
      %v1776 = vunpack.c.h.b16 %v1679
      %v1777 = vunpack.c.l.b16 %v1680
      %v1778 = vunpack.c.h.b16 %v1680
      %v1779 = vunpack.c.l.b16 %v1681
      %v1780 = vunpack.c.h.b16 %v1681
      %v1781 = vunpack.c.l.b16 %v1682
      %v1782 = vunpack.c.h.b16 %v1682
      %v1783 = vunpack.c.l.b16 %v1683
      %v1784 = vunpack.c.h.b16 %v1683
      %v1785 = vunpack.c.l.b16 %v1684
      %v1786 = vunpack.c.h.b16 %v1684
      %v1787 = vunpack.c.l.b16 %v1685
      %v1788 = vunpack.c.h.b16 %v1685
      %v1789 = vunpack.c.l.b16 %v1686
      %v1790 = vunpack.c.h.b16 %v1686
      %v1791 = vunpack.c.l.b16 %v1687
      %v1792 = vunpack.c.h.b16 %v1687
      %v1793 = vunpack.c.l.b16 %v1688
      %v1794 = vunpack.c.h.b16 %v1688
      %v1795 = vunpack.c.l.b16 %v1689
      %v1796 = vunpack.c.h.b16 %v1689
      %v1797 = vunpack.c.l.b16 %v1690
      %v1798 = vunpack.c.h.b16 %v1690
      %v1799 = vunpack.c.l.b16 %v1691
      %v1800 = vunpack.c.h.b16 %v1691
      %v1801 = vunpack.c.l.b16 %v1692
      %v1802 = vunpack.c.h.b16 %v1692
      %v1803 = vunpack.c.l.b16 %v1693
      %v1804 = vunpack.c.h.b16 %v1693
      %v1805 = vunpack.c.l.b16 %v1694
      %v1806 = vunpack.c.h.b16 %v1694
      %v1807 = vunpack.c.l.b16 %v1695
      %v1808 = vunpack.c.h.b16 %v1695
      %v1809 = vunpack.c.l.b16 %v1696
      %v1810 = vunpack.c.h.b16 %v1696
      %v1811 = vpack.c.b16 %v1747, %v1739
      %v1812 = vpack.c.b16 %v1748, %v1740
      %v1813 = vpack.c.b16 %v1749, %v1741
      %v1814 = vpack.c.b16 %v1750, %v1742
      %v1815 = vpack.c.b16 %v1751, %v1743
      %v1816 = vpack.c.b16 %v1752, %v1744
      %v1817 = vpack.c.b16 %v1753, %v1745
      %v1818 = vpack.c.b16 %v1754, %v1746
      %v1819 = vpack.c.b16 %v1763, %v1755
      %v1820 = vpack.c.b16 %v1764, %v1756
      %v1821 = vpack.c.b16 %v1765, %v1757
      %v1822 = vpack.c.b16 %v1766, %v1758
      %v1823 = vpack.c.b16 %v1767, %v1759
      %v1824 = vpack.c.b16 %v1768, %v1760
      %v1825 = vpack.c.b16 %v1769, %v1761
      %v1826 = vpack.c.b16 %v1770, %v1762
      %v1827 = vpack.c.b16 %v1779, %v1771
      %v1828 = vpack.c.b16 %v1780, %v1772
      %v1829 = vpack.c.b16 %v1781, %v1773
      %v1830 = vpack.c.b16 %v1782, %v1774
      %v1831 = vpack.c.b16 %v1783, %v1775
      %v1832 = vpack.c.b16 %v1784, %v1776
      %v1833 = vpack.c.b16 %v1785, %v1777
      %v1834 = vpack.c.b16 %v1786, %v1778
      %v1835 = vpack.c.b16 %v1795, %v1787
      %v1836 = vpack.c.b16 %v1796, %v1788
      %v1837 = vpack.c.b16 %v1797, %v1789
      %v1838 = vpack.c.b16 %v1798, %v1790
      %v1839 = vpack.c.b16 %v1799, %v1791
      %v1840 = vpack.c.b16 %v1800, %v1792
      %v1841 = vpack.c.b16 %v1801, %v1793
      %v1842 = vpack.c.b16 %v1802, %v1794
      %v1843 = vpack.c.b16 %v1803, %v1803
      %v1844 = vpack.c.b16 %v1804, %v1804
      %v1845 = vpack.c.b16 %v1805, %v1805
      %v1846 = vpack.c.b16 %v1806, %v1806
      %v1847 = vpack.c.b16 %v1807, %v1807
      %v1848 = vpack.c.b16 %v1808, %v1808
      %v1849 = vpack.c.b16 %v1809, %v1809
      %v1850 = vpack.c.b16 %v1810, %v1810
      %vm1883 = vcmask 588800
      %v1885 = vsel %vm1883, %v1660, 0
      %vm1887 = vcmask 1043456
      %v1889 = vsel %vm1887, %v1843, 0
      %v1892 = vsel %vm1887, %v1844, 0
      %v1895 = vsel %vm1887, %v1845, 0
      %v1898 = vsel %vm1887, %v1846, 0
      %v1901 = vsel %vm1887, %v1847, 0
      %v1904 = vsel %vm1887, %v1848, 0
      %v1907 = vsel %vm1887, %v1849, 0
      %v1910 = vsel %vm1887, %v1850, 0
      %1912 = vmatprep.subr.bf16.mxu0 %v1812
      %1913 = vmatpush1.bf16.msra.mxu0 %v1811
      %1914 = vmatprep.subr.bf16.mxu0 %v1820
      %1915 = vmatpush1.bf16.msra.mxu0 %v1819
      %1916 = vmatprep.subr.bf16.mxu0 %v1828
      %1917 = vmatpush1.bf16.msra.mxu0 %v1827
      %1918 = vmatprep.subr.bf16.mxu0 %v1836
      %1919 = vmatpush1.bf16.msra.mxu0 %v1835
      %1920 = vmatprep.subr.bf16.mxu0 %v1892
      %1921 = vmatpush1.bf16.msra.mxu0 %v1889
      %1922 = vmatprep.subr.bf16.mxu0 0
      %1923 = vmatpush1.bf16.msra.mxu0 0
      %1924 = vmatprep.subr.bf16.mxu0 0
      %1925 = vmatpush1.bf16.msra.mxu0 0
      %1926 = vmatprep.subr.bf16.mxu0 0
      %1927 = vmatpush1.bf16.msra.mxu0 0
      %1928 = vmatprep.subr.bf16.mxu0 0
      %1929 = vmatpush1.bf16.msra.mxu0 0
      %1930 = vmatprep.subr.bf16.mxu0 0
      %1931 = vmatpush1.bf16.msra.mxu0 0
      %1932 = vmatprep.subr.bf16.mxu0 0
      %1933 = vmatpush1.bf16.msra.mxu0 0
      %1934 = vmatprep.subr.bf16.mxu0 0
      %1935 = vmatpush1.bf16.msra.mxu0 0
      %1936 = vmatprep.subr.bf16.mxu0 0
      %1937 = vmatpush1.bf16.msra.mxu0 0
      %1938 = vmatprep.subr.bf16.mxu0 0
      %1939 = vmatpush1.bf16.msra.mxu0 0
      %1940 = vmatprep.subr.bf16.mxu0 0
      %1941 = vmatpush1.bf16.msra.mxu0 0
      %1942 = vmatprep.subr.bf16.mxu0 0
      %1943 = vmatpush1.bf16.msra.mxu0 0
      %1944 = vmatprep.mubr.bf16.mxu0 0
      %1945 = vmatmul.mubr.bf16.gmra.mrb[0].mxu0 %v1885
      %v1946 = vpop.f32.mrb[0].mxu0
      %v1947 = vadd.f32 %v1701, %v1946
      %v1948 = vpop.f32.mrb[0].mxu0
      %v1949 = vadd.f32 %v1701, %v1948
      %v1950 = vpop.f32.mrb[0].mxu0
      %v1951 = vpop.f32.mrb[0].mxu0
      %1952 = vdwg.mxu0
      %1953 = vmatprep.subr.bf16.mxu0 %v1814
      %1954 = vmatpush1.bf16.msra.mxu0 %v1813
      %1955 = vmatprep.subr.bf16.mxu0 %v1822
      %1956 = vmatpush1.bf16.msra.mxu0 %v1821
      %1957 = vmatprep.subr.bf16.mxu0 %v1830
      %1958 = vmatpush1.bf16.msra.mxu0 %v1829
      %1959 = vmatprep.subr.bf16.mxu0 %v1838
      %1960 = vmatpush1.bf16.msra.mxu0 %v1837
      %1961 = vmatprep.subr.bf16.mxu0 %v1898
      %1962 = vmatpush1.bf16.msra.mxu0 %v1895
      %1963 = vmatprep.subr.bf16.mxu0 0
      %1964 = vmatpush1.bf16.msra.mxu0 0
      %1965 = vmatprep.subr.bf16.mxu0 0
      %1966 = vmatpush1.bf16.msra.mxu0 0
      %1967 = vmatprep.subr.bf16.mxu0 0
      %1968 = vmatpush1.bf16.msra.mxu0 0
      %1969 = vmatprep.subr.bf16.mxu0 0
      %1970 = vmatpush1.bf16.msra.mxu0 0
      %1971 = vmatprep.subr.bf16.mxu0 0
      %1972 = vmatpush1.bf16.msra.mxu0 0
      %1973 = vmatprep.subr.bf16.mxu0 0
      %1974 = vmatpush1.bf16.msra.mxu0 0
      %1975 = vmatprep.subr.bf16.mxu0 0
      %1976 = vmatpush1.bf16.msra.mxu0 0
      %1977 = vmatprep.subr.bf16.mxu0 0
      %1978 = vmatpush1.bf16.msra.mxu0 0
      %1979 = vmatprep.subr.bf16.mxu0 0
      %1980 = vmatpush1.bf16.msra.mxu0 0
      %1981 = vmatprep.subr.bf16.mxu0 0
      %1982 = vmatpush1.bf16.msra.mxu0 0
      %1983 = vmatprep.subr.bf16.mxu0 0
      %1984 = vmatpush1.bf16.msra.mxu0 0
      %1985 = vmatprep.mubr.bf16.mxu0 0
      %1986 = vmatmul.mubr.bf16.gmra.mrb[0].mxu0 %v1885
      %v1987 = vpop.f32.mrb[0].mxu0
      %v1988 = vadd.f32 %v1701, %v1987
      %v1989 = vpop.f32.mrb[0].mxu0
      %v1990 = vadd.f32 %v1701, %v1989
      %v1991 = vpop.f32.mrb[0].mxu0
      %v1992 = vpop.f32.mrb[0].mxu0
      %1993 = vdwg.mxu0
      %1994 = vmatprep.subr.bf16.mxu0 %v1816
      %1995 = vmatpush1.bf16.msra.mxu0 %v1815
      %1996 = vmatprep.subr.bf16.mxu0 %v1824
      %1997 = vmatpush1.bf16.msra.mxu0 %v1823
      %1998 = vmatprep.subr.bf16.mxu0 %v1832
      %1999 = vmatpush1.bf16.msra.mxu0 %v1831
      %2000 = vmatprep.subr.bf16.mxu0 %v1840
      %2001 = vmatpush1.bf16.msra.mxu0 %v1839
      %2002 = vmatprep.subr.bf16.mxu0 %v1904
      %2003 = vmatpush1.bf16.msra.mxu0 %v1901
      %2004 = vmatprep.subr.bf16.mxu0 0
      %2005 = vmatpush1.bf16.msra.mxu0 0
      %2006 = vmatprep.subr.bf16.mxu0 0
      %2007 = vmatpush1.bf16.msra.mxu0 0
      %2008 = vmatprep.subr.bf16.mxu0 0
      %2009 = vmatpush1.bf16.msra.mxu0 0
      %2010 = vmatprep.subr.bf16.mxu0 0
      %2011 = vmatpush1.bf16.msra.mxu0 0
      %2012 = vmatprep.subr.bf16.mxu0 0
      %2013 = vmatpush1.bf16.msra.mxu0 0
      %2014 = vmatprep.subr.bf16.mxu0 0
      %2015 = vmatpush1.bf16.msra.mxu0 0
      %2016 = vmatprep.subr.bf16.mxu0 0
      %2017 = vmatpush1.bf16.msra.mxu0 0
      %2018 = vmatprep.subr.bf16.mxu0 0
      %2019 = vmatpush1.bf16.msra.mxu0 0
      %2020 = vmatprep.subr.bf16.mxu0 0
      %2021 = vmatpush1.bf16.msra.mxu0 0
      %2022 = vmatprep.subr.bf16.mxu0 0
      %2023 = vmatpush1.bf16.msra.mxu0 0
      %2024 = vmatprep.subr.bf16.mxu0 0
      %2025 = vmatpush1.bf16.msra.mxu0 0
      %2026 = vmatprep.mubr.bf16.mxu0 0
      %2027 = vmatmul.mubr.bf16.gmra.mrb[0].mxu0 %v1885
      %v2028 = vpop.f32.mrb[0].mxu0
      %v2029 = vadd.f32 %v1701, %v2028
      %v2030 = vpop.f32.mrb[0].mxu0
      %v2031 = vadd.f32 %v1701, %v2030
      %v2032 = vpop.f32.mrb[0].mxu0
      %v2033 = vpop.f32.mrb[0].mxu0
      %2034 = vdwg.mxu0
      %2035 = vmatprep.subr.bf16.mxu0 %v1818
      %2036 = vmatpush1.bf16.msra.mxu0 %v1817
      %2037 = vmatprep.subr.bf16.mxu0 %v1826
      %2038 = vmatpush1.bf16.msra.mxu0 %v1825
      %2039 = vmatprep.subr.bf16.mxu0 %v1834
      %2040 = vmatpush1.bf16.msra.mxu0 %v1833
      %2041 = vmatprep.subr.bf16.mxu0 %v1842
      %2042 = vmatpush1.bf16.msra.mxu0 %v1841
      %2043 = vmatprep.subr.bf16.mxu0 %v1910
      %2044 = vmatpush1.bf16.msra.mxu0 %v1907
      %2045 = vmatprep.subr.bf16.mxu0 0
      %2046 = vmatpush1.bf16.msra.mxu0 0
      %2047 = vmatprep.subr.bf16.mxu0 0
      %2048 = vmatpush1.bf16.msra.mxu0 0
      %2049 = vmatprep.subr.bf16.mxu0 0
      %2050 = vmatpush1.bf16.msra.mxu0 0
      %2051 = vmatprep.subr.bf16.mxu0 0
      %2052 = vmatpush1.bf16.msra.mxu0 0
      %2053 = vmatprep.subr.bf16.mxu0 0
      %2054 = vmatpush1.bf16.msra.mxu0 0
      %2055 = vmatprep.subr.bf16.mxu0 0
      %2056 = vmatpush1.bf16.msra.mxu0 0
      %2057 = vmatprep.subr.bf16.mxu0 0
      %2058 = vmatpush1.bf16.msra.mxu0 0
      %2059 = vmatprep.subr.bf16.mxu0 0
      %2060 = vmatpush1.bf16.msra.mxu0 0
      %2061 = vmatprep.subr.bf16.mxu0 0
      %2062 = vmatpush1.bf16.msra.mxu0 0
      %2063 = vmatprep.subr.bf16.mxu0 0
      %2064 = vmatpush1.bf16.msra.mxu0 0
      %2065 = vmatprep.subr.bf16.mxu0 0
      %2066 = vmatpush1.bf16.msra.mxu0 0
      %2067 = vmatprep.mubr.bf16.mxu0 0
      %2068 = vmatmul.mubr.bf16.gmra.mrb[0].mxu0 %v1885
      %v2069 = vpop.f32.mrb[0].mxu0
      %v2070 = vadd.f32 %v1701, %v2069
      %v2071 = vpop.f32.mrb[0].mxu0
      %v2072 = vadd.f32 %v1701, %v2071
      %v2073 = vpop.f32.mrb[0].mxu0
      %v2074 = vpop.f32.mrb[0].mxu0
      %2075 = vdwg.mxu0
      %vm2076 = vcmp.gt.f32.partialorder %v1947, 0.0
      %vm2077 = vcmp.gt.f32.partialorder %v1949, 0.0
      %vm2078 = vcmp.gt.f32.partialorder %v1988, 0.0
      %vm2079 = vcmp.gt.f32.partialorder %v1990, 0.0
      %vm2080 = vcmp.gt.f32.partialorder %v2029, 0.0
      %vm2081 = vcmp.gt.f32.partialorder %v2031, 0.0
      %vm2082 = vcmp.gt.f32.partialorder %v2070, 0.0
      %vm2083 = vcmp.gt.f32.partialorder %v2072, 0.0
      %v2084 = vmul.f32 %v1947, 0.01
      %v2085 = vmul.f32 %v1949, 0.01
      %v2086 = vmul.f32 %v1988, 0.01
      %v2087 = vmul.f32 %v1990, 0.01
      %v2088 = vmul.f32 %v2029, 0.01
      %v2089 = vmul.f32 %v2031, 0.01
      %v2090 = vmul.f32 %v2070, 0.01
      %v2091 = vmul.f32 %v2072, 0.01
      %v2092 = vsel %vm2076, %v1947, %v2084
      %v2093 = vsel %vm2077, %v1949, %v2085
      %v2094 = vsel %vm2078, %v1988, %v2086
      %v2095 = vsel %vm2079, %v1990, %v2087
      %v2096 = vsel %vm2080, %v2029, %v2088
      %v2097 = vsel %vm2081, %v2031, %v2089
      %v2098 = vsel %vm2082, %v2070, %v2090
      %v2099 = vsel %vm2083, %v2072, %v2091
      %v2100 = vld [vmem:[%s6] sm:$0xff]
      %2102 = vset.pattern.permute.xlu0 0
      %2103 = vperm.xlu0 %2102, %v2100
      %v2104 = vpop.permute.xlu0 %2103
      %v2106 = vadd.f32 %v2092, %v2104
      %v2107 = vadd.f32 %v2093, %v2104
      %v2108 = vadd.f32 %v2094, %v2104
      %v2109 = vadd.f32 %v2095, %v2104
      %v2110 = vadd.f32 %v2096, %v2104
      %v2111 = vadd.f32 %v2097, %v2104
      %v2112 = vadd.f32 %v2098, %v2104
      %v2113 = vadd.f32 %v2099, %v2104
      %v2114 = vpack.c.bf16 %v2106, %v2106
      %v2115 = vpack.c.bf16 %v2107, %v2107
      %v2116 = vpack.c.bf16 %v2108, %v2108
      %v2117 = vpack.c.bf16 %v2109, %v2109
      %v2118 = vpack.c.bf16 %v2110, %v2110
      %v2119 = vpack.c.bf16 %v2111, %v2111
      %v2120 = vpack.c.bf16 %v2112, %v2112
      %v2121 = vpack.c.bf16 %v2113, %v2113
      %v2130 = vunpack.c.l.b16 %v2114
      %v2131 = vunpack.c.l.b16 %v2115
      %v2132 = vunpack.c.l.b16 %v2116
      %v2133 = vunpack.c.l.b16 %v2117
      %v2134 = vunpack.c.l.b16 %v2118
      %v2135 = vunpack.c.l.b16 %v2119
      %v2136 = vunpack.c.l.b16 %v2120
      %v2137 = vunpack.c.l.b16 %v2121
      %v2138 = vpack.c.b16 %v2131, %v2130
      %v2139 = vpack.c.b16 %v2133, %v2132
      %v2140 = vpack.c.b16 %v2135, %v2134
      %v2141 = vpack.c.b16 %v2137, %v2136
      %2146 = vst [vmem:[#allocation2 + $0x80] sm:$0xff] %v2138
      %2147 = vst [vmem:[#allocation2 + $0x88] sm:$0xff] %v2139
      %2148 = vst [vmem:[#allocation2 + $0x90] sm:$0xff] %v2140
      %2149 = vst [vmem:[#allocation2 + $0x98] sm:$0xff] %v2141
      %s2150 = scalar_lea.vmem %s1, 64
      %v2151 = vld [vmem:[%s2150] ss:$8 sm:$0xf]
      %v2152 = vld [vmem:[%s2150] ss:$8 sm:$0xf0]
      %v2153 = vor.u32 %v2151, %v2152
      %2154 = vrot.lane.b32.xlu0 %v2106, 66
      %v2155 = vpop.permute.xlu0 %2154
      %2156 = vrot.lane.b32.xlu0 %v2107, 66
      %v2157 = vpop.permute.xlu0 %2156
      %2158 = vrot.lane.b32.xlu0 %v2108, 66
      %v2159 = vpop.permute.xlu0 %2158
      %2160 = vrot.lane.b32.xlu0 %v2109, 66
      %v2161 = vpop.permute.xlu0 %2160
      %2162 = vrot.lane.b32.xlu0 %v2110, 66
      %v2163 = vpop.permute.xlu0 %2162
      %2164 = vrot.lane.b32.xlu0 %v2111, 66
      %v2165 = vpop.permute.xlu0 %2164
      %2166 = vrot.lane.b32.xlu0 %v2112, 66
      %v2167 = vpop.permute.xlu0 %2166
      %2168 = vrot.lane.b32.xlu0 %v2113, 66
      %v2169 = vpop.permute.xlu0 %2168
      %vm2170 = vcmp.lt.s32.totalorder %v767, 66
      %v2171 = vsel %vm2170, %v2167, %v2169
      %v2172 = vsel %vm2170, %v2165, %v2167
      %v2173 = vsel %vm2170, %v2163, %v2165
      %v2174 = vsel %vm2170, %v2161, %v2163
      %v2175 = vsel %vm2170, %v2159, %v2161
      %v2176 = vsel %vm2170, %v2157, %v2159
      %v2177 = vsel %vm2170, %v2155, %v2157
      %v2178 = vsel %vm2170, %v2169, %v2155
      %v2180 = vlaneseq
      %v2181 = vshrl.u32 %v2180, 7
      %v2182 = vsub.s32 0, %v2181
      %v2183 = vrot.slane %v2153, %v2182
      %v2184 = vlaneseq
      %v2185 = vshrl.u32 %v2184, 7
      %v2186 = vsub.s32 1, %v2185
      %v2187 = vrot.slane %v2153, %v2186
      %v2188 = vlaneseq
      %v2189 = vshrl.u32 %v2188, 7
      %v2190 = vsub.s32 2, %v2189
      %v2191 = vrot.slane %v2153, %v2190
      %v2192 = vlaneseq
      %v2193 = vshrl.u32 %v2192, 7
      %v2194 = vsub.s32 3, %v2193
      %v2195 = vrot.slane %v2153, %v2194
      %v2196 = vlaneseq
      %v2197 = vshrl.u32 %v2196, 7
      %v2198 = vsub.s32 4, %v2197
      %v2199 = vrot.slane %v2153, %v2198
      %v2200 = vlaneseq
      %v2201 = vshrl.u32 %v2200, 7
      %v2202 = vsub.s32 5, %v2201
      %v2203 = vrot.slane %v2153, %v2202
      %v2204 = vlaneseq
      %v2205 = vshrl.u32 %v2204, 7
      %v2206 = vsub.s32 6, %v2205
      %v2207 = vrot.slane %v2153, %v2206
      %v2208 = vlaneseq
      %v2209 = vshrl.u32 %v2208, 7
      %v2210 = vsub.s32 7, %v2209
      %v2211 = vrot.slane %v2153, %v2210
      %v2220 = vmul.f32 %v2178, %v2183
      %v2221 = vmul.f32 %v2177, %v2187
      %v2222 = vmul.f32 %v2176, %v2191
      %v2223 = vmul.f32 %v2175, %v2195
      %v2224 = vmul.f32 %v2174, %v2199
      %v2225 = vmul.f32 %v2173, %v2203
      %v2226 = vmul.f32 %v2172, %v2207
      %v2227 = vmul.f32 %v2171, %v2211
      %v2228 = vpack.c.bf16 %v2220, %v2220
      %v2229 = vpack.c.bf16 %v2221, %v2221
      %v2230 = vpack.c.bf16 %v2222, %v2222
      %v2231 = vpack.c.bf16 %v2223, %v2223
      %v2232 = vpack.c.bf16 %v2224, %v2224
      %v2233 = vpack.c.bf16 %v2225, %v2225
      %v2234 = vpack.c.bf16 %v2226, %v2226
      %v2235 = vpack.c.bf16 %v2227, %v2227
      %v2244 = vunpack.c.l.b16 %v2228
      %v2245 = vunpack.c.l.b16 %v2229
      %v2246 = vunpack.c.l.b16 %v2230
      %v2247 = vunpack.c.l.b16 %v2231
      %v2248 = vunpack.c.l.b16 %v2232
      %v2249 = vunpack.c.l.b16 %v2233
      %v2250 = vunpack.c.l.b16 %v2234
      %v2251 = vunpack.c.l.b16 %v2235
      %v2252 = vpack.c.b16 %v2245, %v2244
      %v2253 = vpack.c.b16 %v2247, %v2246
      %v2254 = vpack.c.b16 %v2249, %v2248
      %v2255 = vpack.c.b16 %v2251, %v2250
      %2260 = vst [vmem:[#allocation2] sm:$0xff] %v2252
      %2261 = vst [vmem:[#allocation2 + $0x8] sm:$0xff] %v2253
      %2262 = vst [vmem:[#allocation2 + $0x10] sm:$0xff] %v2254
      %2263 = vst [vmem:[#allocation2 + $0x18] sm:$0xff] %v2255
      %s2264 = scalar_lea.vmem %s1, 65
      %v2265 = vld [vmem:[%s2264] ss:$8 sm:$0xf]
      %v2266 = vld [vmem:[%s2264] ss:$8 sm:$0xf0]
      %v2267 = vor.u32 %v2265, %v2266
      %2268 = vrot.lane.b32.xlu0 %v2106, 64
      %v2269 = vpop.permute.xlu0 %2268
      %2270 = vrot.lane.b32.xlu0 %v2107, 64
      %v2271 = vpop.permute.xlu0 %2270
      %2272 = vrot.lane.b32.xlu0 %v2108, 64
      %v2273 = vpop.permute.xlu0 %2272
      %2274 = vrot.lane.b32.xlu0 %v2109, 64
      %v2275 = vpop.permute.xlu0 %2274
      %2276 = vrot.lane.b32.xlu0 %v2110, 64
      %v2277 = vpop.permute.xlu0 %2276
      %2278 = vrot.lane.b32.xlu0 %v2111, 64
      %v2279 = vpop.permute.xlu0 %2278
      %2280 = vrot.lane.b32.xlu0 %v2112, 64
      %v2281 = vpop.permute.xlu0 %2280
      %2282 = vrot.lane.b32.xlu0 %v2113, 64
      %v2283 = vpop.permute.xlu0 %2282
      %vm2284 = vcmp.lt.s32.totalorder %v767, 64
      %v2285 = vsel %vm2284, %v2281, %v2283
      %v2286 = vsel %vm2284, %v2279, %v2281
      %v2287 = vsel %vm2284, %v2277, %v2279
      %v2288 = vsel %vm2284, %v2275, %v2277
      %v2289 = vsel %vm2284, %v2273, %v2275
      %v2290 = vsel %vm2284, %v2271, %v2273
      %v2291 = vsel %vm2284, %v2269, %v2271
      %v2292 = vsel %vm2284, %v2283, %v2269
      %v2294 = vlaneseq
      %v2295 = vshrl.u32 %v2294, 7
      %v2296 = vsub.s32 0, %v2295
      %v2297 = vrot.slane %v2267, %v2296
      %v2298 = vlaneseq
      %v2299 = vshrl.u32 %v2298, 7
      %v2300 = vsub.s32 1, %v2299
      %v2301 = vrot.slane %v2267, %v2300
      %v2302 = vlaneseq
      %v2303 = vshrl.u32 %v2302, 7
      %v2304 = vsub.s32 2, %v2303
      %v2305 = vrot.slane %v2267, %v2304
      %v2306 = vlaneseq
      %v2307 = vshrl.u32 %v2306, 7
      %v2308 = vsub.s32 3, %v2307
      %v2309 = vrot.slane %v2267, %v2308
      %v2310 = vlaneseq
      %v2311 = vshrl.u32 %v2310, 7
      %v2312 = vsub.s32 4, %v2311
      %v2313 = vrot.slane %v2267, %v2312
      %v2314 = vlaneseq
      %v2315 = vshrl.u32 %v2314, 7
      %v2316 = vsub.s32 5, %v2315
      %v2317 = vrot.slane %v2267, %v2316
      %v2318 = vlaneseq
      %v2319 = vshrl.u32 %v2318, 7
      %v2320 = vsub.s32 6, %v2319
      %v2321 = vrot.slane %v2267, %v2320
      %v2322 = vlaneseq
      %v2323 = vshrl.u32 %v2322, 7
      %v2324 = vsub.s32 7, %v2323
      %v2325 = vrot.slane %v2267, %v2324
      %v2334 = vmul.f32 %v2292, %v2297
      %v2335 = vmul.f32 %v2291, %v2301
      %v2336 = vmul.f32 %v2290, %v2305
      %v2337 = vmul.f32 %v2289, %v2309
      %v2338 = vmul.f32 %v2288, %v2313
      %v2339 = vmul.f32 %v2287, %v2317
      %v2340 = vmul.f32 %v2286, %v2321
      %v2341 = vmul.f32 %v2285, %v2325
      %v2342 = vpack.c.bf16 %v2334, %v2334
      %v2343 = vpack.c.bf16 %v2335, %v2335
      %v2344 = vpack.c.bf16 %v2336, %v2336
      %v2345 = vpack.c.bf16 %v2337, %v2337
      %v2346 = vpack.c.bf16 %v2338, %v2338
      %v2347 = vpack.c.bf16 %v2339, %v2339
      %v2348 = vpack.c.bf16 %v2340, %v2340
      %v2349 = vpack.c.bf16 %v2341, %v2341
      %v2358 = vunpack.c.l.b16 %v2342
      %v2359 = vunpack.c.l.b16 %v2343
      %v2360 = vunpack.c.l.b16 %v2344
      %v2361 = vunpack.c.l.b16 %v2345
      %v2362 = vunpack.c.l.b16 %v2346
      %v2363 = vunpack.c.l.b16 %v2347
      %v2364 = vunpack.c.l.b16 %v2348
      %v2365 = vunpack.c.l.b16 %v2349
      %v2366 = vpack.c.b16 %v2359, %v2358
      %v2367 = vpack.c.b16 %v2361, %v2360
      %v2368 = vpack.c.b16 %v2363, %v2362
      %v2369 = vpack.c.b16 %v2365, %v2364
      %2374 = vst [vmem:[#allocation2 + $0x20] sm:$0xff] %v2366
      %2375 = vst [vmem:[#allocation2 + $0x28] sm:$0xff] %v2367
      %2376 = vst [vmem:[#allocation2 + $0x30] sm:$0xff] %v2368
      %2377 = vst [vmem:[#allocation2 + $0x38] sm:$0xff] %v2369
      %s2378 = scalar_lea.vmem %s1, 66
      %v2379 = vld [vmem:[%s2378] ss:$8 sm:$0xf]
      %v2380 = vld [vmem:[%s2378] ss:$8 sm:$0xf0]
      %v2381 = vor.u32 %v2379, %v2380
      %2382 = vrot.lane.b32.xlu0 %v2106, 62
      %v2383 = vpop.permute.xlu0 %2382
      %2384 = vrot.lane.b32.xlu0 %v2107, 62
      %v2385 = vpop.permute.xlu0 %2384
      %2386 = vrot.lane.b32.xlu0 %v2108, 62
      %v2387 = vpop.permute.xlu0 %2386
      %2388 = vrot.lane.b32.xlu0 %v2109, 62
      %v2389 = vpop.permute.xlu0 %2388
      %2390 = vrot.lane.b32.xlu0 %v2110, 62
      %v2391 = vpop.permute.xlu0 %2390
      %2392 = vrot.lane.b32.xlu0 %v2111, 62
      %v2393 = vpop.permute.xlu0 %2392
      %2394 = vrot.lane.b32.xlu0 %v2112, 62
      %v2395 = vpop.permute.xlu0 %2394
      %2396 = vrot.lane.b32.xlu0 %v2113, 62
      %v2397 = vpop.permute.xlu0 %2396
      %vm2398 = vcmp.lt.s32.totalorder %v767, 62
      %v2399 = vsel %vm2398, %v2395, %v2397
      %v2400 = vsel %vm2398, %v2393, %v2395
      %v2401 = vsel %vm2398, %v2391, %v2393
      %v2402 = vsel %vm2398, %v2389, %v2391
      %v2403 = vsel %vm2398, %v2387, %v2389
      %v2404 = vsel %vm2398, %v2385, %v2387
      %v2405 = vsel %vm2398, %v2383, %v2385
      %v2406 = vsel %vm2398, %v2397, %v2383
      %v2408 = vlaneseq
      %v2409 = vshrl.u32 %v2408, 7
      %v2410 = vsub.s32 0, %v2409
      %v2411 = vrot.slane %v2381, %v2410
      %v2412 = vlaneseq
      %v2413 = vshrl.u32 %v2412, 7
      %v2414 = vsub.s32 1, %v2413
      %v2415 = vrot.slane %v2381, %v2414
      %v2416 = vlaneseq
      %v2417 = vshrl.u32 %v2416, 7
      %v2418 = vsub.s32 2, %v2417
      %v2419 = vrot.slane %v2381, %v2418
      %v2420 = vlaneseq
      %v2421 = vshrl.u32 %v2420, 7
      %v2422 = vsub.s32 3, %v2421
      %v2423 = vrot.slane %v2381, %v2422
      %v2424 = vlaneseq
      %v2425 = vshrl.u32 %v2424, 7
      %v2426 = vsub.s32 4, %v2425
      %v2427 = vrot.slane %v2381, %v2426
      %v2428 = vlaneseq
      %v2429 = vshrl.u32 %v2428, 7
      %v2430 = vsub.s32 5, %v2429
      %v2431 = vrot.slane %v2381, %v2430
      %v2432 = vlaneseq
      %v2433 = vshrl.u32 %v2432, 7
      %v2434 = vsub.s32 6, %v2433
      %v2435 = vrot.slane %v2381, %v2434
      %v2436 = vlaneseq
      %v2437 = vshrl.u32 %v2436, 7
      %v2438 = vsub.s32 7, %v2437
      %v2439 = vrot.slane %v2381, %v2438
      %v2448 = vmul.f32 %v2406, %v2411
      %v2449 = vmul.f32 %v2405, %v2415
      %v2450 = vmul.f32 %v2404, %v2419
      %v2451 = vmul.f32 %v2403, %v2423
      %v2452 = vmul.f32 %v2402, %v2427
      %v2453 = vmul.f32 %v2401, %v2431
      %v2454 = vmul.f32 %v2400, %v2435
      %v2455 = vmul.f32 %v2399, %v2439
      %v2456 = vpack.c.bf16 %v2448, %v2448
      %v2457 = vpack.c.bf16 %v2449, %v2449
      %v2458 = vpack.c.bf16 %v2450, %v2450
      %v2459 = vpack.c.bf16 %v2451, %v2451
      %v2460 = vpack.c.bf16 %v2452, %v2452
      %v2461 = vpack.c.bf16 %v2453, %v2453
      %v2462 = vpack.c.bf16 %v2454, %v2454
      %v2463 = vpack.c.bf16 %v2455, %v2455
      %v2472 = vunpack.c.l.b16 %v2456
      %v2473 = vunpack.c.l.b16 %v2457
      %v2474 = vunpack.c.l.b16 %v2458
      %v2475 = vunpack.c.l.b16 %v2459
      %v2476 = vunpack.c.l.b16 %v2460
      %v2477 = vunpack.c.l.b16 %v2461
      %v2478 = vunpack.c.l.b16 %v2462
      %v2479 = vunpack.c.l.b16 %v2463
      %v2480 = vpack.c.b16 %v2473, %v2472
      %v2481 = vpack.c.b16 %v2475, %v2474
      %v2482 = vpack.c.b16 %v2477, %v2476
      %v2483 = vpack.c.b16 %v2479, %v2478
      %2488 = vst [vmem:[#allocation2 + $0x40] sm:$0xff] %v2480
      %2489 = vst [vmem:[#allocation2 + $0x48] sm:$0xff] %v2481
      %2490 = vst [vmem:[#allocation2 + $0x50] sm:$0xff] %v2482
      %2491 = vst [vmem:[#allocation2 + $0x58] sm:$0xff] %v2483
      %s2492 = scalar_lea.vmem %s1, 67
      %v2493 = vld [vmem:[%s2492] ss:$8 sm:$0xf]
      %v2494 = vld [vmem:[%s2492] ss:$8 sm:$0xf0]
      %v2495 = vor.u32 %v2493, %v2494
      %2496 = vrot.lane.b32.xlu0 %v2106, 2
      %v2497 = vpop.permute.xlu0 %2496
      %2498 = vrot.lane.b32.xlu0 %v2107, 2
      %v2499 = vpop.permute.xlu0 %2498
      %2500 = vrot.lane.b32.xlu0 %v2108, 2
      %v2501 = vpop.permute.xlu0 %2500
      %2502 = vrot.lane.b32.xlu0 %v2109, 2
      %v2503 = vpop.permute.xlu0 %2502
      %2504 = vrot.lane.b32.xlu0 %v2110, 2
      %v2505 = vpop.permute.xlu0 %2504
      %2506 = vrot.lane.b32.xlu0 %v2111, 2
      %v2507 = vpop.permute.xlu0 %2506
      %2508 = vrot.lane.b32.xlu0 %v2112, 2
      %v2509 = vpop.permute.xlu0 %2508
      %2510 = vrot.lane.b32.xlu0 %v2113, 2
      %v2511 = vpop.permute.xlu0 %2510
      %vm2512 = vcmp.lt.s32.totalorder %v767, 2
      %v2513 = vsel %vm2512, %v2509, %v2511
      %v2514 = vsel %vm2512, %v2507, %v2509
      %v2515 = vsel %vm2512, %v2505, %v2507
      %v2516 = vsel %vm2512, %v2503, %v2505
      %v2517 = vsel %vm2512, %v2501, %v2503
      %v2518 = vsel %vm2512, %v2499, %v2501
      %v2519 = vsel %vm2512, %v2497, %v2499
      %v2520 = vsel %vm2512, %v2511, %v2497
      %v2522 = vlaneseq
      %v2523 = vshrl.u32 %v2522, 7
      %v2524 = vsub.s32 0, %v2523
      %v2525 = vrot.slane %v2495, %v2524
      %v2526 = vlaneseq
      %v2527 = vshrl.u32 %v2526, 7
      %v2528 = vsub.s32 1, %v2527
      %v2529 = vrot.slane %v2495, %v2528
      %v2530 = vlaneseq
      %v2531 = vshrl.u32 %v2530, 7
      %v2532 = vsub.s32 2, %v2531
      %v2533 = vrot.slane %v2495, %v2532
      %v2534 = vlaneseq
      %v2535 = vshrl.u32 %v2534, 7
      %v2536 = vsub.s32 3, %v2535
      %v2537 = vrot.slane %v2495, %v2536
      %v2538 = vlaneseq
      %v2539 = vshrl.u32 %v2538, 7
      %v2540 = vsub.s32 4, %v2539
      %v2541 = vrot.slane %v2495, %v2540
      %v2542 = vlaneseq
      %v2543 = vshrl.u32 %v2542, 7
      %v2544 = vsub.s32 5, %v2543
      %v2545 = vrot.slane %v2495, %v2544
      %v2546 = vlaneseq
      %v2547 = vshrl.u32 %v2546, 7
      %v2548 = vsub.s32 6, %v2547
      %v2549 = vrot.slane %v2495, %v2548
      %v2550 = vlaneseq
      %v2551 = vshrl.u32 %v2550, 7
      %v2552 = vsub.s32 7, %v2551
      %v2553 = vrot.slane %v2495, %v2552
      %v2562 = vmul.f32 %v2520, %v2525
      %v2563 = vmul.f32 %v2519, %v2529
      %v2564 = vmul.f32 %v2518, %v2533
      %v2565 = vmul.f32 %v2517, %v2537
      %v2566 = vmul.f32 %v2516, %v2541
      %v2567 = vmul.f32 %v2515, %v2545
      %v2568 = vmul.f32 %v2514, %v2549
      %v2569 = vmul.f32 %v2513, %v2553
      %v2570 = vpack.c.bf16 %v2562, %v2562
      %v2571 = vpack.c.bf16 %v2563, %v2563
      %v2572 = vpack.c.bf16 %v2564, %v2564
      %v2573 = vpack.c.bf16 %v2565, %v2565
      %v2574 = vpack.c.bf16 %v2566, %v2566
      %v2575 = vpack.c.bf16 %v2567, %v2567
      %v2576 = vpack.c.bf16 %v2568, %v2568
      %v2577 = vpack.c.bf16 %v2569, %v2569
      %v2586 = vunpack.c.l.b16 %v2570
      %v2587 = vunpack.c.l.b16 %v2571
      %v2588 = vunpack.c.l.b16 %v2572
      %v2589 = vunpack.c.l.b16 %v2573
      %v2590 = vunpack.c.l.b16 %v2574
      %v2591 = vunpack.c.l.b16 %v2575
      %v2592 = vunpack.c.l.b16 %v2576
      %v2593 = vunpack.c.l.b16 %v2577
      %v2594 = vpack.c.b16 %v2587, %v2586
      %v2595 = vpack.c.b16 %v2589, %v2588
      %v2596 = vpack.c.b16 %v2591, %v2590
      %v2597 = vpack.c.b16 %v2593, %v2592
      %2602 = vst [vmem:[#allocation2 + $0x60] sm:$0xff] %v2594
      %2603 = vst [vmem:[#allocation2 + $0x68] sm:$0xff] %v2595
      %2604 = vst [vmem:[#allocation2 + $0x70] sm:$0xff] %v2596
      %2605 = vst [vmem:[#allocation2 + $0x78] sm:$0xff] %v2597
      %s2606 = scalar_lea.vmem %s1, 68
      %v2607 = vld [vmem:[%s2606] ss:$8 sm:$0xf]
      %v2608 = vld [vmem:[%s2606] ss:$8 sm:$0xf0]
      %v2609 = vor.u32 %v2607, %v2608
      %2610 = vrot.lane.b32.xlu0 %v2106, 126
      %v2611 = vpop.permute.xlu0 %2610
      %2612 = vrot.lane.b32.xlu0 %v2107, 126
      %v2613 = vpop.permute.xlu0 %2612
      %2614 = vrot.lane.b32.xlu0 %v2108, 126
      %v2615 = vpop.permute.xlu0 %2614
      %2616 = vrot.lane.b32.xlu0 %v2109, 126
      %v2617 = vpop.permute.xlu0 %2616
      %2618 = vrot.lane.b32.xlu0 %v2110, 126
      %v2619 = vpop.permute.xlu0 %2618
      %2620 = vrot.lane.b32.xlu0 %v2111, 126
      %v2621 = vpop.permute.xlu0 %2620
      %2622 = vrot.lane.b32.xlu0 %v2112, 126
      %v2623 = vpop.permute.xlu0 %2622
      %2624 = vrot.lane.b32.xlu0 %v2113, 126
      %v2625 = vpop.permute.xlu0 %2624
      %vm2626 = vcmp.lt.s32.totalorder %v767, 126
      %v2627 = vsel %vm2626, %v2623, %v2625
      %v2628 = vsel %vm2626, %v2621, %v2623
      %v2629 = vsel %vm2626, %v2619, %v2621
      %v2630 = vsel %vm2626, %v2617, %v2619
      %v2631 = vsel %vm2626, %v2615, %v2617
      %v2632 = vsel %vm2626, %v2613, %v2615
      %v2633 = vsel %vm2626, %v2611, %v2613
      %v2634 = vsel %vm2626, %v2625, %v2611
      %v2636 = vlaneseq
      %v2637 = vshrl.u32 %v2636, 7
      %v2638 = vsub.s32 0, %v2637
      %v2639 = vrot.slane %v2609, %v2638
      %v2640 = vlaneseq
      %v2641 = vshrl.u32 %v2640, 7
      %v2642 = vsub.s32 1, %v2641
      %v2643 = vrot.slane %v2609, %v2642
      %v2644 = vlaneseq
      %v2645 = vshrl.u32 %v2644, 7
      %v2646 = vsub.s32 2, %v2645
      %v2647 = vrot.slane %v2609, %v2646
      %v2648 = vlaneseq
      %v2649 = vshrl.u32 %v2648, 7
      %v2650 = vsub.s32 3, %v2649
      %v2651 = vrot.slane %v2609, %v2650
      %v2652 = vlaneseq
      %v2653 = vshrl.u32 %v2652, 7
      %v2654 = vsub.s32 4, %v2653
      %v2655 = vrot.slane %v2609, %v2654
      %v2656 = vlaneseq
      %v2657 = vshrl.u32 %v2656, 7
      %v2658 = vsub.s32 5, %v2657
      %v2659 = vrot.slane %v2609, %v2658
      %v2660 = vlaneseq
      %v2661 = vshrl.u32 %v2660, 7
      %v2662 = vsub.s32 6, %v2661
      %v2663 = vrot.slane %v2609, %v2662
      %v2664 = vlaneseq
      %v2665 = vshrl.u32 %v2664, 7
      %v2666 = vsub.s32 7, %v2665
      %v2667 = vrot.slane %v2609, %v2666
      %v2676 = vmul.f32 %v2633, %v2639
      %v2677 = vmul.f32 %v2632, %v2643
      %v2678 = vmul.f32 %v2631, %v2647
      %v2679 = vmul.f32 %v2630, %v2651
      %v2680 = vmul.f32 %v2629, %v2655
      %v2681 = vmul.f32 %v2628, %v2659
      %v2682 = vmul.f32 %v2627, %v2663
      %v2683 = vmul.f32 %v2634, %v2667
      %v2684 = vpack.c.bf16 %v2676, %v2676
      %v2685 = vpack.c.bf16 %v2677, %v2677
      %v2686 = vpack.c.bf16 %v2678, %v2678
      %v2687 = vpack.c.bf16 %v2679, %v2679
      %v2688 = vpack.c.bf16 %v2680, %v2680
      %v2689 = vpack.c.bf16 %v2681, %v2681
      %v2690 = vpack.c.bf16 %v2682, %v2682
      %v2691 = vpack.c.bf16 %v2683, %v2683
      %v2700 = vunpack.c.l.b16 %v2684
      %v2701 = vunpack.c.l.b16 %v2685
      %v2702 = vunpack.c.l.b16 %v2686
      %v2703 = vunpack.c.l.b16 %v2687
      %v2704 = vunpack.c.l.b16 %v2688
      %v2705 = vunpack.c.l.b16 %v2689
      %v2706 = vunpack.c.l.b16 %v2690
      %v2707 = vunpack.c.l.b16 %v2691
      %v2708 = vpack.c.b16 %v2701, %v2700
      %v2709 = vpack.c.b16 %v2703, %v2702
      %v2710 = vpack.c.b16 %v2705, %v2704
      %v2711 = vpack.c.b16 %v2707, %v2706
      %2716 = vst [vmem:[#allocation2 + $0xa0] sm:$0xff] %v2708
      %2717 = vst [vmem:[#allocation2 + $0xa8] sm:$0xff] %v2709
      %2718 = vst [vmem:[#allocation2 + $0xb0] sm:$0xff] %v2710
      %2719 = vst [vmem:[#allocation2 + $0xb8] sm:$0xff] %v2711
      %s2720 = scalar_lea.vmem %s1, 69
      %v2721 = vld [vmem:[%s2720] ss:$8 sm:$0xf]
      %v2722 = vld [vmem:[%s2720] ss:$8 sm:$0xf0]
      %v2723 = vor.u32 %v2721, %v2722
      %v2725 = vlaneseq
      %v2726 = vshrl.u32 %v2725, 7
      %v2727 = vsub.s32 0, %v2726
      %v2728 = vrot.slane %v2723, %v2727
      %v2729 = vlaneseq
      %v2730 = vshrl.u32 %v2729, 7
      %v2731 = vsub.s32 1, %v2730
      %v2732 = vrot.slane %v2723, %v2731
      %v2733 = vlaneseq
      %v2734 = vshrl.u32 %v2733, 7
      %v2735 = vsub.s32 2, %v2734
      %v2736 = vrot.slane %v2723, %v2735
      %v2737 = vlaneseq
      %v2738 = vshrl.u32 %v2737, 7
      %v2739 = vsub.s32 3, %v2738
      %v2740 = vrot.slane %v2723, %v2739
      %v2741 = vlaneseq
      %v2742 = vshrl.u32 %v2741, 7
      %v2743 = vsub.s32 4, %v2742
      %v2744 = vrot.slane %v2723, %v2743
      %v2745 = vlaneseq
      %v2746 = vshrl.u32 %v2745, 7
      %v2747 = vsub.s32 5, %v2746
      %v2748 = vrot.slane %v2723, %v2747
      %v2749 = vlaneseq
      %v2750 = vshrl.u32 %v2749, 7
      %v2751 = vsub.s32 6, %v2750
      %v2752 = vrot.slane %v2723, %v2751
      %v2753 = vlaneseq
      %v2754 = vshrl.u32 %v2753, 7
      %v2755 = vsub.s32 7, %v2754
      %v2756 = vrot.slane %v2723, %v2755
      %v2765 = vmul.f32 %v2177, %v2728
      %v2766 = vmul.f32 %v2176, %v2732
      %v2767 = vmul.f32 %v2175, %v2736
      %v2768 = vmul.f32 %v2174, %v2740
      %v2769 = vmul.f32 %v2173, %v2744
      %v2770 = vmul.f32 %v2172, %v2748
      %v2771 = vmul.f32 %v2171, %v2752
      %v2772 = vmul.f32 %v2178, %v2756
      %v2773 = vpack.c.bf16 %v2765, %v2765
      %v2774 = vpack.c.bf16 %v2766, %v2766
      %v2775 = vpack.c.bf16 %v2767, %v2767
      %v2776 = vpack.c.bf16 %v2768, %v2768
      %v2777 = vpack.c.bf16 %v2769, %v2769
      %v2778 = vpack.c.bf16 %v2770, %v2770
      %v2779 = vpack.c.bf16 %v2771, %v2771
      %v2780 = vpack.c.bf16 %v2772, %v2772
      %v2789 = vunpack.c.l.b16 %v2773
      %v2790 = vunpack.c.l.b16 %v2774
      %v2791 = vunpack.c.l.b16 %v2775
      %v2792 = vunpack.c.l.b16 %v2776
      %v2793 = vunpack.c.l.b16 %v2777
      %v2794 = vunpack.c.l.b16 %v2778
      %v2795 = vunpack.c.l.b16 %v2779
      %v2796 = vunpack.c.l.b16 %v2780
      %v2797 = vpack.c.b16 %v2790, %v2789
      %v2798 = vpack.c.b16 %v2792, %v2791
      %v2799 = vpack.c.b16 %v2794, %v2793
      %v2800 = vpack.c.b16 %v2796, %v2795
      %2805 = vst [vmem:[#allocation2 + $0xc0] sm:$0xff] %v2797
      %2806 = vst [vmem:[#allocation2 + $0xc8] sm:$0xff] %v2798
      %2807 = vst [vmem:[#allocation2 + $0xd0] sm:$0xff] %v2799
      %2808 = vst [vmem:[#allocation2 + $0xd8] sm:$0xff] %v2800
      %s2809 = scalar_lea.vmem %s1, 70
      %v2810 = vld [vmem:[%s2809] ss:$8 sm:$0xf]
      %v2811 = vld [vmem:[%s2809] ss:$8 sm:$0xf0]
      %v2812 = vor.u32 %v2810, %v2811
      %v2814 = vlaneseq
      %v2815 = vshrl.u32 %v2814, 7
      %v2816 = vsub.s32 0, %v2815
      %v2817 = vrot.slane %v2812, %v2816
      %v2818 = vlaneseq
      %v2819 = vshrl.u32 %v2818, 7
      %v2820 = vsub.s32 1, %v2819
      %v2821 = vrot.slane %v2812, %v2820
      %v2822 = vlaneseq
      %v2823 = vshrl.u32 %v2822, 7
      %v2824 = vsub.s32 2, %v2823
      %v2825 = vrot.slane %v2812, %v2824
      %v2826 = vlaneseq
      %v2827 = vshrl.u32 %v2826, 7
      %v2828 = vsub.s32 3, %v2827
      %v2829 = vrot.slane %v2812, %v2828
      %v2830 = vlaneseq
      %v2831 = vshrl.u32 %v2830, 7
      %v2832 = vsub.s32 4, %v2831
      %v2833 = vrot.slane %v2812, %v2832
      %v2834 = vlaneseq
      %v2835 = vshrl.u32 %v2834, 7
      %v2836 = vsub.s32 5, %v2835
      %v2837 = vrot.slane %v2812, %v2836
      %v2838 = vlaneseq
      %v2839 = vshrl.u32 %v2838, 7
      %v2840 = vsub.s32 6, %v2839
      %v2841 = vrot.slane %v2812, %v2840
      %v2842 = vlaneseq
      %v2843 = vshrl.u32 %v2842, 7
      %v2844 = vsub.s32 7, %v2843
      %v2845 = vrot.slane %v2812, %v2844
      %v2854 = vmul.f32 %v2291, %v2817
      %v2855 = vmul.f32 %v2290, %v2821
      %v2856 = vmul.f32 %v2289, %v2825
      %v2857 = vmul.f32 %v2288, %v2829
      %v2858 = vmul.f32 %v2287, %v2833
      %v2859 = vmul.f32 %v2286, %v2837
      %v2860 = vmul.f32 %v2285, %v2841
      %v2861 = vmul.f32 %v2292, %v2845
      %v2862 = vpack.c.bf16 %v2854, %v2854
      %v2863 = vpack.c.bf16 %v2855, %v2855
      %v2864 = vpack.c.bf16 %v2856, %v2856
      %v2865 = vpack.c.bf16 %v2857, %v2857
      %v2866 = vpack.c.bf16 %v2858, %v2858
      %v2867 = vpack.c.bf16 %v2859, %v2859
      %v2868 = vpack.c.bf16 %v2860, %v2860
      %v2869 = vpack.c.bf16 %v2861, %v2861
      %v2878 = vunpack.c.l.b16 %v2862
      %v2879 = vunpack.c.l.b16 %v2863
      %v2880 = vunpack.c.l.b16 %v2864
      %v2881 = vunpack.c.l.b16 %v2865
      %v2882 = vunpack.c.l.b16 %v2866
      %v2883 = vunpack.c.l.b16 %v2867
      %v2884 = vunpack.c.l.b16 %v2868
      %v2885 = vunpack.c.l.b16 %v2869
      %v2886 = vpack.c.b16 %v2879, %v2878
      %v2887 = vpack.c.b16 %v2881, %v2880
      %v2888 = vpack.c.b16 %v2883, %v2882
      %v2889 = vpack.c.b16 %v2885, %v2884
      %2894 = vst [vmem:[#allocation2 + $0xe0] sm:$0xff] %v2886
      %2895 = vst [vmem:[#allocation2 + $0xe8] sm:$0xff] %v2887
      %2896 = vst [vmem:[#allocation2 + $0xf0] sm:$0xff] %v2888
      %2897 = vst [vmem:[#allocation2 + $0xf8] sm:$0xff] %v2889
      %s2898 = scalar_lea.vmem %s1, 71
      %v2899 = vld [vmem:[%s2898] ss:$8 sm:$0xf]
      %v2900 = vld [vmem:[%s2898] ss:$8 sm:$0xf0]
      %v2901 = vor.u32 %v2899, %v2900
      %v2903 = vlaneseq
      %v2904 = vshrl.u32 %v2903, 7
      %v2905 = vsub.s32 0, %v2904
      %v2906 = vrot.slane %v2901, %v2905
      %v2907 = vlaneseq
      %v2908 = vshrl.u32 %v2907, 7
      %v2909 = vsub.s32 1, %v2908
      %v2910 = vrot.slane %v2901, %v2909
      %v2911 = vlaneseq
      %v2912 = vshrl.u32 %v2911, 7
      %v2913 = vsub.s32 2, %v2912
      %v2914 = vrot.slane %v2901, %v2913
      %v2915 = vlaneseq
      %v2916 = vshrl.u32 %v2915, 7
      %v2917 = vsub.s32 3, %v2916
      %v2918 = vrot.slane %v2901, %v2917
      %v2919 = vlaneseq
      %v2920 = vshrl.u32 %v2919, 7
      %v2921 = vsub.s32 4, %v2920
      %v2922 = vrot.slane %v2901, %v2921
      %v2923 = vlaneseq
      %v2924 = vshrl.u32 %v2923, 7
      %v2925 = vsub.s32 5, %v2924
      %v2926 = vrot.slane %v2901, %v2925
      %v2927 = vlaneseq
      %v2928 = vshrl.u32 %v2927, 7
      %v2929 = vsub.s32 6, %v2928
      %v2930 = vrot.slane %v2901, %v2929
      %v2931 = vlaneseq
      %v2932 = vshrl.u32 %v2931, 7
      %v2933 = vsub.s32 7, %v2932
      %v2934 = vrot.slane %v2901, %v2933
      %v2943 = vmul.f32 %v2405, %v2906
      %v2944 = vmul.f32 %v2404, %v2910
      %v2945 = vmul.f32 %v2403, %v2914
      %v2946 = vmul.f32 %v2402, %v2918
      %v2947 = vmul.f32 %v2401, %v2922
      %v2948 = vmul.f32 %v2400, %v2926
      %v2949 = vmul.f32 %v2399, %v2930
      %v2950 = vmul.f32 %v2406, %v2934
      %v2951 = vpack.c.bf16 %v2943, %v2943
      %v2952 = vpack.c.bf16 %v2944, %v2944
      %v2953 = vpack.c.bf16 %v2945, %v2945
      %v2954 = vpack.c.bf16 %v2946, %v2946
      %v2955 = vpack.c.bf16 %v2947, %v2947
      %v2956 = vpack.c.bf16 %v2948, %v2948
      %v2957 = vpack.c.bf16 %v2949, %v2949
      %v2958 = vpack.c.bf16 %v2950, %v2950
      %v2967 = vunpack.c.l.b16 %v2951
      %v2968 = vunpack.c.l.b16 %v2952
      %v2969 = vunpack.c.l.b16 %v2953
      %v2970 = vunpack.c.l.b16 %v2954
      %v2971 = vunpack.c.l.b16 %v2955
      %v2972 = vunpack.c.l.b16 %v2956
      %v2973 = vunpack.c.l.b16 %v2957
      %v2974 = vunpack.c.l.b16 %v2958
      %v2975 = vpack.c.b16 %v2968, %v2967
      %v2976 = vpack.c.b16 %v2970, %v2969
      %v2977 = vpack.c.b16 %v2972, %v2971
      %v2978 = vpack.c.b16 %v2974, %v2973
      %2983 = vst [vmem:[#allocation2 + $0x100] sm:$0xff] %v2975
      %2984 = vst [vmem:[#allocation2 + $0x108] sm:$0xff] %v2976
      %2985 = vst [vmem:[#allocation2 + $0x110] sm:$0xff] %v2977
      %2986 = vst [vmem:[#allocation2 + $0x118] sm:$0xff] %v2978
      %v2987 = vld [vmem:[%s7] sm:$0xf]
      %v2988 = vld [vmem:[#allocation2] sm:$0xff]
      %v2989 = vld [vmem:[#allocation2 + $0x8] sm:$0xff]
      %v2990 = vld [vmem:[#allocation2 + $0x10] sm:$0xff]
      %v2991 = vld [vmem:[#allocation2 + $0x18] sm:$0xff]
      %v2992 = vld [vmem:[#allocation2 + $0x20] sm:$0xff]
      %v2993 = vld [vmem:[#allocation2 + $0x28] sm:$0xff]
      %v2994 = vld [vmem:[#allocation2 + $0x30] sm:$0xff]
      %v2995 = vld [vmem:[#allocation2 + $0x38] sm:$0xff]
      %v2996 = vld [vmem:[#allocation2 + $0x40] sm:$0xff]
      %v2997 = vld [vmem:[#allocation2 + $0x48] sm:$0xff]
      %v2998 = vld [vmem:[#allocation2 + $0x50] sm:$0xff]
      %v2999 = vld [vmem:[#allocation2 + $0x58] sm:$0xff]
      %v3000 = vld [vmem:[#allocation2 + $0x60] sm:$0xff]
      %v3001 = vld [vmem:[#allocation2 + $0x68] sm:$0xff]
      %v3002 = vld [vmem:[#allocation2 + $0x70] sm:$0xff]
      %v3003 = vld [vmem:[#allocation2 + $0x78] sm:$0xff]
      %v3004 = vld [vmem:[#allocation2 + $0x80] sm:$0xff]
      %v3005 = vld [vmem:[#allocation2 + $0x88] sm:$0xff]
      %v3006 = vld [vmem:[#allocation2 + $0x90] sm:$0xff]
      %v3007 = vld [vmem:[#allocation2 + $0x98] sm:$0xff]
      %v3008 = vld [vmem:[#allocation2 + $0xa0] sm:$0xff]
      %v3009 = vld [vmem:[#allocation2 + $0xa8] sm:$0xff]
      %v3010 = vld [vmem:[#allocation2 + $0xb0] sm:$0xff]
      %v3011 = vld [vmem:[#allocation2 + $0xb8] sm:$0xff]
      %v3012 = vld [vmem:[#allocation2 + $0xc0] sm:$0xff]
      %v3013 = vld [vmem:[#allocation2 + $0xc8] sm:$0xff]
      %v3014 = vld [vmem:[#allocation2 + $0xd0] sm:$0xff]
      %v3015 = vld [vmem:[#allocation2 + $0xd8] sm:$0xff]
      %v3016 = vld [vmem:[#allocation2 + $0xe0] sm:$0xff]
      %v3017 = vld [vmem:[#allocation2 + $0xe8] sm:$0xff]
      %v3018 = vld [vmem:[#allocation2 + $0xf0] sm:$0xff]
      %v3019 = vld [vmem:[#allocation2 + $0xf8] sm:$0xff]
      %v3020 = vld [vmem:[#allocation2 + $0x100] sm:$0xff]
      %v3021 = vld [vmem:[#allocation2 + $0x108] sm:$0xff]
      %v3022 = vld [vmem:[#allocation2 + $0x110] sm:$0xff]
      %v3023 = vld [vmem:[#allocation2 + $0x118] sm:$0xff]
      %v3024 = vld [vmem:[%s8] sm:$0xff]
      %3026 = vset.pattern.permute.xlu0 0
      %3027 = vperm.xlu0 %3026, %v3024
      %v3028 = vpop.permute.xlu0 %3027
      %v3066 = vunpack.c.l.b16 %v2988
      %v3067 = vunpack.c.h.b16 %v2988
      %v3068 = vunpack.c.l.b16 %v2989
      %v3069 = vunpack.c.h.b16 %v2989
      %v3070 = vunpack.c.l.b16 %v2990
      %v3071 = vunpack.c.h.b16 %v2990
      %v3072 = vunpack.c.l.b16 %v2991
      %v3073 = vunpack.c.h.b16 %v2991
      %v3074 = vunpack.c.l.b16 %v2992
      %v3075 = vunpack.c.h.b16 %v2992
      %v3076 = vunpack.c.l.b16 %v2993
      %v3077 = vunpack.c.h.b16 %v2993
      %v3078 = vunpack.c.l.b16 %v2994
      %v3079 = vunpack.c.h.b16 %v2994
      %v3080 = vunpack.c.l.b16 %v2995
      %v3081 = vunpack.c.h.b16 %v2995
      %v3082 = vunpack.c.l.b16 %v2996
      %v3083 = vunpack.c.h.b16 %v2996
      %v3084 = vunpack.c.l.b16 %v2997
      %v3085 = vunpack.c.h.b16 %v2997
      %v3086 = vunpack.c.l.b16 %v2998
      %v3087 = vunpack.c.h.b16 %v2998
      %v3088 = vunpack.c.l.b16 %v2999
      %v3089 = vunpack.c.h.b16 %v2999
      %v3090 = vunpack.c.l.b16 %v3000
      %v3091 = vunpack.c.h.b16 %v3000
      %v3092 = vunpack.c.l.b16 %v3001
      %v3093 = vunpack.c.h.b16 %v3001
      %v3094 = vunpack.c.l.b16 %v3002
      %v3095 = vunpack.c.h.b16 %v3002
      %v3096 = vunpack.c.l.b16 %v3003
      %v3097 = vunpack.c.h.b16 %v3003
      %v3098 = vunpack.c.l.b16 %v3004
      %v3099 = vunpack.c.h.b16 %v3004
      %v3100 = vunpack.c.l.b16 %v3005
      %v3101 = vunpack.c.h.b16 %v3005
      %v3102 = vunpack.c.l.b16 %v3006
      %v3103 = vunpack.c.h.b16 %v3006
      %v3104 = vunpack.c.l.b16 %v3007
      %v3105 = vunpack.c.h.b16 %v3007
      %v3106 = vunpack.c.l.b16 %v3008
      %v3107 = vunpack.c.h.b16 %v3008
      %v3108 = vunpack.c.l.b16 %v3009
      %v3109 = vunpack.c.h.b16 %v3009
      %v3110 = vunpack.c.l.b16 %v3010
      %v3111 = vunpack.c.h.b16 %v3010
      %v3112 = vunpack.c.l.b16 %v3011
      %v3113 = vunpack.c.h.b16 %v3011
      %v3114 = vunpack.c.l.b16 %v3012
      %v3115 = vunpack.c.h.b16 %v3012
      %v3116 = vunpack.c.l.b16 %v3013
      %v3117 = vunpack.c.h.b16 %v3013
      %v3118 = vunpack.c.l.b16 %v3014
      %v3119 = vunpack.c.h.b16 %v3014
      %v3120 = vunpack.c.l.b16 %v3015
      %v3121 = vunpack.c.h.b16 %v3015
      %v3122 = vunpack.c.l.b16 %v3016
      %v3123 = vunpack.c.h.b16 %v3016
      %v3124 = vunpack.c.l.b16 %v3017
      %v3125 = vunpack.c.h.b16 %v3017
      %v3126 = vunpack.c.l.b16 %v3018
      %v3127 = vunpack.c.h.b16 %v3018
      %v3128 = vunpack.c.l.b16 %v3019
      %v3129 = vunpack.c.h.b16 %v3019
      %v3130 = vunpack.c.l.b16 %v3020
      %v3131 = vunpack.c.h.b16 %v3020
      %v3132 = vunpack.c.l.b16 %v3021
      %v3133 = vunpack.c.h.b16 %v3021
      %v3134 = vunpack.c.l.b16 %v3022
      %v3135 = vunpack.c.h.b16 %v3022
      %v3136 = vunpack.c.l.b16 %v3023
      %v3137 = vunpack.c.h.b16 %v3023
      %v3138 = vpack.c.b16 %v3074, %v3066
      %v3139 = vpack.c.b16 %v3075, %v3067
      %v3140 = vpack.c.b16 %v3076, %v3068
      %v3141 = vpack.c.b16 %v3077, %v3069
      %v3142 = vpack.c.b16 %v3078, %v3070
      %v3143 = vpack.c.b16 %v3079, %v3071
      %v3144 = vpack.c.b16 %v3080, %v3072
      %v3145 = vpack.c.b16 %v3081, %v3073
      %v3146 = vpack.c.b16 %v3090, %v3082
      %v3147 = vpack.c.b16 %v3091, %v3083
      %v3148 = vpack.c.b16 %v3092, %v3084
      %v3149 = vpack.c.b16 %v3093, %v3085
      %v3150 = vpack.c.b16 %v3094, %v3086
      %v3151 = vpack.c.b16 %v3095, %v3087
      %v3152 = vpack.c.b16 %v3096, %v3088
      %v3153 = vpack.c.b16 %v3097, %v3089
      %v3154 = vpack.c.b16 %v3106, %v3098
      %v3155 = vpack.c.b16 %v3107, %v3099
      %v3156 = vpack.c.b16 %v3108, %v3100
      %v3157 = vpack.c.b16 %v3109, %v3101
      %v3158 = vpack.c.b16 %v3110, %v3102
      %v3159 = vpack.c.b16 %v3111, %v3103
      %v3160 = vpack.c.b16 %v3112, %v3104
      %v3161 = vpack.c.b16 %v3113, %v3105
      %v3162 = vpack.c.b16 %v3122, %v3114
      %v3163 = vpack.c.b16 %v3123, %v3115
      %v3164 = vpack.c.b16 %v3124, %v3116
      %v3165 = vpack.c.b16 %v3125, %v3117
      %v3166 = vpack.c.b16 %v3126, %v3118
      %v3167 = vpack.c.b16 %v3127, %v3119
      %v3168 = vpack.c.b16 %v3128, %v3120
      %v3169 = vpack.c.b16 %v3129, %v3121
      %v3170 = vpack.c.b16 %v3130, %v3130
      %v3171 = vpack.c.b16 %v3131, %v3131
      %v3172 = vpack.c.b16 %v3132, %v3132
      %v3173 = vpack.c.b16 %v3133, %v3133
      %v3174 = vpack.c.b16 %v3134, %v3134
      %v3175 = vpack.c.b16 %v3135, %v3135
      %v3176 = vpack.c.b16 %v3136, %v3136
      %v3177 = vpack.c.b16 %v3137, %v3137
      %v3211 = vsel %vm1883, %v2987, 0
      %v3214 = vsel %vm1887, %v3170, 0
      %v3217 = vsel %vm1887, %v3171, 0
      %v3220 = vsel %vm1887, %v3172, 0
      %v3223 = vsel %vm1887, %v3173, 0
      %v3226 = vsel %vm1887, %v3174, 0
      %v3229 = vsel %vm1887, %v3175, 0
      %v3232 = vsel %vm1887, %v3176, 0
      %v3235 = vsel %vm1887, %v3177, 0
      %3237 = vmatprep.subr.bf16.mxu0 %v3139
      %3238 = vmatpush1.bf16.msra.mxu0 %v3138
      %3239 = vmatprep.subr.bf16.mxu0 %v3147
      %3240 = vmatpush1.bf16.msra.mxu0 %v3146
      %3241 = vmatprep.subr.bf16.mxu0 %v3155
      %3242 = vmatpush1.bf16.msra.mxu0 %v3154
      %3243 = vmatprep.subr.bf16.mxu0 %v3163
      %3244 = vmatpush1.bf16.msra.mxu0 %v3162
      %3245 = vmatprep.subr.bf16.mxu0 %v3217
      %3246 = vmatpush1.bf16.msra.mxu0 %v3214
      %3247 = vmatprep.subr.bf16.mxu0 0
      %3248 = vmatpush1.bf16.msra.mxu0 0
      %3249 = vmatprep.subr.bf16.mxu0 0
      %3250 = vmatpush1.bf16.msra.mxu0 0
      %3251 = vmatprep.subr.bf16.mxu0 0
      %3252 = vmatpush1.bf16.msra.mxu0 0
      %3253 = vmatprep.subr.bf16.mxu0 0
      %3254 = vmatpush1.bf16.msra.mxu0 0
      %3255 = vmatprep.subr.bf16.mxu0 0
      %3256 = vmatpush1.bf16.msra.mxu0 0
      %3257 = vmatprep.subr.bf16.mxu0 0
      %3258 = vmatpush1.bf16.msra.mxu0 0
      %3259 = vmatprep.subr.bf16.mxu0 0
      %3260 = vmatpush1.bf16.msra.mxu0 0
      %3261 = vmatprep.subr.bf16.mxu0 0
      %3262 = vmatpush1.bf16.msra.mxu0 0
      %3263 = vmatprep.subr.bf16.mxu0 0
      %3264 = vmatpush1.bf16.msra.mxu0 0
      %3265 = vmatprep.subr.bf16.mxu0 0
      %3266 = vmatpush1.bf16.msra.mxu0 0
      %3267 = vmatprep.subr.bf16.mxu0 0
      %3268 = vmatpush1.bf16.msra.mxu0 0
      %3269 = vmatprep.mubr.bf16.mxu0 0
      %3270 = vmatmul.mubr.bf16.gmra.mrb[0].mxu0 %v3211
      %v3271 = vpop.f32.mrb[0].mxu0
      %v3272 = vadd.f32 %v3028, %v3271
      %v3273 = vpop.f32.mrb[0].mxu0
      %v3274 = vadd.f32 %v3028, %v3273
      %v3275 = vpop.f32.mrb[0].mxu0
      %v3276 = vpop.f32.mrb[0].mxu0
      %3277 = vdwg.mxu0
      %3278 = vmatprep.subr.bf16.mxu0 %v3141
      %3279 = vmatpush1.bf16.msra.mxu0 %v3140
      %3280 = vmatprep.subr.bf16.mxu0 %v3149
      %3281 = vmatpush1.bf16.msra.mxu0 %v3148
      %3282 = vmatprep.subr.bf16.mxu0 %v3157
      %3283 = vmatpush1.bf16.msra.mxu0 %v3156
      %3284 = vmatprep.subr.bf16.mxu0 %v3165
      %3285 = vmatpush1.bf16.msra.mxu0 %v3164
      %3286 = vmatprep.subr.bf16.mxu0 %v3223
      %3287 = vmatpush1.bf16.msra.mxu0 %v3220
      %3288 = vmatprep.subr.bf16.mxu0 0
      %3289 = vmatpush1.bf16.msra.mxu0 0
      %3290 = vmatprep.subr.bf16.mxu0 0
      %3291 = vmatpush1.bf16.msra.mxu0 0
      %3292 = vmatprep.subr.bf16.mxu0 0
      %3293 = vmatpush1.bf16.msra.mxu0 0
      %3294 = vmatprep.subr.bf16.mxu0 0
      %3295 = vmatpush1.bf16.msra.mxu0 0
      %3296 = vmatprep.subr.bf16.mxu0 0
      %3297 = vmatpush1.bf16.msra.mxu0 0
      %3298 = vmatprep.subr.bf16.mxu0 0
      %3299 = vmatpush1.bf16.msra.mxu0 0
      %3300 = vmatprep.subr.bf16.mxu0 0
      %3301 = vmatpush1.bf16.msra.mxu0 0
      %3302 = vmatprep.subr.bf16.mxu0 0
      %3303 = vmatpush1.bf16.msra.mxu0 0
      %3304 = vmatprep.subr.bf16.mxu0 0
      %3305 = vmatpush1.bf16.msra.mxu0 0
      %3306 = vmatprep.subr.bf16.mxu0 0
      %3307 = vmatpush1.bf16.msra.mxu0 0
      %3308 = vmatprep.subr.bf16.mxu0 0
      %3309 = vmatpush1.bf16.msra.mxu0 0
      %3310 = vmatprep.mubr.bf16.mxu0 0
      %3311 = vmatmul.mubr.bf16.gmra.mrb[0].mxu0 %v3211
      %v3312 = vpop.f32.mrb[0].mxu0
      %v3313 = vadd.f32 %v3028, %v3312
      %v3314 = vpop.f32.mrb[0].mxu0
      %v3315 = vadd.f32 %v3028, %v3314
      %v3316 = vpop.f32.mrb[0].mxu0
      %v3317 = vpop.f32.mrb[0].mxu0
      %3318 = vdwg.mxu0
      %3319 = vmatprep.subr.bf16.mxu0 %v3143
      %3320 = vmatpush1.bf16.msra.mxu0 %v3142
      %3321 = vmatprep.subr.bf16.mxu0 %v3151
      %3322 = vmatpush1.bf16.msra.mxu0 %v3150
      %3323 = vmatprep.subr.bf16.mxu0 %v3159
      %3324 = vmatpush1.bf16.msra.mxu0 %v3158
      %3325 = vmatprep.subr.bf16.mxu0 %v3167
      %3326 = vmatpush1.bf16.msra.mxu0 %v3166
      %3327 = vmatprep.subr.bf16.mxu0 %v3229
      %3328 = vmatpush1.bf16.msra.mxu0 %v3226
      %3329 = vmatprep.subr.bf16.mxu0 0
      %3330 = vmatpush1.bf16.msra.mxu0 0
      %3331 = vmatprep.subr.bf16.mxu0 0
      %3332 = vmatpush1.bf16.msra.mxu0 0
      %3333 = vmatprep.subr.bf16.mxu0 0
      %3334 = vmatpush1.bf16.msra.mxu0 0
      %3335 = vmatprep.subr.bf16.mxu0 0
      %3336 = vmatpush1.bf16.msra.mxu0 0
      %3337 = vmatprep.subr.bf16.mxu0 0
      %3338 = vmatpush1.bf16.msra.mxu0 0
      %3339 = vmatprep.subr.bf16.mxu0 0
      %3340 = vmatpush1.bf16.msra.mxu0 0
      %3341 = vmatprep.subr.bf16.mxu0 0
      %3342 = vmatpush1.bf16.msra.mxu0 0
      %3343 = vmatprep.subr.bf16.mxu0 0
      %3344 = vmatpush1.bf16.msra.mxu0 0
      %3345 = vmatprep.subr.bf16.mxu0 0
      %3346 = vmatpush1.bf16.msra.mxu0 0
      %3347 = vmatprep.subr.bf16.mxu0 0
      %3348 = vmatpush1.bf16.msra.mxu0 0
      %3349 = vmatprep.subr.bf16.mxu0 0
      %3350 = vmatpush1.bf16.msra.mxu0 0
      %3351 = vmatprep.mubr.bf16.mxu0 0
      %3352 = vmatmul.mubr.bf16.gmra.mrb[0].mxu0 %v3211
      %v3353 = vpop.f32.mrb[0].mxu0
      %v3354 = vadd.f32 %v3028, %v3353
      %v3355 = vpop.f32.mrb[0].mxu0
      %v3356 = vadd.f32 %v3028, %v3355
      %v3357 = vpop.f32.mrb[0].mxu0
      %v3358 = vpop.f32.mrb[0].mxu0
      %3359 = vdwg.mxu0
      %3360 = vmatprep.subr.bf16.mxu0 %v3145
      %3361 = vmatpush1.bf16.msra.mxu0 %v3144
      %3362 = vmatprep.subr.bf16.mxu0 %v3153
      %3363 = vmatpush1.bf16.msra.mxu0 %v3152
      %3364 = vmatprep.subr.bf16.mxu0 %v3161
      %3365 = vmatpush1.bf16.msra.mxu0 %v3160
      %3366 = vmatprep.subr.bf16.mxu0 %v3169
      %3367 = vmatpush1.bf16.msra.mxu0 %v3168
      %3368 = vmatprep.subr.bf16.mxu0 %v3235
      %3369 = vmatpush1.bf16.msra.mxu0 %v3232
      %3370 = vmatprep.subr.bf16.mxu0 0
      %3371 = vmatpush1.bf16.msra.mxu0 0
      %3372 = vmatprep.subr.bf16.mxu0 0
      %3373 = vmatpush1.bf16.msra.mxu0 0
      %3374 = vmatprep.subr.bf16.mxu0 0
      %3375 = vmatpush1.bf16.msra.mxu0 0
      %3376 = vmatprep.subr.bf16.mxu0 0
      %3377 = vmatpush1.bf16.msra.mxu0 0
      %3378 = vmatprep.subr.bf16.mxu0 0
      %3379 = vmatpush1.bf16.msra.mxu0 0
      %3380 = vmatprep.subr.bf16.mxu0 0
      %3381 = vmatpush1.bf16.msra.mxu0 0
      %3382 = vmatprep.subr.bf16.mxu0 0
      %3383 = vmatpush1.bf16.msra.mxu0 0
      %3384 = vmatprep.subr.bf16.mxu0 0
      %3385 = vmatpush1.bf16.msra.mxu0 0
      %3386 = vmatprep.subr.bf16.mxu0 0
      %3387 = vmatpush1.bf16.msra.mxu0 0
      %3388 = vmatprep.subr.bf16.mxu0 0
      %3389 = vmatpush1.bf16.msra.mxu0 0
      %3390 = vmatprep.subr.bf16.mxu0 0
      %3391 = vmatpush1.bf16.msra.mxu0 0
      %3392 = vmatprep.mubr.bf16.mxu0 0
      %3393 = vmatmul.mubr.bf16.gmra.mrb[0].mxu0 %v3211
      %v3394 = vpop.f32.mrb[0].mxu0
      %v3395 = vadd.f32 %v3028, %v3394
      %v3396 = vpop.f32.mrb[0].mxu0
      %v3397 = vadd.f32 %v3028, %v3396
      %v3398 = vpop.f32.mrb[0].mxu0
      %v3399 = vpop.f32.mrb[0].mxu0
      %3400 = vdwg.mxu0
      %vm3401 = vcmp.gt.f32.partialorder %v3272, 0.0
      %vm3402 = vcmp.gt.f32.partialorder %v3274, 0.0
      %vm3403 = vcmp.gt.f32.partialorder %v3313, 0.0
      %vm3404 = vcmp.gt.f32.partialorder %v3315, 0.0
      %vm3405 = vcmp.gt.f32.partialorder %v3354, 0.0
      %vm3406 = vcmp.gt.f32.partialorder %v3356, 0.0
      %vm3407 = vcmp.gt.f32.partialorder %v3395, 0.0
      %vm3408 = vcmp.gt.f32.partialorder %v3397, 0.0
      %v3409 = vmul.f32 %v3272, 0.01
      %v3410 = vmul.f32 %v3274, 0.01
      %v3411 = vmul.f32 %v3313, 0.01
      %v3412 = vmul.f32 %v3315, 0.01
      %v3413 = vmul.f32 %v3354, 0.01
      %v3414 = vmul.f32 %v3356, 0.01
      %v3415 = vmul.f32 %v3395, 0.01
      %v3416 = vmul.f32 %v3397, 0.01
      %v3417 = vsel %vm3401, %v3272, %v3409
      %v3418 = vsel %vm3402, %v3274, %v3410
      %v3419 = vsel %vm3403, %v3313, %v3411
      %v3420 = vsel %vm3404, %v3315, %v3412
      %v3421 = vsel %vm3405, %v3354, %v3413
      %v3422 = vsel %vm3406, %v3356, %v3414
      %v3423 = vsel %vm3407, %v3395, %v3415
      %v3424 = vsel %vm3408, %v3397, %v3416
      %v3425 = vld [vmem:[%s9] sm:$0xff]
      %3427 = vset.pattern.permute.xlu0 0
      %3428 = vperm.xlu0 %3427, %v3425
      %v3429 = vpop.permute.xlu0 %3428
      %v3431 = vadd.f32 %v3417, %v3429
      %v3432 = vadd.f32 %v3418, %v3429
      %v3433 = vadd.f32 %v3419, %v3429
      %v3434 = vadd.f32 %v3420, %v3429
      %v3435 = vadd.f32 %v3421, %v3429
      %v3436 = vadd.f32 %v3422, %v3429
      %v3437 = vadd.f32 %v3423, %v3429
      %v3438 = vadd.f32 %v3424, %v3429
      %3439 = vst [vmem:[%s453 + $0x40] sm:$0xff] %v3431
      %3440 = vst [vmem:[%s453 + $0x48] sm:$0xff] %v3432
      %3441 = vst [vmem:[%s453 + $0x50] sm:$0xff] %v3433
      %3442 = vst [vmem:[%s453 + $0x58] sm:$0xff] %v3434
      %3443 = vst [vmem:[%s453 + $0x60] sm:$0xff] %v3435
      %3444 = vst [vmem:[%s453 + $0x68] sm:$0xff] %v3436
      %3445 = vst [vmem:[%s453 + $0x70] sm:$0xff] %v3437
      %3446 = vst [vmem:[%s453 + $0x78] sm:$0xff] %v3438
      %3447 = vst [vmem:[%s453 + $0x80] sm:$0xf] %v455
      %3448 = vst [vmem:[%s453 + $0x88] sm:$0xf] %v464
      %3449 = vst [vmem:[%s453 + $0x90] sm:$0xf] %v456
      %3450 = vst [vmem:[%s453 + $0x98] sm:$0xf] %v465
      %3451 = vst [vmem:[%s453 + $0xa0] sm:$0xf] %v457
      %3452 = vst [vmem:[%s453 + $0xa8] sm:$0xf] %v466
      %3453 = vst [vmem:[%s453 + $0xb0] sm:$0xf] %v458
      %3454 = vst [vmem:[%s453 + $0xb8] sm:$0xf] %v467
      %v3455 = vld [vmem:[%s443] sm:$0xff]
      %v3456 = vld [vmem:[%s443 + $0x8] sm:$0xff]
      %v3457 = vld [vmem:[%s443 + $0x10] sm:$0xff]
      %v3458 = vld [vmem:[%s443 + $0x18] sm:$0xff]
      %v3463 = vcombine.low %v3455, %v3455
      %v3464 = vcombine.low %v3456, %v3456
      %v3465 = vcombine.low %v3457, %v3457
      %v3466 = vcombine.low %v3458, %v3458
      %3471 = vst [vmem:[%s453 + $0x80] sm:$0xf0] %v3463
      %3472 = vst [vmem:[%s453 + $0x88] sm:$0xf0] %v3455
      %3473 = vst [vmem:[%s453 + $0x90] sm:$0xf0] %v3464
      %3474 = vst [vmem:[%s453 + $0x98] sm:$0xf0] %v3456
      %3475 = vst [vmem:[%s453 + $0xa0] sm:$0xf0] %v3465
      %3476 = vst [vmem:[%s453 + $0xa8] sm:$0xf0] %v3457
      %3477 = vst [vmem:[%s453 + $0xb0] sm:$0xf0] %v3466
      %3478 = vst [vmem:[%s453 + $0xb8] sm:$0xf0] %v3458
      %v3479 = vld [vmem:[%s448] sm:$0xff]
      %v3480 = vld [vmem:[%s448 + $0x8] sm:$0xff]
      %v3481 = vld [vmem:[%s448 + $0x10] sm:$0xff]
      %v3482 = vld [vmem:[%s448 + $0x18] sm:$0xff]
      %v3487 = vcombine.high %v3479, %v3479
      %v3488 = vcombine.high %v3480, %v3480
      %v3489 = vcombine.high %v3481, %v3481
      %v3490 = vcombine.high %v3482, %v3482
      %3495 = vst [vmem:[%s453 + $0xc0] sm:$0xf] %v3479
      %3496 = vst [vmem:[%s453 + $0xc8] sm:$0xf] %v3487
      %3497 = vst [vmem:[%s453 + $0xd0] sm:$0xf] %v3480
      %3498 = vst [vmem:[%s453 + $0xd8] sm:$0xf] %v3488
      %3499 = vst [vmem:[%s453 + $0xe0] sm:$0xf] %v3481
      %3500 = vst [vmem:[%s453 + $0xe8] sm:$0xf] %v3489
      %3501 = vst [vmem:[%s453 + $0xf0] sm:$0xf] %v3482
      %3502 = vst [vmem:[%s453 + $0xf8] sm:$0xf] %v3490
      %p3503 = scmp.lt.s32.totalorder %s23, 1
      %s3504 = scalar_select %p3503, %s23, 1
      %s3505 = smul.addr %s3504, 32
      %s3506 = smul.addr %s3505, 8
      %s3507 = scalar_lea.vmem %s12, %s3506
      // Predicated region
      $region69: #{decoder_block_forward.1} parent=67 // pred_check
        %p3508 = pneg %p308
      $region70: #{decoder_block_forward.1} parent=67 // pred_check_branch
        %3510 = sbr.rel (%p3508) target = $region72
      $region71: #{decoder_block_forward.1} parent=67 // pred_region
        _
      $region72: #{decoder_block_forward.1} parent=67 // pred_fallthru
        _
    $region68: #{decoder_block_forward.1} parent=5 // pred_fallthru
      _
    %p3511 = scmp.le.s32.totalorder 2, %s18
    // Predicated region
    $region73: #{decoder_block_forward.1} parent=5 // pred_check
      %p3512 = pneg %p3511
    $region74: #{decoder_block_forward.1} parent=5 // pred_check_branch
      %3514 = sbr.rel (%p3512) target = $region76
    $region75: #{decoder_block_forward.1} parent=5 // pred_region
      %s3515 = ssub.s32 %s18, 2
      // Predicated region
      $region77: #{decoder_block_forward.1} parent=75 // pred_check
        %p3516 = pneg %p314
      $region78: #{decoder_block_forward.1} parent=75 // pred_check_branch
        %3518 = sbr.rel (%p3516) target = $region80
      $region79: #{decoder_block_forward.1} parent=75 // pred_region
        %p3519 = scmp.lt.s32.totalorder %s24, 1
        %s3520 = scalar_select %p3519, %s24, 1
        %s3521 = smul.addr %s3520, 32
        %s3522 = smul.addr %s3521, 8
        %s3523 = scalar_lea.vmem %s12, %s3522
      $region80: #{decoder_block_forward.1} parent=75 // pred_fallthru
        _
    $region76: #{decoder_block_forward.1} parent=5 // pred_fallthru
      _
  $region6: #{decoder_block_forward.1} parent=0 // loop_footer
    %s22 = sadd.s32 1, %s18
  $region7: #{decoder_block_forward.1} parent=0 // loop_footer_branch
    %17 = sbr.rel target = $region3
  $region8: #{decoder_block_forward.1} parent=0 // loop_exit
    _

</llo_original>
